<compile_context>
chip_gen: v5e
topology: v5e:2x2
jax: 0.10.0
libtpu: 0.0.40
codegen_flags: <defaults>
</compile_context>

<pallas_src>
import jax
import jax.numpy as jnp
from jax import lax
from jax.experimental import pallas as pl
from jax.experimental.pallas import tpu as pltpu


def _round_up(x, m):
    return pl.cdiv(x, m) * m


def _make_gather_kernel(precision):
    def kernel(idx_ref, emb_ref, out_ref):
        """out[r, :] = emb[idx[r], :] via one-hot @ emb on the MXU."""
        tm = out_ref.shape[0]
        max_len = emb_ref.shape[0]
        idx = idx_ref[...]                                              # (TM, 1) int32
        positions = lax.broadcasted_iota(jnp.int32, (tm, max_len), 1)   # (TM, max_len)
        one_hot = (positions == idx).astype(emb_ref.dtype)              # exact 0/1
        out_ref[...] = jnp.dot(
            one_hot,
            emb_ref[...],
            preferred_element_type=jnp.float32,
            precision=precision,
        ).astype(out_ref.dtype)

    return kernel


def position_embedding_lookup(idx_flat, emb, *, tile_rows=512):
    """idx_flat: (N,) integer indices into emb (max_len, D). Returns (N, D)."""
    n = idx_flat.shape[0]
    max_len, d = emb.shape

    # Lane-dense output: pad the feature dim to a multiple of 128, slice later.
    d_pad = _round_up(d, 128)
    emb_k = emb if d_pad == d else jnp.pad(emb, ((0, 0), (0, d_pad - d)))

    # Tile selection: big tiles amortize per-step overhead, but keep >= 2 grid
    # steps when possible so v7x's two TensorCores both get work.
    tile = max(8, _round_up(min(tile_rows, n), 8))
    if _round_up(n, tile) // tile < 2 and n >= 16:
        tile = max(8, _round_up(pl.cdiv(n, 2), 8))
    n_pad = _round_up(n, tile)
    grid = n_pad // tile

    idx2d = idx_flat.astype(jnp.int32).reshape(n, 1)
    if n_pad != n:
        # Padded tail rows gather emb[0]; they are sliced off below.
        idx2d = jnp.pad(idx2d, ((0, n_pad - n), (0, 0)))

    itemsize = jnp.dtype(emb_k.dtype).itemsize
    # Exact f32 gather needs full-precision MXU passes; bf16 runs MXU-native.
    precision = (
        lax.Precision.HIGHEST
        if jnp.dtype(emb_k.dtype) == jnp.dtype(jnp.float32)
        else lax.Precision.DEFAULT
    )

    cost = pl.CostEstimate(
        flops=2 * n_pad * max_len * d_pad,
        transcendentals=0,
        bytes_accessed=(
            n_pad * 4                      # index stream
            + max_len * d_pad * itemsize   # table (fetched once, VMEM-resident)
            + n_pad * d_pad * itemsize     # output
        ),
    )

    out = pl.pallas_call(
        _make_gather_kernel(precision),
        out_shape=jax.ShapeDtypeStruct((n_pad, d_pad), emb_k.dtype),
        grid=(grid,),
        in_specs=[
            # (TM, 1) tile of indices marching down the flattened batch.
            pl.BlockSpec((tile, 1), lambda i: (i, 0)),
            # Whole sin/cos table, single-buffered, VMEM-resident for the
            # entire grid (no per-step DMA, no double buffer).
            pl.BlockSpec(memory_space=pltpu.MemorySpace.VMEM),
        ],
        out_specs=pl.BlockSpec((tile, d_pad), lambda i: (i, 0)),
        compiler_params=pltpu.CompilerParams(
            dimension_semantics=("parallel",),  # independent row tiles -> megacore
        ),
        cost_estimate=cost,
    )(idx2d, emb_k)

    if n_pad != n or d_pad != d:
        out = out[:n, :d]
    return out


class PositionEmbeddingPallas:
    """JAX/Pallas port of the PyTorch PositionEmbedding module.

    dtype=jnp.float32 (default) reproduces PyTorch values exactly;
    dtype=jnp.bfloat16 trades ~1e-3 table precision for MXU-native matmuls and
    half the table HBM/VMEM traffic.
    """

    def __init__(self, input_dim, max_len=512, scale=1.0,
                 dtype=jnp.float32, tile_rows=512):
        freq_seq = jnp.arange(0, input_dim, 2.0, dtype=jnp.float32)
        inv_freq = 1.0 / jnp.power(jnp.float32(10000.0), freq_seq / input_dim)
        pos = jnp.arange(0, max_len, dtype=jnp.float32)
        sinusoid_inp = jnp.outer(pos, inv_freq)                      # th.ger
        emb = (
            jnp.concatenate([jnp.sin(sinusoid_inp), jnp.cos(sinusoid_inp)], axis=-1)
            * jnp.float32(scale)
        )
        self.emb = emb.astype(dtype)
        self.max_len = max_len
        self.tile_rows = tile_rows

    def __call__(self, x):
        size = x.shape
        out = position_embedding_lookup(
            x.reshape(-1), self.emb, tile_rows=self.tile_rows
        )
        return out.reshape(tuple(size) + (self.emb.shape[-1],))

    def get_output_dim(self):
        return self.emb.shape[-1]


def _reference(x, emb):
    """Plain-JAX reference of the same forward pass (same table dtype)."""
    return jnp.take(emb, x.reshape(-1), axis=0).reshape(
        tuple(x.shape) + (emb.shape[-1],)
    )


if __name__ == "__main__":
    key = jax.random.PRNGKey(0)
    k1, k2 = jax.random.split(key)

    # --- Check 1: exact f32 path, lane-dense D=128, grid split into 2 tiles.
    input_dim, max_len = 128, 512
    batch, seq = 4, 64                     # 256 flattened indices
    x = jax.random.randint(k1, (batch, seq), 0, max_len, dtype=jnp.int32)
    model = PositionEmbeddingPallas(input_dim, max_len=max_len, scale=1.0,
                                    dtype=jnp.float32)
    out = jax.block_until_ready(model(x))
    ref = _reference(x, model.emb)
    assert out.shape == (batch, seq, model.get_output_dim())
    assert out.dtype == model.emb.dtype
    assert jnp.allclose(out, ref, atol=1e-5, rtol=1e-5), "f32 mismatch vs reference"

    # --- Check 2: bf16 MXU-native path, D=96 (feature dim padded to 128 in
    #              the kernel), ragged N=111 (row padding + 2-way grid split).
    input_dim2, max_len2 = 96, 512
    x2 = jax.random.randint(k2, (3, 37), 0, max_len2, dtype=jnp.int32)
    model2 = PositionEmbeddingPallas(input_dim2, max_len=max_len2, scale=2.0,
                                     dtype=jnp.bfloat16)
    out2 = jax.block_until_ready(model2(x2))
    ref2 = _reference(x2, model2.emb)
    assert out2.shape == (3, 37, model2.get_output_dim())
    assert out2.dtype == jnp.bfloat16
    assert jnp.allclose(out2.astype(jnp.float32), ref2.astype(jnp.float32),
                        atol=1e-2, rtol=1e-2), "bf16 mismatch vs reference"

    print("KERNEL_OK")
</pallas_src>

<mosaic_0001>
module attributes {stable_mosaic.version = 11 : i64} {
  func.func @kernel(%arg0: i32, %arg1: memref<128x1xi32, #tpu.memory_space<vmem>>, %arg2: memref<512x128xf32, #tpu.memory_space<vmem>>, %arg3: memref<128x128xf32, #tpu.memory_space<vmem>>) attributes {dimension_semantics = [#tpu.dimension_semantics<parallel>], iteration_bounds = array<i64: 2>, scalar_prefetch = 0 : i64, scratch_operands = 0 : i64, tpu.core_type = #tpu.core_type<tc>, window_params = [{transform_indices = @transform_0, window_bounds = array<i64: 128, 1>}, {pipeline_mode = #tpu.pipeline_mode<synchronous>, transform_indices = @transform_1, window_bounds = array<i64: 512, 128>}, {transform_indices = @transform_2, window_bounds = array<i64: 128, 128>}]} {
    %c0 = arith.constant 0 : index
    %c0_0 = arith.constant 0 : index
    %0 = vector.load %arg1[%c0, %c0_0] : memref<128x1xi32, #tpu.memory_space<vmem>>, vector<128x1xi32>
    %1 = tpu.iota {dimensions = array<i32: 1>} : vector<128x512xi32>
    %2 = vector.broadcast %0 : vector<128x1xi32> to vector<128x512xi32>
    %3 = arith.cmpi eq, %1, %2 : vector<128x512xi32>
    %4 = arith.extui %3 : vector<128x512xi1> to vector<128x512xi32>
    %5 = arith.sitofp %4 : vector<128x512xi32> to vector<128x512xf32>
    %c0_1 = arith.constant 0 : index
    %c0_2 = arith.constant 0 : index
    %6 = vector.load %arg2[%c0_1, %c0_2] : memref<512x128xf32, #tpu.memory_space<vmem>>, vector<512x128xf32>
    %cst = arith.constant dense<0.000000e+00> : vector<128x128xf32>
    %7 = tpu.matmul %5, %6, %cst {dimension_numbers = #tpu.dot_dimension_numbers<[1], [0], [0], [1], [0, 0, 1, 1], [], []>, precision = #tpu.contract_precision<fp32>} : vector<128x512xf32>, vector<512x128xf32>, vector<128x128xf32> -> vector<128x128xf32>
    %c0_3 = arith.constant 0 : index
    %c0_4 = arith.constant 0 : index
    %8 = vector.load %arg3[%c0_3, %c0_4] : memref<128x128xf32, #tpu.memory_space<vmem>>, vector<128x128xf32>
    tpu.vector_store %arg3[%c0_3, %c0_4], %7 {strides = array<i32>} : memref<128x128xf32, #tpu.memory_space<vmem>>, vector<128x128xf32>,
    return
  }
  func.func @transform_0(%arg0: i32) -> (i32, i32) {
    %c0_i32 = arith.constant 0 : i32
    %c0_i32_0 = arith.constant 0 : i32
    return %arg0, %c0_i32 : i32, i32
  }
  func.func @transform_1(%arg0: i32) -> (i32, i32) {
    %c0_i32 = arith.constant 0 : i32
    %c0_i32_0 = arith.constant 0 : i32
    %c0_i32_1 = arith.constant 0 : i32
    return %c0_i32, %c0_i32_0 : i32, i32
  }
  func.func @transform_2(%arg0: i32) -> (i32, i32) {
    %c0_i32 = arith.constant 0 : i32
    %c0_i32_0 = arith.constant 0 : i32
    return %arg0, %c0_i32 : i32, i32
  }
}

</mosaic_0001>

<llo_original>
// kernel: tpu_custom_call.1
$region0: #{tpu_custom_call.1}
  #allocation0 [shape = 'u32[]', space=smem, size = 0x4, offset = 0x4, fixed_abs, tag = 'smem constant byte address 0x4 - core index']
  #allocation1 [shape = 'u32[72,128]{1,0:T(1,128)}', space=vmem, size = 0x9000, scoped, tag = 'internal scratch']
  %s0 = inlined_call_operand.vmem [shape: s32[256,1], index: 0, kind: input, shape index: {}]
  %s1 = inlined_call_operand.hbm [shape: f32[512,128], index: 1, kind: input, shape index: {}]
  %s2 = inlined_call_operand.hbm [shape: f32[256,128], index: 2, kind: output, shape index: {}]
  %s3 = sld [smem:[#allocation0]]
  $region45: #{tpu_custom_call.1} parent=0
    _
  %s5 = ssub.s32 1, %s3
  %s6 = scalar_select 0, %s5, %s3
  $region1: #{tpu_custom_call.1} parent=0
    #allocation2 [shape = 'u8[262144]{0}', space=vmem, size = 0x40000, scoped, tag = 'input window, operand 1, single buffered']
    #allocation3 [shape = 's32[2]{0}', space=sflag, size = 0x8, scoped, tag = 'scoped memory for tpu_custom_call.1']
    #allocation4 [shape = 's32[2]{0}', space=sflag, size = 0x8, scoped, tag = 'scoped memory for tpu_custom_call.1']
    #allocation5 [shape = 'u8[131072]{0}', space=vmem, size = 0x20000, scoped, tag = 'output window, operand 0']
    %7 = vsyncpa [#allocation3], 0
    %8 = vsyncpa [#allocation4], 0
    %s9 = scalar_lea.sflag [#allocation4], 1
    %10 = vsyncpa %s9, 0
    loop: start=0, step=1, limit=4
    $region2: #{tpu_custom_call.1} parent=1 // loop_pre_header
      _
    $region3: #{tpu_custom_call.1} parent=1 // loop_header
      %s12 = sphi 0, %s16
      %p13 = scmp.ge.s32.totalorder %s12, 4
      %s22 = sphi 0, %s24
      %s25 = sphi 0, %s22
      %s26 = sphi 0, %s25
      %s42 = sphi 0, %s26
      %s46 = sphi 0, %s46
      %s48 = sphi 0, %s46
      %s49 = sphi 0, %s48
      %s63 = sphi 0, %s49
      %s69 = sphi 0, %s71
      %s72 = sphi 0, %s69
      %s73 = sphi 0, %s72
      %s89 = sphi 0, %s73
    $region4: #{tpu_custom_call.1} parent=1 // loop_header_branch
      %15 = sbr.rel (%p13) target = $region8
    $region5: #{tpu_custom_call.1} parent=1 // loop_body
      %s17 = ssub.s32 %s12, 1
      %s18 = ssub.s32 %s12, 2
      %s19 = sadd.s32 %s12, 1
      %s20 = ssub.s32 %s12, %s19
      %p21 = scmp.eq.s32.totalorder %s20, 0
      %s23 = sadd.s32 %s22, 1
      %s24 = scalar_select %p21, %s22, %s23
      %p27 = pneg %p21
      %p28 = scmp.eq.s32.totalorder %s12, 1
      %p29 = por %p27, %p28
      %p30 = scmp.ne.s32.totalorder %s22, %s25
      %p31 = scmp.eq.s32.totalorder %s12, 0
      %p32 = por %p30, %p31
      %p33 = scmp.ne.s32.totalorder %s22, %s25
      %p34 = scmp.eq.s32.totalorder %s17, 1
      %p35 = por %p33, %p34
      %p36 = scmp.ne.s32.totalorder %s25, %s26
      %p37 = scmp.eq.s32.totalorder %s17, 0
      %p38 = por %p36, %p37
      %p39 = scmp.ne.s32.totalorder %s25, %s26
      %p40 = scmp.eq.s32.totalorder %s18, 1
      %p41 = por %p39, %p40
      %p43 = scmp.ne.s32.totalorder %s26, %s42
      %p44 = scmp.eq.s32.totalorder %s18, 0
      %p45 = por %p43, %p44
      %s47 = sadd.s32 %s46, 1
      %p50 = scmp.eq.s32.totalorder %s12, 1
      %p51 = scmp.ne.s32.totalorder %s46, %s48
      %p52 = scmp.eq.s32.totalorder %s12, 0
      %p53 = por %p51, %p52
      %p54 = scmp.ne.s32.totalorder %s46, %s48
      %p55 = scmp.eq.s32.totalorder %s17, 1
      %p56 = por %p54, %p55
      %p57 = scmp.ne.s32.totalorder %s48, %s49
      %p58 = scmp.eq.s32.totalorder %s17, 0
      %p59 = por %p57, %p58
      %p60 = scmp.ne.s32.totalorder %s48, %s49
      %p61 = scmp.eq.s32.totalorder %s18, 1
      %p62 = por %p60, %p61
      %p64 = scmp.ne.s32.totalorder %s49, %s63
      %p65 = scmp.eq.s32.totalorder %s18, 0
      %p66 = por %p64, %p65
      %s67 = ssub.s32 %s12, %s19
      %p68 = scmp.eq.s32.totalorder %s67, 0
      %s70 = sadd.s32 %s69, 1
      %s71 = scalar_select %p68, %s69, %s70
      %p74 = pneg %p68
      %p75 = scmp.eq.s32.totalorder %s12, 1
      %p76 = por %p74, %p75
      %p77 = scmp.ne.s32.totalorder %s69, %s72
      %p78 = scmp.eq.s32.totalorder %s12, 0
      %p79 = por %p77, %p78
      %p80 = scmp.ne.s32.totalorder %s69, %s72
      %p81 = scmp.eq.s32.totalorder %s17, 1
      %p82 = por %p80, %p81
      %p83 = scmp.ne.s32.totalorder %s72, %s73
      %p84 = scmp.eq.s32.totalorder %s17, 0
      %p85 = por %p83, %p84
      %p86 = scmp.ne.s32.totalorder %s72, %s73
      %p87 = scmp.eq.s32.totalorder %s18, 1
      %p88 = por %p86, %p87
      %p90 = scmp.ne.s32.totalorder %s73, %s89
      %p91 = scmp.eq.s32.totalorder %s18, 0
      %p92 = por %p90, %p91
      %p93 = scmp.le.s32.totalorder 1, %s12
      %p94 = scmp.lt.s32.totalorder %s12, 3
      %p95 = pnand %p93, %p94
      %p96 = pneg %p95
      // Predicated region
      $region9: #{tpu_custom_call.1} parent=5 // pred_check
        _
      $region10: #{tpu_custom_call.1} parent=5 // pred_check_branch
        %98 = sbr.rel (%p95) target = $region12
      $region11: #{tpu_custom_call.1} parent=5 // pred_region
        %s99 = ssub.s32 %s12, 1
        // Predicated region
        $region13: #{tpu_custom_call.1} parent=11 // pred_check
          %p100 = pneg %p59
        $region14: #{tpu_custom_call.1} parent=11 // pred_check_branch
          %102 = sbr.rel (%p100) target = $region16
        $region15: #{tpu_custom_call.1} parent=11 // pred_region
          %104 = vsyncadd [#allocation3], 0
          %s105 = sshll.u32 %s1, 4
          %s106 = int_to_ptr.hbm [resolvable:$true] %s105
          %s107 = sshll.u32 [#allocation2], 4
          %s108 = int_to_ptr.vmem [resolvable:$true] %s107
          %113 = dma.hbm_to_vmem [thread:$0]  %s106, 8192, %s108, [#allocation3], 128, 128, 8
        $region16: #{tpu_custom_call.1} parent=11 // pred_fallthru
          _
      $region12: #{tpu_custom_call.1} parent=5 // pred_fallthru
        _
      %p114 = scmp.lt.s32.totalorder %s12, 2
      // Predicated region
      $region17: #{tpu_custom_call.1} parent=5 // pred_check
        %p115 = pneg %p114
      $region18: #{tpu_custom_call.1} parent=5 // pred_check_branch
        %117 = sbr.rel (%p115) target = $region20
      $region19: #{tpu_custom_call.1} parent=5 // pred_region
        // Predicated region
        $region21: #{tpu_custom_call.1} parent=19 // pred_check
          %p118 = pneg %p32
        $region22: #{tpu_custom_call.1} parent=19 // pred_check_branch
          %120 = sbr.rel (%p118) target = $region24
        $region23: #{tpu_custom_call.1} parent=19 // pred_region
          %s121 = smul.u32 16, %s12
          %p122 = scmp.lt.s32.totalorder %s121, 31
          %s123 = scalar_select %p122, %s121, 31
          %s124 = smul.addr %s123, 8
          %s125 = scalar_lea.vmem %s0, %s124
          %s126 = smul.u32 16, %s12
        $region24: #{tpu_custom_call.1} parent=19 // pred_fallthru
          _
      $region20: #{tpu_custom_call.1} parent=5 // pred_fallthru
        _
      %p127 = scmp.le.s32.totalorder 1, %s12
      %p128 = scmp.lt.s32.totalorder %s12, 3
      %p129 = pnand %p127, %p128
      %p130 = pneg %p129
      // Predicated region
      $region25: #{tpu_custom_call.1} parent=5 // pred_check
        _
      $region26: #{tpu_custom_call.1} parent=5 // pred_check_branch
        %132 = sbr.rel (%p129) target = $region28
      $region27: #{tpu_custom_call.1} parent=5 // pred_region
        %s133 = ssub.s32 %s12, 1
        // Predicated region
        $region29: #{tpu_custom_call.1} parent=27 // pred_check
          %p134 = pneg %p59
        $region30: #{tpu_custom_call.1} parent=27 // pred_check_branch
          %136 = sbr.rel (%p134) target = $region32
        $region31: #{tpu_custom_call.1} parent=27 // pred_region
          %138 = dma.done [#allocation3], 8192
        $region32: #{tpu_custom_call.1} parent=27 // pred_fallthru
          _
        %s139 = smul.u32 16, %s17
        %p140 = scmp.lt.s32.totalorder %s139, 31
        %s141 = scalar_select %p140, %s139, 31
        %s142 = smul.addr %s141, 8
        %s143 = scalar_lea.vmem %s0, %s142
        %p144 = pneg %p38
        %p145 = pneg %p35
        %p146 = pneg %p59
        %p147 = pneg %p56
        %p148 = pneg %p85
        %p149 = pneg %p82
        %s150 = sand.u32 %s72, 1
        %s151 = scalar_lea.sflag [#allocation4], %s150
        %s152 = sand.u32 %s72, 1
        %s153 = smul.addr %s152, 128
        %s154 = scalar_lea.vmem [#allocation5], %s153
        %s155 = smul.u32 16, %s17
        %p156 = scmp.lt.s32.totalorder %s155, 31
        %s157 = scalar_select %p156, %s155, 31
        %s158 = smul.addr %s157, 8
        %s159 = scalar_lea.vmem %s0, %s158
        %s160 = smul.u32 16, %s17
        %s161 = smul.u32 16, %s17
        %v162 = vld [vmem:[%s159] sm:$0xff]
        %v163 = vld [vmem:[%s159 + $0x8] sm:$0xff]
        %v164 = vld [vmem:[%s159 + $0x10] sm:$0xff]
        %v165 = vld [vmem:[%s159 + $0x18] sm:$0xff]
        %v166 = vld [vmem:[%s159 + $0x20] sm:$0xff]
        %v167 = vld [vmem:[%s159 + $0x28] sm:$0xff]
        %v168 = vld [vmem:[%s159 + $0x30] sm:$0xff]
        %v169 = vld [vmem:[%s159 + $0x38] sm:$0xff]
        %v170 = vld [vmem:[%s159 + $0x40] sm:$0xff]
        %v171 = vld [vmem:[%s159 + $0x48] sm:$0xff]
        %v172 = vld [vmem:[%s159 + $0x50] sm:$0xff]
        %v173 = vld [vmem:[%s159 + $0x58] sm:$0xff]
        %v174 = vld [vmem:[%s159 + $0x60] sm:$0xff]
        %v175 = vld [vmem:[%s159 + $0x68] sm:$0xff]
        %v176 = vld [vmem:[%s159 + $0x70] sm:$0xff]
        %v177 = vld [vmem:[%s159 + $0x78] sm:$0xff]
        %v178 = vlaneseq
        %v179 = vand.u32 %v178, 127
        %v180 = vadd.s32 %v179, 128
        %v181 = vadd.s32 %v179, 256
        %v182 = vadd.s32 %v179, 384
        %183 = vset.pattern.permute.xlu0 0
        %184 = vperm.xlu0 %183, %v162
        %v185 = vpop.permute.xlu0 %184
        %186 = vset.pattern.permute.xlu0 0
        %187 = vperm.xlu0 %186, %v163
        %v188 = vpop.permute.xlu0 %187
        %189 = vset.pattern.permute.xlu0 0
        %190 = vperm.xlu0 %189, %v164
        %v191 = vpop.permute.xlu0 %190
        %192 = vset.pattern.permute.xlu0 0
        %193 = vperm.xlu0 %192, %v165
        %v194 = vpop.permute.xlu0 %193
        %195 = vset.pattern.permute.xlu0 0
        %196 = vperm.xlu0 %195, %v166
        %v197 = vpop.permute.xlu0 %196
        %198 = vset.pattern.permute.xlu0 0
        %199 = vperm.xlu0 %198, %v167
        %v200 = vpop.permute.xlu0 %199
        %201 = vset.pattern.permute.xlu0 0
        %202 = vperm.xlu0 %201, %v168
        %v203 = vpop.permute.xlu0 %202
        %204 = vset.pattern.permute.xlu0 0
        %205 = vperm.xlu0 %204, %v169
        %v206 = vpop.permute.xlu0 %205
        %207 = vset.pattern.permute.xlu0 0
        %208 = vperm.xlu0 %207, %v170
        %v209 = vpop.permute.xlu0 %208
        %210 = vset.pattern.permute.xlu0 0
        %211 = vperm.xlu0 %210, %v171
        %v212 = vpop.permute.xlu0 %211
        %213 = vset.pattern.permute.xlu0 0
        %214 = vperm.xlu0 %213, %v172
        %v215 = vpop.permute.xlu0 %214
        %216 = vset.pattern.permute.xlu0 0
        %217 = vperm.xlu0 %216, %v173
        %v218 = vpop.permute.xlu0 %217
        %219 = vset.pattern.permute.xlu0 0
        %220 = vperm.xlu0 %219, %v174
        %v221 = vpop.permute.xlu0 %220
        %222 = vset.pattern.permute.xlu0 0
        %223 = vperm.xlu0 %222, %v175
        %v224 = vpop.permute.xlu0 %223
        %225 = vset.pattern.permute.xlu0 0
        %226 = vperm.xlu0 %225, %v176
        %v227 = vpop.permute.xlu0 %226
        %228 = vset.pattern.permute.xlu0 0
        %229 = vperm.xlu0 %228, %v177
        %v230 = vpop.permute.xlu0 %229
        %vm231 = vcmp.eq.s32.totalorder %v179, %v185
        %vm232 = vcmp.eq.s32.totalorder %v180, %v185
        %vm233 = vcmp.eq.s32.totalorder %v181, %v185
        %vm234 = vcmp.eq.s32.totalorder %v182, %v185
        %vm235 = vcmp.eq.s32.totalorder %v179, %v188
        %vm236 = vcmp.eq.s32.totalorder %v180, %v188
        %vm237 = vcmp.eq.s32.totalorder %v181, %v188
        %vm238 = vcmp.eq.s32.totalorder %v182, %v188
        %vm239 = vcmp.eq.s32.totalorder %v179, %v191
        %vm240 = vcmp.eq.s32.totalorder %v180, %v191
        %vm241 = vcmp.eq.s32.totalorder %v181, %v191
        %vm242 = vcmp.eq.s32.totalorder %v182, %v191
        %vm243 = vcmp.eq.s32.totalorder %v179, %v194
        %vm244 = vcmp.eq.s32.totalorder %v180, %v194
        %vm245 = vcmp.eq.s32.totalorder %v181, %v194
        %vm246 = vcmp.eq.s32.totalorder %v182, %v194
        %vm247 = vcmp.eq.s32.totalorder %v179, %v197
        %vm248 = vcmp.eq.s32.totalorder %v180, %v197
        %vm249 = vcmp.eq.s32.totalorder %v181, %v197
        %vm250 = vcmp.eq.s32.totalorder %v182, %v197
        %vm251 = vcmp.eq.s32.totalorder %v179, %v200
        %vm252 = vcmp.eq.s32.totalorder %v180, %v200
        %vm253 = vcmp.eq.s32.totalorder %v181, %v200
        %vm254 = vcmp.eq.s32.totalorder %v182, %v200
        %vm255 = vcmp.eq.s32.totalorder %v179, %v203
        %vm256 = vcmp.eq.s32.totalorder %v180, %v203
        %vm257 = vcmp.eq.s32.totalorder %v181, %v203
        %vm258 = vcmp.eq.s32.totalorder %v182, %v203
        %vm259 = vcmp.eq.s32.totalorder %v179, %v206
        %vm260 = vcmp.eq.s32.totalorder %v180, %v206
        %vm261 = vcmp.eq.s32.totalorder %v181, %v206
        %vm262 = vcmp.eq.s32.totalorder %v182, %v206
        %vm263 = vcmp.eq.s32.totalorder %v179, %v209
        %vm264 = vcmp.eq.s32.totalorder %v180, %v209
        %vm265 = vcmp.eq.s32.totalorder %v181, %v209
        %vm266 = vcmp.eq.s32.totalorder %v182, %v209
        %vm267 = vcmp.eq.s32.totalorder %v179, %v212
        %vm268 = vcmp.eq.s32.totalorder %v180, %v212
        %vm269 = vcmp.eq.s32.totalorder %v181, %v212
        %vm270 = vcmp.eq.s32.totalorder %v182, %v212
        %vm271 = vcmp.eq.s32.totalorder %v179, %v215
        %vm272 = vcmp.eq.s32.totalorder %v180, %v215
        %vm273 = vcmp.eq.s32.totalorder %v181, %v215
        %vm274 = vcmp.eq.s32.totalorder %v182, %v215
        %vm275 = vcmp.eq.s32.totalorder %v179, %v218
        %vm276 = vcmp.eq.s32.totalorder %v180, %v218
        %vm277 = vcmp.eq.s32.totalorder %v181, %v218
        %vm278 = vcmp.eq.s32.totalorder %v182, %v218
        %vm279 = vcmp.eq.s32.totalorder %v179, %v221
        %vm280 = vcmp.eq.s32.totalorder %v180, %v221
        %vm281 = vcmp.eq.s32.totalorder %v181, %v221
        %vm282 = vcmp.eq.s32.totalorder %v182, %v221
        %vm283 = vcmp.eq.s32.totalorder %v179, %v224
        %vm284 = vcmp.eq.s32.totalorder %v180, %v224
        %vm285 = vcmp.eq.s32.totalorder %v181, %v224
        %vm286 = vcmp.eq.s32.totalorder %v182, %v224
        %vm287 = vcmp.eq.s32.totalorder %v179, %v227
        %vm288 = vcmp.eq.s32.totalorder %v180, %v227
        %vm289 = vcmp.eq.s32.totalorder %v181, %v227
        %vm290 = vcmp.eq.s32.totalorder %v182, %v227
        %vm291 = vcmp.eq.s32.totalorder %v179, %v230
        %vm292 = vcmp.eq.s32.totalorder %v180, %v230
        %vm293 = vcmp.eq.s32.totalorder %v181, %v230
        %vm294 = vcmp.eq.s32.totalorder %v182, %v230
        %v295 = vsel %vm231, 1, 0
        %v296 = vsel %vm232, 1, 0
        %v297 = vsel %vm233, 1, 0
        %v298 = vsel %vm234, 1, 0
        %v299 = vsel %vm235, 1, 0
        %v300 = vsel %vm236, 1, 0
        %v301 = vsel %vm237, 1, 0
        %v302 = vsel %vm238, 1, 0
        %v303 = vsel %vm239, 1, 0
        %v304 = vsel %vm240, 1, 0
        %v305 = vsel %vm241, 1, 0
        %v306 = vsel %vm242, 1, 0
        %v307 = vsel %vm243, 1, 0
        %v308 = vsel %vm244, 1, 0
        %v309 = vsel %vm245, 1, 0
        %v310 = vsel %vm246, 1, 0
        %v311 = vsel %vm247, 1, 0
        %v312 = vsel %vm248, 1, 0
        %v313 = vsel %vm249, 1, 0
        %v314 = vsel %vm250, 1, 0
        %v315 = vsel %vm251, 1, 0
        %v316 = vsel %vm252, 1, 0
        %v317 = vsel %vm253, 1, 0
        %v318 = vsel %vm254, 1, 0
        %v319 = vsel %vm255, 1, 0
        %v320 = vsel %vm256, 1, 0
        %v321 = vsel %vm257, 1, 0
        %v322 = vsel %vm258, 1, 0
        %v323 = vsel %vm259, 1, 0
        %v324 = vsel %vm260, 1, 0
        %v325 = vsel %vm261, 1, 0
        %v326 = vsel %vm262, 1, 0
        %v327 = vsel %vm263, 1, 0
        %v328 = vsel %vm264, 1, 0
        %v329 = vsel %vm265, 1, 0
        %v330 = vsel %vm266, 1, 0
        %v331 = vsel %vm267, 1, 0
        %v332 = vsel %vm268, 1, 0
        %v333 = vsel %vm269, 1, 0
        %v334 = vsel %vm270, 1, 0
        %v335 = vsel %vm271, 1, 0
        %v336 = vsel %vm272, 1, 0
        %v337 = vsel %vm273, 1, 0
        %v338 = vsel %vm274, 1, 0
        %v339 = vsel %vm275, 1, 0
        %v340 = vsel %vm276, 1, 0
        %v341 = vsel %vm277, 1, 0
        %v342 = vsel %vm278, 1, 0
        %v343 = vsel %vm279, 1, 0
        %v344 = vsel %vm280, 1, 0
        %v345 = vsel %vm281, 1, 0
        %v346 = vsel %vm282, 1, 0
        %v347 = vsel %vm283, 1, 0
        %v348 = vsel %vm284, 1, 0
        %v349 = vsel %vm285, 1, 0
        %v350 = vsel %vm286, 1, 0
        %v351 = vsel %vm287, 1, 0
        %v352 = vsel %vm288, 1, 0
        %v353 = vsel %vm289, 1, 0
        %v354 = vsel %vm290, 1, 0
        %v355 = vsel %vm291, 1, 0
        %v356 = vsel %vm292, 1, 0
        %v357 = vsel %vm293, 1, 0
        %v358 = vsel %vm294, 1, 0
        %v359 = vcvt.s32.f32 %v295
        %v360 = vcvt.s32.f32 %v296
        %v361 = vcvt.s32.f32 %v297
        %v362 = vcvt.s32.f32 %v298
        %v363 = vcvt.s32.f32 %v299
        %v364 = vcvt.s32.f32 %v300
        %v365 = vcvt.s32.f32 %v301
        %v366 = vcvt.s32.f32 %v302
        %v367 = vcvt.s32.f32 %v303
        %v368 = vcvt.s32.f32 %v304
        %v369 = vcvt.s32.f32 %v305
        %v370 = vcvt.s32.f32 %v306
        %v371 = vcvt.s32.f32 %v307
        %v372 = vcvt.s32.f32 %v308
        %v373 = vcvt.s32.f32 %v309
        %v374 = vcvt.s32.f32 %v310
        %v375 = vcvt.s32.f32 %v311
        %v376 = vcvt.s32.f32 %v312
        %v377 = vcvt.s32.f32 %v313
        %v378 = vcvt.s32.f32 %v314
        %v379 = vcvt.s32.f32 %v315
        %v380 = vcvt.s32.f32 %v316
        %v381 = vcvt.s32.f32 %v317
        %v382 = vcvt.s32.f32 %v318
        %v383 = vcvt.s32.f32 %v319
        %v384 = vcvt.s32.f32 %v320
        %v385 = vcvt.s32.f32 %v321
        %v386 = vcvt.s32.f32 %v322
        %v387 = vcvt.s32.f32 %v323
        %v388 = vcvt.s32.f32 %v324
        %v389 = vcvt.s32.f32 %v325
        %v390 = vcvt.s32.f32 %v326
        %v391 = vcvt.s32.f32 %v327
        %v392 = vcvt.s32.f32 %v328
        %v393 = vcvt.s32.f32 %v329
        %v394 = vcvt.s32.f32 %v330
        %v395 = vcvt.s32.f32 %v331
        %v396 = vcvt.s32.f32 %v332
        %v397 = vcvt.s32.f32 %v333
        %v398 = vcvt.s32.f32 %v334
        %v399 = vcvt.s32.f32 %v335
        %v400 = vcvt.s32.f32 %v336
        %v401 = vcvt.s32.f32 %v337
        %v402 = vcvt.s32.f32 %v338
        %v403 = vcvt.s32.f32 %v339
        %v404 = vcvt.s32.f32 %v340
        %v405 = vcvt.s32.f32 %v341
        %v406 = vcvt.s32.f32 %v342
        %v407 = vcvt.s32.f32 %v343
        %v408 = vcvt.s32.f32 %v344
        %v409 = vcvt.s32.f32 %v345
        %v410 = vcvt.s32.f32 %v346
        %v411 = vcvt.s32.f32 %v347
        %v412 = vcvt.s32.f32 %v348
        %v413 = vcvt.s32.f32 %v349
        %v414 = vcvt.s32.f32 %v350
        %v415 = vcvt.s32.f32 %v351
        %v416 = vcvt.s32.f32 %v352
        %v417 = vcvt.s32.f32 %v353
        %v418 = vcvt.s32.f32 %v354
        %v419 = vcvt.s32.f32 %v355
        %v420 = vcvt.s32.f32 %v356
        %v421 = vcvt.s32.f32 %v357
        %v422 = vcvt.s32.f32 %v358
        %v423 = vld [vmem:[#allocation2] sm:$0xff]
        %v424 = vld [vmem:[#allocation2 + $0x8] sm:$0xff]
        %v425 = vld [vmem:[#allocation2 + $0x10] sm:$0xff]
        %v426 = vld [vmem:[#allocation2 + $0x18] sm:$0xff]
        %v427 = vld [vmem:[#allocation2 + $0x20] sm:$0xff]
        %v428 = vld [vmem:[#allocation2 + $0x28] sm:$0xff]
        %v429 = vld [vmem:[#allocation2 + $0x30] sm:$0xff]
        %v430 = vld [vmem:[#allocation2 + $0x38] sm:$0xff]
        %v431 = vld [vmem:[#allocation2 + $0x40] sm:$0xff]
        %v432 = vld [vmem:[#allocation2 + $0x48] sm:$0xff]
        %v433 = vld [vmem:[#allocation2 + $0x50] sm:$0xff]
        %v434 = vld [vmem:[#allocation2 + $0x58] sm:$0xff]
        %v435 = vld [vmem:[#allocation2 + $0x60] sm:$0xff]
        %v436 = vld [vmem:[#allocation2 + $0x68] sm:$0xff]
        %v437 = vld [vmem:[#allocation2 + $0x70] sm:$0xff]
        %v438 = vld [vmem:[#allocation2 + $0x78] sm:$0xff]
        %v439 = vld [vmem:[#allocation2 + $0x80] sm:$0xff]
        %v440 = vld [vmem:[#allocation2 + $0x88] sm:$0xff]
        %v441 = vld [vmem:[#allocation2 + $0x90] sm:$0xff]
        %v442 = vld [vmem:[#allocation2 + $0x98] sm:$0xff]
        %v443 = vld [vmem:[#allocation2 + $0xa0] sm:$0xff]
        %v444 = vld [vmem:[#allocation2 + $0xa8] sm:$0xff]
        %v445 = vld [vmem:[#allocation2 + $0xb0] sm:$0xff]
        %v446 = vld [vmem:[#allocation2 + $0xb8] sm:$0xff]
        %v447 = vld [vmem:[#allocation2 + $0xc0] sm:$0xff]
        %v448 = vld [vmem:[#allocation2 + $0xc8] sm:$0xff]
        %v449 = vld [vmem:[#allocation2 + $0xd0] sm:$0xff]
        %v450 = vld [vmem:[#allocation2 + $0xd8] sm:$0xff]
        %v451 = vld [vmem:[#allocation2 + $0xe0] sm:$0xff]
        %v452 = vld [vmem:[#allocation2 + $0xe8] sm:$0xff]
        %v453 = vld [vmem:[#allocation2 + $0xf0] sm:$0xff]
        %v454 = vld [vmem:[#allocation2 + $0xf8] sm:$0xff]
        %v455 = vld [vmem:[#allocation2 + $0x100] sm:$0xff]
        %v456 = vld [vmem:[#allocation2 + $0x108] sm:$0xff]
        %v457 = vld [vmem:[#allocation2 + $0x110] sm:$0xff]
        %v458 = vld [vmem:[#allocation2 + $0x118] sm:$0xff]
        %v459 = vld [vmem:[#allocation2 + $0x120] sm:$0xff]
        %v460 = vld [vmem:[#allocation2 + $0x128] sm:$0xff]
        %v461 = vld [vmem:[#allocation2 + $0x130] sm:$0xff]
        %v462 = vld [vmem:[#allocation2 + $0x138] sm:$0xff]
        %v463 = vld [vmem:[#allocation2 + $0x140] sm:$0xff]
        %v464 = vld [vmem:[#allocation2 + $0x148] sm:$0xff]
        %v465 = vld [vmem:[#allocation2 + $0x150] sm:$0xff]
        %v466 = vld [vmem:[#allocation2 + $0x158] sm:$0xff]
        %v467 = vld [vmem:[#allocation2 + $0x160] sm:$0xff]
        %v468 = vld [vmem:[#allocation2 + $0x168] sm:$0xff]
        %v469 = vld [vmem:[#allocation2 + $0x170] sm:$0xff]
        %v470 = vld [vmem:[#allocation2 + $0x178] sm:$0xff]
        %v471 = vld [vmem:[#allocation2 + $0x180] sm:$0xff]
        %v472 = vld [vmem:[#allocation2 + $0x188] sm:$0xff]
        %v473 = vld [vmem:[#allocation2 + $0x190] sm:$0xff]
        %v474 = vld [vmem:[#allocation2 + $0x198] sm:$0xff]
        %v475 = vld [vmem:[#allocation2 + $0x1a0] sm:$0xff]
        %v476 = vld [vmem:[#allocation2 + $0x1a8] sm:$0xff]
        %v477 = vld [vmem:[#allocation2 + $0x1b0] sm:$0xff]
        %v478 = vld [vmem:[#allocation2 + $0x1b8] sm:$0xff]
        %v479 = vld [vmem:[#allocation2 + $0x1c0] sm:$0xff]
        %v480 = vld [vmem:[#allocation2 + $0x1c8] sm:$0xff]
        %v481 = vld [vmem:[#allocation2 + $0x1d0] sm:$0xff]
        %v482 = vld [vmem:[#allocation2 + $0x1d8] sm:$0xff]
        %v483 = vld [vmem:[#allocation2 + $0x1e0] sm:$0xff]
        %v484 = vld [vmem:[#allocation2 + $0x1e8] sm:$0xff]
        %v485 = vld [vmem:[#allocation2 + $0x1f0] sm:$0xff]
        %v486 = vld [vmem:[#allocation2 + $0x1f8] sm:$0xff]
        %v487 = vand.u32 %v438, 4294901760
        %488 = vmatpush.msra.mxu0 %v487
        %v489 = vand.u32 %v437, 4294901760
        %490 = vmatpush.msra.mxu0 %v489
        %v491 = vand.u32 %v436, 4294901760
        %492 = vmatpush.msra.mxu0 %v491
        %v493 = vand.u32 %v435, 4294901760
        %494 = vmatpush.msra.mxu0 %v493
        %v495 = vand.u32 %v434, 4294901760
        %496 = vmatpush.msra.mxu0 %v495
        %v497 = vand.u32 %v433, 4294901760
        %498 = vmatpush.msra.mxu0 %v497
        %v499 = vand.u32 %v432, 4294901760
        %500 = vmatpush.msra.mxu0 %v499
        %v501 = vand.u32 %v431, 4294901760
        %502 = vmatpush.msra.mxu0 %v501
        %v503 = vand.u32 %v430, 4294901760
        %504 = vmatpush.msra.mxu0 %v503
        %v505 = vand.u32 %v429, 4294901760
        %506 = vmatpush.msra.mxu0 %v505
        %v507 = vand.u32 %v428, 4294901760
        %508 = vmatpush.msra.mxu0 %v507
        %v509 = vand.u32 %v427, 4294901760
        %510 = vmatpush.msra.mxu0 %v509
        %v511 = vand.u32 %v426, 4294901760
        %512 = vmatpush.msra.mxu0 %v511
        %v513 = vand.u32 %v425, 4294901760
        %514 = vmatpush.msra.mxu0 %v513
        %v515 = vand.u32 %v424, 4294901760
        %516 = vmatpush.msra.mxu0 %v515
        %v517 = vand.u32 %v423, 4294901760
        %518 = vmatpush.msra.mxu0 %v517
        %v519 = vand.u32 %v359, 4294901760
        %v520 = vsub.f32 %v359, %v519
        %v521 = vand.u32 %v520, 4294901760
        %v522 = vsub.f32 %v520, %v521
        %v523 = vand.u32 %v522, 4294901760
        %524 = vmatmul.f32.gmra.mxu0 %v523
        %v525 = vpop.f32.mrf.mxu0
        %v526 = vadd.f32 0.0, %v525
        %v527 = vand.u32 %v363, 4294901760
        %v528 = vsub.f32 %v363, %v527
        %v529 = vand.u32 %v528, 4294901760
        %v530 = vsub.f32 %v528, %v529
        %v531 = vand.u32 %v530, 4294901760
        %532 = vmatmul.f32.gmra.mxu0 %v531
        %v533 = vpop.f32.mrf.mxu0
        %v534 = vadd.f32 0.0, %v533
        %v535 = vand.u32 %v367, 4294901760
        %v536 = vsub.f32 %v367, %v535
        %v537 = vand.u32 %v536, 4294901760
        %v538 = vsub.f32 %v536, %v537
        %v539 = vand.u32 %v538, 4294901760
        %540 = vmatmul.f32.gmra.mxu0 %v539
        %v541 = vpop.f32.mrf.mxu0
        %v542 = vadd.f32 0.0, %v541
        %v543 = vand.u32 %v371, 4294901760
        %v544 = vsub.f32 %v371, %v543
        %v545 = vand.u32 %v544, 4294901760
        %v546 = vsub.f32 %v544, %v545
        %v547 = vand.u32 %v546, 4294901760
        %548 = vmatmul.f32.gmra.mxu0 %v547
        %v549 = vpop.f32.mrf.mxu0
        %v550 = vadd.f32 0.0, %v549
        %v551 = vand.u32 %v375, 4294901760
        %v552 = vsub.f32 %v375, %v551
        %v553 = vand.u32 %v552, 4294901760
        %v554 = vsub.f32 %v552, %v553
        %v555 = vand.u32 %v554, 4294901760
        %556 = vmatmul.f32.gmra.mxu0 %v555
        %v557 = vpop.f32.mrf.mxu0
        %v558 = vadd.f32 0.0, %v557
        %v559 = vand.u32 %v379, 4294901760
        %v560 = vsub.f32 %v379, %v559
        %v561 = vand.u32 %v560, 4294901760
        %v562 = vsub.f32 %v560, %v561
        %v563 = vand.u32 %v562, 4294901760
        %564 = vmatmul.f32.gmra.mxu0 %v563
        %v565 = vpop.f32.mrf.mxu0
        %v566 = vadd.f32 0.0, %v565
        %v567 = vand.u32 %v383, 4294901760
        %v568 = vsub.f32 %v383, %v567
        %v569 = vand.u32 %v568, 4294901760
        %v570 = vsub.f32 %v568, %v569
        %v571 = vand.u32 %v570, 4294901760
        %572 = vmatmul.f32.gmra.mxu0 %v571
        %v573 = vpop.f32.mrf.mxu0
        %v574 = vadd.f32 0.0, %v573
        %v575 = vand.u32 %v387, 4294901760
        %v576 = vsub.f32 %v387, %v575
        %v577 = vand.u32 %v576, 4294901760
        %v578 = vsub.f32 %v576, %v577
        %v579 = vand.u32 %v578, 4294901760
        %580 = vmatmul.f32.gmra.mxu0 %v579
        %v581 = vpop.f32.mrf.mxu0
        %v582 = vadd.f32 0.0, %v581
        %v583 = vand.u32 %v391, 4294901760
        %v584 = vsub.f32 %v391, %v583
        %v585 = vand.u32 %v584, 4294901760
        %v586 = vsub.f32 %v584, %v585
        %v587 = vand.u32 %v586, 4294901760
        %588 = vmatmul.f32.gmra.mxu0 %v587
        %v589 = vpop.f32.mrf.mxu0
        %v590 = vadd.f32 0.0, %v589
        %v591 = vand.u32 %v395, 4294901760
        %v592 = vsub.f32 %v395, %v591
        %v593 = vand.u32 %v592, 4294901760
        %v594 = vsub.f32 %v592, %v593
        %v595 = vand.u32 %v594, 4294901760
        %596 = vmatmul.f32.gmra.mxu0 %v595
        %v597 = vpop.f32.mrf.mxu0
        %v598 = vadd.f32 0.0, %v597
        %v599 = vand.u32 %v399, 4294901760
        %v600 = vsub.f32 %v399, %v599
        %v601 = vand.u32 %v600, 4294901760
        %v602 = vsub.f32 %v600, %v601
        %v603 = vand.u32 %v602, 4294901760
        %604 = vmatmul.f32.gmra.mxu0 %v603
        %v605 = vpop.f32.mrf.mxu0
        %v606 = vadd.f32 0.0, %v605
        %v607 = vand.u32 %v403, 4294901760
        %v608 = vsub.f32 %v403, %v607
        %v609 = vand.u32 %v608, 4294901760
        %v610 = vsub.f32 %v608, %v609
        %v611 = vand.u32 %v610, 4294901760
        %612 = vmatmul.f32.gmra.mxu0 %v611
        %v613 = vpop.f32.mrf.mxu0
        %v614 = vadd.f32 0.0, %v613
        %v615 = vand.u32 %v407, 4294901760
        %v616 = vsub.f32 %v407, %v615
        %v617 = vand.u32 %v616, 4294901760
        %v618 = vsub.f32 %v616, %v617
        %v619 = vand.u32 %v618, 4294901760
        %620 = vmatmul.f32.gmra.mxu0 %v619
        %v621 = vpop.f32.mrf.mxu0
        %v622 = vadd.f32 0.0, %v621
        %v623 = vand.u32 %v411, 4294901760
        %v624 = vsub.f32 %v411, %v623
        %v625 = vand.u32 %v624, 4294901760
        %v626 = vsub.f32 %v624, %v625
        %v627 = vand.u32 %v626, 4294901760
        %628 = vmatmul.f32.gmra.mxu0 %v627
        %v629 = vpop.f32.mrf.mxu0
        %v630 = vadd.f32 0.0, %v629
        %v631 = vand.u32 %v415, 4294901760
        %v632 = vsub.f32 %v415, %v631
        %v633 = vand.u32 %v632, 4294901760
        %v634 = vsub.f32 %v632, %v633
        %v635 = vand.u32 %v634, 4294901760
        %636 = vmatmul.f32.gmra.mxu0 %v635
        %v637 = vpop.f32.mrf.mxu0
        %v638 = vadd.f32 0.0, %v637
        %v639 = vand.u32 %v419, 4294901760
        %v640 = vsub.f32 %v419, %v639
        %v641 = vand.u32 %v640, 4294901760
        %v642 = vsub.f32 %v640, %v641
        %v643 = vand.u32 %v642, 4294901760
        %644 = vmatmul.f32.gmra.mxu0 %v643
        %v645 = vpop.f32.mrf.mxu0
        %v646 = vadd.f32 0.0, %v645
        %647 = vdwg.mxu0
        %v648 = vand.u32 %v438, 4294901760
        %v649 = vsub.f32 %v438, %v648
        %v650 = vand.u32 %v649, 4294901760
        %v651 = vsub.f32 %v649, %v650
        %v652 = vand.u32 %v651, 4294901760
        %653 = vmatpush.msra.mxu0 %v652
        %v654 = vand.u32 %v437, 4294901760
        %v655 = vsub.f32 %v437, %v654
        %v656 = vand.u32 %v655, 4294901760
        %v657 = vsub.f32 %v655, %v656
        %v658 = vand.u32 %v657, 4294901760
        %659 = vmatpush.msra.mxu0 %v658
        %v660 = vand.u32 %v436, 4294901760
        %v661 = vsub.f32 %v436, %v660
        %v662 = vand.u32 %v661, 4294901760
        %v663 = vsub.f32 %v661, %v662
        %v664 = vand.u32 %v663, 4294901760
        %665 = vmatpush.msra.mxu0 %v664
        %v666 = vand.u32 %v435, 4294901760
        %v667 = vsub.f32 %v435, %v666
        %v668 = vand.u32 %v667, 4294901760
        %v669 = vsub.f32 %v667, %v668
        %v670 = vand.u32 %v669, 4294901760
        %671 = vmatpush.msra.mxu0 %v670
        %v672 = vand.u32 %v434, 4294901760
        %v673 = vsub.f32 %v434, %v672
        %v674 = vand.u32 %v673, 4294901760
        %v675 = vsub.f32 %v673, %v674
        %v676 = vand.u32 %v675, 4294901760
        %677 = vmatpush.msra.mxu0 %v676
        %v678 = vand.u32 %v433, 4294901760
        %v679 = vsub.f32 %v433, %v678
        %v680 = vand.u32 %v679, 4294901760
        %v681 = vsub.f32 %v679, %v680
        %v682 = vand.u32 %v681, 4294901760
        %683 = vmatpush.msra.mxu0 %v682
        %v684 = vand.u32 %v432, 4294901760
        %v685 = vsub.f32 %v432, %v684
        %v686 = vand.u32 %v685, 4294901760
        %v687 = vsub.f32 %v685, %v686
        %v688 = vand.u32 %v687, 4294901760
        %689 = vmatpush.msra.mxu0 %v688
        %v690 = vand.u32 %v431, 4294901760
        %v691 = vsub.f32 %v431, %v690
        %v692 = vand.u32 %v691, 4294901760
        %v693 = vsub.f32 %v691, %v692
        %v694 = vand.u32 %v693, 4294901760
        %695 = vmatpush.msra.mxu0 %v694
        %v696 = vand.u32 %v430, 4294901760
        %v697 = vsub.f32 %v430, %v696
        %v698 = vand.u32 %v697, 4294901760
        %v699 = vsub.f32 %v697, %v698
        %v700 = vand.u32 %v699, 4294901760
        %701 = vmatpush.msra.mxu0 %v700
        %v702 = vand.u32 %v429, 4294901760
        %v703 = vsub.f32 %v429, %v702
        %v704 = vand.u32 %v703, 4294901760
        %v705 = vsub.f32 %v703, %v704
        %v706 = vand.u32 %v705, 4294901760
        %707 = vmatpush.msra.mxu0 %v706
        %v708 = vand.u32 %v428, 4294901760
        %v709 = vsub.f32 %v428, %v708
        %v710 = vand.u32 %v709, 4294901760
        %v711 = vsub.f32 %v709, %v710
        %v712 = vand.u32 %v711, 4294901760
        %713 = vmatpush.msra.mxu0 %v712
        %v714 = vand.u32 %v427, 4294901760
        %v715 = vsub.f32 %v427, %v714
        %v716 = vand.u32 %v715, 4294901760
        %v717 = vsub.f32 %v715, %v716
        %v718 = vand.u32 %v717, 4294901760
        %719 = vmatpush.msra.mxu0 %v718
        %v720 = vand.u32 %v426, 4294901760
        %v721 = vsub.f32 %v426, %v720
        %v722 = vand.u32 %v721, 4294901760
        %v723 = vsub.f32 %v721, %v722
        %v724 = vand.u32 %v723, 4294901760
        %725 = vmatpush.msra.mxu0 %v724
        %v726 = vand.u32 %v425, 4294901760
        %v727 = vsub.f32 %v425, %v726
        %v728 = vand.u32 %v727, 4294901760
        %v729 = vsub.f32 %v727, %v728
        %v730 = vand.u32 %v729, 4294901760
        %731 = vmatpush.msra.mxu0 %v730
        %v732 = vand.u32 %v424, 4294901760
        %v733 = vsub.f32 %v424, %v732
        %v734 = vand.u32 %v733, 4294901760
        %v735 = vsub.f32 %v733, %v734
        %v736 = vand.u32 %v735, 4294901760
        %737 = vmatpush.msra.mxu0 %v736
        %v738 = vand.u32 %v423, 4294901760
        %v739 = vsub.f32 %v423, %v738
        %v740 = vand.u32 %v739, 4294901760
        %v741 = vsub.f32 %v739, %v740
        %v742 = vand.u32 %v741, 4294901760
        %743 = vmatpush.msra.mxu0 %v742
        %v744 = vand.u32 %v359, 4294901760
        %745 = vmatmul.f32.gmra.mxu0 %v744
        %v746 = vpop.f32.mrf.mxu0
        %v747 = vadd.f32 %v526, %v746
        %v748 = vand.u32 %v363, 4294901760
        %749 = vmatmul.f32.gmra.mxu0 %v748
        %v750 = vpop.f32.mrf.mxu0
        %v751 = vadd.f32 %v534, %v750
        %v752 = vand.u32 %v367, 4294901760
        %753 = vmatmul.f32.gmra.mxu0 %v752
        %v754 = vpop.f32.mrf.mxu0
        %v755 = vadd.f32 %v542, %v754
        %v756 = vand.u32 %v371, 4294901760
        %757 = vmatmul.f32.gmra.mxu0 %v756
        %v758 = vpop.f32.mrf.mxu0
        %v759 = vadd.f32 %v550, %v758
        %v760 = vand.u32 %v375, 4294901760
        %761 = vmatmul.f32.gmra.mxu0 %v760
        %v762 = vpop.f32.mrf.mxu0
        %v763 = vadd.f32 %v558, %v762
        %v764 = vand.u32 %v379, 4294901760
        %765 = vmatmul.f32.gmra.mxu0 %v764
        %v766 = vpop.f32.mrf.mxu0
        %v767 = vadd.f32 %v566, %v766
        %v768 = vand.u32 %v383, 4294901760
        %769 = vmatmul.f32.gmra.mxu0 %v768
        %v770 = vpop.f32.mrf.mxu0
        %v771 = vadd.f32 %v574, %v770
        %v772 = vand.u32 %v387, 4294901760
        %773 = vmatmul.f32.gmra.mxu0 %v772
        %v774 = vpop.f32.mrf.mxu0
        %v775 = vadd.f32 %v582, %v774
        %v776 = vand.u32 %v391, 4294901760
        %777 = vmatmul.f32.gmra.mxu0 %v776
        %v778 = vpop.f32.mrf.mxu0
        %v779 = vadd.f32 %v590, %v778
        %v780 = vand.u32 %v395, 4294901760
        %781 = vmatmul.f32.gmra.mxu0 %v780
        %v782 = vpop.f32.mrf.mxu0
        %v783 = vadd.f32 %v598, %v782
        %v784 = vand.u32 %v399, 4294901760
        %785 = vmatmul.f32.gmra.mxu0 %v784
        %v786 = vpop.f32.mrf.mxu0
        %v787 = vadd.f32 %v606, %v786
        %v788 = vand.u32 %v403, 4294901760
        %789 = vmatmul.f32.gmra.mxu0 %v788
        %v790 = vpop.f32.mrf.mxu0
        %v791 = vadd.f32 %v614, %v790
        %v792 = vand.u32 %v407, 4294901760
        %793 = vmatmul.f32.gmra.mxu0 %v792
        %v794 = vpop.f32.mrf.mxu0
        %v795 = vadd.f32 %v622, %v794
        %v796 = vand.u32 %v411, 4294901760
        %797 = vmatmul.f32.gmra.mxu0 %v796
        %v798 = vpop.f32.mrf.mxu0
        %v799 = vadd.f32 %v630, %v798
        %v800 = vand.u32 %v415, 4294901760
        %801 = vmatmul.f32.gmra.mxu0 %v800
        %v802 = vpop.f32.mrf.mxu0
        %v803 = vadd.f32 %v638, %v802
        %v804 = vand.u32 %v419, 4294901760
        %805 = vmatmul.f32.gmra.mxu0 %v804
        %v806 = vpop.f32.mrf.mxu0
        %v807 = vadd.f32 %v646, %v806
        %808 = vdwg.mxu0
        %v809 = vand.u32 %v438, 4294901760
        %v810 = vsub.f32 %v438, %v809
        %811 = vmatpush.msra.mxu0 %v810
        %v812 = vand.u32 %v437, 4294901760
        %v813 = vsub.f32 %v437, %v812
        %814 = vmatpush.msra.mxu0 %v813
        %v815 = vand.u32 %v436, 4294901760
        %v816 = vsub.f32 %v436, %v815
        %817 = vmatpush.msra.mxu0 %v816
        %v818 = vand.u32 %v435, 4294901760
        %v819 = vsub.f32 %v435, %v818
        %820 = vmatpush.msra.mxu0 %v819
        %v821 = vand.u32 %v434, 4294901760
        %v822 = vsub.f32 %v434, %v821
        %823 = vmatpush.msra.mxu0 %v822
        %v824 = vand.u32 %v433, 4294901760
        %v825 = vsub.f32 %v433, %v824
        %826 = vmatpush.msra.mxu0 %v825
        %v827 = vand.u32 %v432, 4294901760
        %v828 = vsub.f32 %v432, %v827
        %829 = vmatpush.msra.mxu0 %v828
        %v830 = vand.u32 %v431, 4294901760
        %v831 = vsub.f32 %v431, %v830
        %832 = vmatpush.msra.mxu0 %v831
        %v833 = vand.u32 %v430, 4294901760
        %v834 = vsub.f32 %v430, %v833
        %835 = vmatpush.msra.mxu0 %v834
        %v836 = vand.u32 %v429, 4294901760
        %v837 = vsub.f32 %v429, %v836
        %838 = vmatpush.msra.mxu0 %v837
        %v839 = vand.u32 %v428, 4294901760
        %v840 = vsub.f32 %v428, %v839
        %841 = vmatpush.msra.mxu0 %v840
        %v842 = vand.u32 %v427, 4294901760
        %v843 = vsub.f32 %v427, %v842
        %844 = vmatpush.msra.mxu0 %v843
        %v845 = vand.u32 %v426, 4294901760
        %v846 = vsub.f32 %v426, %v845
        %847 = vmatpush.msra.mxu0 %v846
        %v848 = vand.u32 %v425, 4294901760
        %v849 = vsub.f32 %v425, %v848
        %850 = vmatpush.msra.mxu0 %v849
        %v851 = vand.u32 %v424, 4294901760
        %v852 = vsub.f32 %v424, %v851
        %853 = vmatpush.msra.mxu0 %v852
        %v854 = vand.u32 %v423, 4294901760
        %v855 = vsub.f32 %v423, %v854
        %856 = vmatpush.msra.mxu0 %v855
        %v857 = vand.u32 %v359, 4294901760
        %v858 = vsub.f32 %v359, %v857
        %859 = vmatmul.f32.gmra.mxu0 %v858
        %v860 = vpop.f32.mrf.mxu0
        %v861 = vadd.f32 %v747, %v860
        %v862 = vand.u32 %v363, 4294901760
        %v863 = vsub.f32 %v363, %v862
        %864 = vmatmul.f32.gmra.mxu0 %v863
        %v865 = vpop.f32.mrf.mxu0
        %v866 = vadd.f32 %v751, %v865
        %v867 = vand.u32 %v367, 4294901760
        %v868 = vsub.f32 %v367, %v867
        %869 = vmatmul.f32.gmra.mxu0 %v868
        %v870 = vpop.f32.mrf.mxu0
        %v871 = vadd.f32 %v755, %v870
        %v872 = vand.u32 %v371, 4294901760
        %v873 = vsub.f32 %v371, %v872
        %874 = vmatmul.f32.gmra.mxu0 %v873
        %v875 = vpop.f32.mrf.mxu0
        %v876 = vadd.f32 %v759, %v875
        %v877 = vand.u32 %v375, 4294901760
        %v878 = vsub.f32 %v375, %v877
        %879 = vmatmul.f32.gmra.mxu0 %v878
        %v880 = vpop.f32.mrf.mxu0
        %v881 = vadd.f32 %v763, %v880
        %v882 = vand.u32 %v379, 4294901760
        %v883 = vsub.f32 %v379, %v882
        %884 = vmatmul.f32.gmra.mxu0 %v883
        %v885 = vpop.f32.mrf.mxu0
        %v886 = vadd.f32 %v767, %v885
        %v887 = vand.u32 %v383, 4294901760
        %v888 = vsub.f32 %v383, %v887
        %889 = vmatmul.f32.gmra.mxu0 %v888
        %v890 = vpop.f32.mrf.mxu0
        %v891 = vadd.f32 %v771, %v890
        %v892 = vand.u32 %v387, 4294901760
        %v893 = vsub.f32 %v387, %v892
        %894 = vmatmul.f32.gmra.mxu0 %v893
        %v895 = vpop.f32.mrf.mxu0
        %v896 = vadd.f32 %v775, %v895
        %v897 = vand.u32 %v391, 4294901760
        %v898 = vsub.f32 %v391, %v897
        %899 = vmatmul.f32.gmra.mxu0 %v898
        %v900 = vpop.f32.mrf.mxu0
        %v901 = vadd.f32 %v779, %v900
        %v902 = vand.u32 %v395, 4294901760
        %v903 = vsub.f32 %v395, %v902
        %904 = vmatmul.f32.gmra.mxu0 %v903
        %v905 = vpop.f32.mrf.mxu0
        %v906 = vadd.f32 %v783, %v905
        %v907 = vand.u32 %v399, 4294901760
        %v908 = vsub.f32 %v399, %v907
        %909 = vmatmul.f32.gmra.mxu0 %v908
        %v910 = vpop.f32.mrf.mxu0
        %v911 = vadd.f32 %v787, %v910
        %v912 = vand.u32 %v403, 4294901760
        %v913 = vsub.f32 %v403, %v912
        %914 = vmatmul.f32.gmra.mxu0 %v913
        %v915 = vpop.f32.mrf.mxu0
        %v916 = vadd.f32 %v791, %v915
        %v917 = vand.u32 %v407, 4294901760
        %v918 = vsub.f32 %v407, %v917
        %919 = vmatmul.f32.gmra.mxu0 %v918
        %v920 = vpop.f32.mrf.mxu0
        %v921 = vadd.f32 %v795, %v920
        %v922 = vand.u32 %v411, 4294901760
        %v923 = vsub.f32 %v411, %v922
        %924 = vmatmul.f32.gmra.mxu0 %v923
        %v925 = vpop.f32.mrf.mxu0
        %v926 = vadd.f32 %v799, %v925
        %v927 = vand.u32 %v415, 4294901760
        %v928 = vsub.f32 %v415, %v927
        %929 = vmatmul.f32.gmra.mxu0 %v928
        %v930 = vpop.f32.mrf.mxu0
        %v931 = vadd.f32 %v803, %v930
        %v932 = vand.u32 %v419, 4294901760
        %v933 = vsub.f32 %v419, %v932
        %934 = vmatmul.f32.gmra.mxu0 %v933
        %v935 = vpop.f32.mrf.mxu0
        %v936 = vadd.f32 %v807, %v935
        %937 = vdwg.mxu0
        %v938 = vand.u32 %v438, 4294901760
        %939 = vmatpush.msra.mxu0 %v938
        %v940 = vand.u32 %v437, 4294901760
        %941 = vmatpush.msra.mxu0 %v940
        %v942 = vand.u32 %v436, 4294901760
        %943 = vmatpush.msra.mxu0 %v942
        %v944 = vand.u32 %v435, 4294901760
        %945 = vmatpush.msra.mxu0 %v944
        %v946 = vand.u32 %v434, 4294901760
        %947 = vmatpush.msra.mxu0 %v946
        %v948 = vand.u32 %v433, 4294901760
        %949 = vmatpush.msra.mxu0 %v948
        %v950 = vand.u32 %v432, 4294901760
        %951 = vmatpush.msra.mxu0 %v950
        %v952 = vand.u32 %v431, 4294901760
        %953 = vmatpush.msra.mxu0 %v952
        %v954 = vand.u32 %v430, 4294901760
        %955 = vmatpush.msra.mxu0 %v954
        %v956 = vand.u32 %v429, 4294901760
        %957 = vmatpush.msra.mxu0 %v956
        %v958 = vand.u32 %v428, 4294901760
        %959 = vmatpush.msra.mxu0 %v958
        %v960 = vand.u32 %v427, 4294901760
        %961 = vmatpush.msra.mxu0 %v960
        %v962 = vand.u32 %v426, 4294901760
        %963 = vmatpush.msra.mxu0 %v962
        %v964 = vand.u32 %v425, 4294901760
        %965 = vmatpush.msra.mxu0 %v964
        %v966 = vand.u32 %v424, 4294901760
        %967 = vmatpush.msra.mxu0 %v966
        %v968 = vand.u32 %v423, 4294901760
        %969 = vmatpush.msra.mxu0 %v968
        %v970 = vand.u32 %v359, 4294901760
        %v971 = vsub.f32 %v359, %v970
        %v972 = vand.u32 %v971, 4294901760
        %973 = vmatmul.f32.gmra.mxu0 %v972
        %v974 = vpop.f32.mrf.mxu0
        %v975 = vadd.f32 %v861, %v974
        %v976 = vand.u32 %v363, 4294901760
        %v977 = vsub.f32 %v363, %v976
        %v978 = vand.u32 %v977, 4294901760
        %979 = vmatmul.f32.gmra.mxu0 %v978
        %v980 = vpop.f32.mrf.mxu0
        %v981 = vadd.f32 %v866, %v980
        %v982 = vand.u32 %v367, 4294901760
        %v983 = vsub.f32 %v367, %v982
        %v984 = vand.u32 %v983, 4294901760
        %985 = vmatmul.f32.gmra.mxu0 %v984
        %v986 = vpop.f32.mrf.mxu0
        %v987 = vadd.f32 %v871, %v986
        %v988 = vand.u32 %v371, 4294901760
        %v989 = vsub.f32 %v371, %v988
        %v990 = vand.u32 %v989, 4294901760
        %991 = vmatmul.f32.gmra.mxu0 %v990
        %v992 = vpop.f32.mrf.mxu0
        %v993 = vadd.f32 %v876, %v992
        %v994 = vand.u32 %v375, 4294901760
        %v995 = vsub.f32 %v375, %v994
        %v996 = vand.u32 %v995, 4294901760
        %997 = vmatmul.f32.gmra.mxu0 %v996
        %v998 = vpop.f32.mrf.mxu0
        %v999 = vadd.f32 %v881, %v998
        %v1000 = vand.u32 %v379, 4294901760
        %v1001 = vsub.f32 %v379, %v1000
        %v1002 = vand.u32 %v1001, 4294901760
        %1003 = vmatmul.f32.gmra.mxu0 %v1002
        %v1004 = vpop.f32.mrf.mxu0
        %v1005 = vadd.f32 %v886, %v1004
        %v1006 = vand.u32 %v383, 4294901760
        %v1007 = vsub.f32 %v383, %v1006
        %v1008 = vand.u32 %v1007, 4294901760
        %1009 = vmatmul.f32.gmra.mxu0 %v1008
        %v1010 = vpop.f32.mrf.mxu0
        %v1011 = vadd.f32 %v891, %v1010
        %v1012 = vand.u32 %v387, 4294901760
        %v1013 = vsub.f32 %v387, %v1012
        %v1014 = vand.u32 %v1013, 4294901760
        %1015 = vmatmul.f32.gmra.mxu0 %v1014
        %v1016 = vpop.f32.mrf.mxu0
        %v1017 = vadd.f32 %v896, %v1016
        %v1018 = vand.u32 %v391, 4294901760
        %v1019 = vsub.f32 %v391, %v1018
        %v1020 = vand.u32 %v1019, 4294901760
        %1021 = vmatmul.f32.gmra.mxu0 %v1020
        %v1022 = vpop.f32.mrf.mxu0
        %v1023 = vadd.f32 %v901, %v1022
        %v1024 = vand.u32 %v395, 4294901760
        %v1025 = vsub.f32 %v395, %v1024
        %v1026 = vand.u32 %v1025, 4294901760
        %1027 = vmatmul.f32.gmra.mxu0 %v1026
        %v1028 = vpop.f32.mrf.mxu0
        %v1029 = vadd.f32 %v906, %v1028
        %v1030 = vand.u32 %v399, 4294901760
        %v1031 = vsub.f32 %v399, %v1030
        %v1032 = vand.u32 %v1031, 4294901760
        %1033 = vmatmul.f32.gmra.mxu0 %v1032
        %v1034 = vpop.f32.mrf.mxu0
        %v1035 = vadd.f32 %v911, %v1034
        %v1036 = vand.u32 %v403, 4294901760
        %v1037 = vsub.f32 %v403, %v1036
        %v1038 = vand.u32 %v1037, 4294901760
        %1039 = vmatmul.f32.gmra.mxu0 %v1038
        %v1040 = vpop.f32.mrf.mxu0
        %v1041 = vadd.f32 %v916, %v1040
        %v1042 = vand.u32 %v407, 4294901760
        %v1043 = vsub.f32 %v407, %v1042
        %v1044 = vand.u32 %v1043, 4294901760
        %1045 = vmatmul.f32.gmra.mxu0 %v1044
        %v1046 = vpop.f32.mrf.mxu0
        %v1047 = vadd.f32 %v921, %v1046
        %v1048 = vand.u32 %v411, 4294901760
        %v1049 = vsub.f32 %v411, %v1048
        %v1050 = vand.u32 %v1049, 4294901760
        %1051 = vmatmul.f32.gmra.mxu0 %v1050
        %v1052 = vpop.f32.mrf.mxu0
        %v1053 = vadd.f32 %v926, %v1052
        %v1054 = vand.u32 %v415, 4294901760
        %v1055 = vsub.f32 %v415, %v1054
        %v1056 = vand.u32 %v1055, 4294901760
        %1057 = vmatmul.f32.gmra.mxu0 %v1056
        %v1058 = vpop.f32.mrf.mxu0
        %v1059 = vadd.f32 %v931, %v1058
        %v1060 = vand.u32 %v419, 4294901760
        %v1061 = vsub.f32 %v419, %v1060
        %v1062 = vand.u32 %v1061, 4294901760
        %1063 = vmatmul.f32.gmra.mxu0 %v1062
        %v1064 = vpop.f32.mrf.mxu0
        %v1065 = vadd.f32 %v936, %v1064
        %1066 = vdwg.mxu0
        %v1067 = vand.u32 %v438, 4294901760
        %v1068 = vsub.f32 %v438, %v1067
        %v1069 = vand.u32 %v1068, 4294901760
        %1070 = vmatpush.msra.mxu0 %v1069
        %v1071 = vand.u32 %v437, 4294901760
        %v1072 = vsub.f32 %v437, %v1071
        %v1073 = vand.u32 %v1072, 4294901760
        %1074 = vmatpush.msra.mxu0 %v1073
        %v1075 = vand.u32 %v436, 4294901760
        %v1076 = vsub.f32 %v436, %v1075
        %v1077 = vand.u32 %v1076, 4294901760
        %1078 = vmatpush.msra.mxu0 %v1077
        %v1079 = vand.u32 %v435, 4294901760
        %v1080 = vsub.f32 %v435, %v1079
        %v1081 = vand.u32 %v1080, 4294901760
        %1082 = vmatpush.msra.mxu0 %v1081
        %v1083 = vand.u32 %v434, 4294901760
        %v1084 = vsub.f32 %v434, %v1083
        %v1085 = vand.u32 %v1084, 4294901760
        %1086 = vmatpush.msra.mxu0 %v1085
        %v1087 = vand.u32 %v433, 4294901760
        %v1088 = vsub.f32 %v433, %v1087
        %v1089 = vand.u32 %v1088, 4294901760
        %1090 = vmatpush.msra.mxu0 %v1089
        %v1091 = vand.u32 %v432, 4294901760
        %v1092 = vsub.f32 %v432, %v1091
        %v1093 = vand.u32 %v1092, 4294901760
        %1094 = vmatpush.msra.mxu0 %v1093
        %v1095 = vand.u32 %v431, 4294901760
        %v1096 = vsub.f32 %v431, %v1095
        %v1097 = vand.u32 %v1096, 4294901760
        %1098 = vmatpush.msra.mxu0 %v1097
        %v1099 = vand.u32 %v430, 4294901760
        %v1100 = vsub.f32 %v430, %v1099
        %v1101 = vand.u32 %v1100, 4294901760
        %1102 = vmatpush.msra.mxu0 %v1101
        %v1103 = vand.u32 %v429, 4294901760
        %v1104 = vsub.f32 %v429, %v1103
        %v1105 = vand.u32 %v1104, 4294901760
        %1106 = vmatpush.msra.mxu0 %v1105
        %v1107 = vand.u32 %v428, 4294901760
        %v1108 = vsub.f32 %v428, %v1107
        %v1109 = vand.u32 %v1108, 4294901760
        %1110 = vmatpush.msra.mxu0 %v1109
        %v1111 = vand.u32 %v427, 4294901760
        %v1112 = vsub.f32 %v427, %v1111
        %v1113 = vand.u32 %v1112, 4294901760
        %1114 = vmatpush.msra.mxu0 %v1113
        %v1115 = vand.u32 %v426, 4294901760
        %v1116 = vsub.f32 %v426, %v1115
        %v1117 = vand.u32 %v1116, 4294901760
        %1118 = vmatpush.msra.mxu0 %v1117
        %v1119 = vand.u32 %v425, 4294901760
        %v1120 = vsub.f32 %v425, %v1119
        %v1121 = vand.u32 %v1120, 4294901760
        %1122 = vmatpush.msra.mxu0 %v1121
        %v1123 = vand.u32 %v424, 4294901760
        %v1124 = vsub.f32 %v424, %v1123
        %v1125 = vand.u32 %v1124, 4294901760
        %1126 = vmatpush.msra.mxu0 %v1125
        %v1127 = vand.u32 %v423, 4294901760
        %v1128 = vsub.f32 %v423, %v1127
        %v1129 = vand.u32 %v1128, 4294901760
        %1130 = vmatpush.msra.mxu0 %v1129
        %v1131 = vand.u32 %v359, 4294901760
        %1132 = vmatmul.f32.gmra.mxu0 %v1131
        %v1133 = vpop.f32.mrf.mxu0
        %v1134 = vadd.f32 %v975, %v1133
        %v1135 = vand.u32 %v363, 4294901760
        %1136 = vmatmul.f32.gmra.mxu0 %v1135
        %v1137 = vpop.f32.mrf.mxu0
        %v1138 = vadd.f32 %v981, %v1137
        %v1139 = vand.u32 %v367, 4294901760
        %1140 = vmatmul.f32.gmra.mxu0 %v1139
        %v1141 = vpop.f32.mrf.mxu0
        %v1142 = vadd.f32 %v987, %v1141
        %v1143 = vand.u32 %v371, 4294901760
        %1144 = vmatmul.f32.gmra.mxu0 %v1143
        %v1145 = vpop.f32.mrf.mxu0
        %v1146 = vadd.f32 %v993, %v1145
        %v1147 = vand.u32 %v375, 4294901760
        %1148 = vmatmul.f32.gmra.mxu0 %v1147
        %v1149 = vpop.f32.mrf.mxu0
        %v1150 = vadd.f32 %v999, %v1149
        %v1151 = vand.u32 %v379, 4294901760
        %1152 = vmatmul.f32.gmra.mxu0 %v1151
        %v1153 = vpop.f32.mrf.mxu0
        %v1154 = vadd.f32 %v1005, %v1153
        %v1155 = vand.u32 %v383, 4294901760
        %1156 = vmatmul.f32.gmra.mxu0 %v1155
        %v1157 = vpop.f32.mrf.mxu0
        %v1158 = vadd.f32 %v1011, %v1157
        %v1159 = vand.u32 %v387, 4294901760
        %1160 = vmatmul.f32.gmra.mxu0 %v1159
        %v1161 = vpop.f32.mrf.mxu0
        %v1162 = vadd.f32 %v1017, %v1161
        %v1163 = vand.u32 %v391, 4294901760
        %1164 = vmatmul.f32.gmra.mxu0 %v1163
        %v1165 = vpop.f32.mrf.mxu0
        %v1166 = vadd.f32 %v1023, %v1165
        %v1167 = vand.u32 %v395, 4294901760
        %1168 = vmatmul.f32.gmra.mxu0 %v1167
        %v1169 = vpop.f32.mrf.mxu0
        %v1170 = vadd.f32 %v1029, %v1169
        %v1171 = vand.u32 %v399, 4294901760
        %1172 = vmatmul.f32.gmra.mxu0 %v1171
        %v1173 = vpop.f32.mrf.mxu0
        %v1174 = vadd.f32 %v1035, %v1173
        %v1175 = vand.u32 %v403, 4294901760
        %1176 = vmatmul.f32.gmra.mxu0 %v1175
        %v1177 = vpop.f32.mrf.mxu0
        %v1178 = vadd.f32 %v1041, %v1177
        %v1179 = vand.u32 %v407, 4294901760
        %1180 = vmatmul.f32.gmra.mxu0 %v1179
        %v1181 = vpop.f32.mrf.mxu0
        %v1182 = vadd.f32 %v1047, %v1181
        %v1183 = vand.u32 %v411, 4294901760
        %1184 = vmatmul.f32.gmra.mxu0 %v1183
        %v1185 = vpop.f32.mrf.mxu0
        %v1186 = vadd.f32 %v1053, %v1185
        %v1187 = vand.u32 %v415, 4294901760
        %1188 = vmatmul.f32.gmra.mxu0 %v1187
        %v1189 = vpop.f32.mrf.mxu0
        %v1190 = vadd.f32 %v1059, %v1189
        %v1191 = vand.u32 %v419, 4294901760
        %1192 = vmatmul.f32.gmra.mxu0 %v1191
        %v1193 = vpop.f32.mrf.mxu0
        %v1194 = vadd.f32 %v1065, %v1193
        %1195 = vdwg.mxu0
        %v1196 = vand.u32 %v438, 4294901760
        %1197 = vmatpush.msra.mxu0 %v1196
        %v1198 = vand.u32 %v437, 4294901760
        %1199 = vmatpush.msra.mxu0 %v1198
        %v1200 = vand.u32 %v436, 4294901760
        %1201 = vmatpush.msra.mxu0 %v1200
        %v1202 = vand.u32 %v435, 4294901760
        %1203 = vmatpush.msra.mxu0 %v1202
        %v1204 = vand.u32 %v434, 4294901760
        %1205 = vmatpush.msra.mxu0 %v1204
        %v1206 = vand.u32 %v433, 4294901760
        %1207 = vmatpush.msra.mxu0 %v1206
        %v1208 = vand.u32 %v432, 4294901760
        %1209 = vmatpush.msra.mxu0 %v1208
        %v1210 = vand.u32 %v431, 4294901760
        %1211 = vmatpush.msra.mxu0 %v1210
        %v1212 = vand.u32 %v430, 4294901760
        %1213 = vmatpush.msra.mxu0 %v1212
        %v1214 = vand.u32 %v429, 4294901760
        %1215 = vmatpush.msra.mxu0 %v1214
        %v1216 = vand.u32 %v428, 4294901760
        %1217 = vmatpush.msra.mxu0 %v1216
        %v1218 = vand.u32 %v427, 4294901760
        %1219 = vmatpush.msra.mxu0 %v1218
        %v1220 = vand.u32 %v426, 4294901760
        %1221 = vmatpush.msra.mxu0 %v1220
        %v1222 = vand.u32 %v425, 4294901760
        %1223 = vmatpush.msra.mxu0 %v1222
        %v1224 = vand.u32 %v424, 4294901760
        %1225 = vmatpush.msra.mxu0 %v1224
        %v1226 = vand.u32 %v423, 4294901760
        %1227 = vmatpush.msra.mxu0 %v1226
        %v1228 = vand.u32 %v359, 4294901760
        %1229 = vmatmul.f32.gmra.mxu0 %v1228
        %v1230 = vpop.f32.mrf.mxu0
        %v1231 = vadd.f32 %v1134, %v1230
        %v1232 = vand.u32 %v363, 4294901760
        %1233 = vmatmul.f32.gmra.mxu0 %v1232
        %v1234 = vpop.f32.mrf.mxu0
        %v1235 = vadd.f32 %v1138, %v1234
        %v1236 = vand.u32 %v367, 4294901760
        %1237 = vmatmul.f32.gmra.mxu0 %v1236
        %v1238 = vpop.f32.mrf.mxu0
        %v1239 = vadd.f32 %v1142, %v1238
        %v1240 = vand.u32 %v371, 4294901760
        %1241 = vmatmul.f32.gmra.mxu0 %v1240
        %v1242 = vpop.f32.mrf.mxu0
        %v1243 = vadd.f32 %v1146, %v1242
        %v1244 = vand.u32 %v375, 4294901760
        %1245 = vmatmul.f32.gmra.mxu0 %v1244
        %v1246 = vpop.f32.mrf.mxu0
        %v1247 = vadd.f32 %v1150, %v1246
        %v1248 = vand.u32 %v379, 4294901760
        %1249 = vmatmul.f32.gmra.mxu0 %v1248
        %v1250 = vpop.f32.mrf.mxu0
        %v1251 = vadd.f32 %v1154, %v1250
        %v1252 = vand.u32 %v383, 4294901760
        %1253 = vmatmul.f32.gmra.mxu0 %v1252
        %v1254 = vpop.f32.mrf.mxu0
        %v1255 = vadd.f32 %v1158, %v1254
        %v1256 = vand.u32 %v387, 4294901760
        %1257 = vmatmul.f32.gmra.mxu0 %v1256
        %v1258 = vpop.f32.mrf.mxu0
        %v1259 = vadd.f32 %v1162, %v1258
        %v1260 = vand.u32 %v391, 4294901760
        %1261 = vmatmul.f32.gmra.mxu0 %v1260
        %v1262 = vpop.f32.mrf.mxu0
        %v1263 = vadd.f32 %v1166, %v1262
        %v1264 = vand.u32 %v395, 4294901760
        %1265 = vmatmul.f32.gmra.mxu0 %v1264
        %v1266 = vpop.f32.mrf.mxu0
        %v1267 = vadd.f32 %v1170, %v1266
        %v1268 = vand.u32 %v399, 4294901760
        %1269 = vmatmul.f32.gmra.mxu0 %v1268
        %v1270 = vpop.f32.mrf.mxu0
        %v1271 = vadd.f32 %v1174, %v1270
        %v1272 = vand.u32 %v403, 4294901760
        %1273 = vmatmul.f32.gmra.mxu0 %v1272
        %v1274 = vpop.f32.mrf.mxu0
        %v1275 = vadd.f32 %v1178, %v1274
        %v1276 = vand.u32 %v407, 4294901760
        %1277 = vmatmul.f32.gmra.mxu0 %v1276
        %v1278 = vpop.f32.mrf.mxu0
        %v1279 = vadd.f32 %v1182, %v1278
        %v1280 = vand.u32 %v411, 4294901760
        %1281 = vmatmul.f32.gmra.mxu0 %v1280
        %v1282 = vpop.f32.mrf.mxu0
        %v1283 = vadd.f32 %v1186, %v1282
        %v1284 = vand.u32 %v415, 4294901760
        %1285 = vmatmul.f32.gmra.mxu0 %v1284
        %v1286 = vpop.f32.mrf.mxu0
        %v1287 = vadd.f32 %v1190, %v1286
        %v1288 = vand.u32 %v419, 4294901760
        %1289 = vmatmul.f32.gmra.mxu0 %v1288
        %v1290 = vpop.f32.mrf.mxu0
        %v1291 = vadd.f32 %v1194, %v1290
        %1292 = vdwg.mxu0
        %v1293 = vand.u32 %v454, 4294901760
        %1294 = vmatpush.msra.mxu0 %v1293
        %v1295 = vand.u32 %v453, 4294901760
        %1296 = vmatpush.msra.mxu0 %v1295
        %v1297 = vand.u32 %v452, 4294901760
        %1298 = vmatpush.msra.mxu0 %v1297
        %v1299 = vand.u32 %v451, 4294901760
        %1300 = vmatpush.msra.mxu0 %v1299
        %v1301 = vand.u32 %v450, 4294901760
        %1302 = vmatpush.msra.mxu0 %v1301
        %v1303 = vand.u32 %v449, 4294901760
        %1304 = vmatpush.msra.mxu0 %v1303
        %v1305 = vand.u32 %v448, 4294901760
        %1306 = vmatpush.msra.mxu0 %v1305
        %v1307 = vand.u32 %v447, 4294901760
        %1308 = vmatpush.msra.mxu0 %v1307
        %v1309 = vand.u32 %v446, 4294901760
        %1310 = vmatpush.msra.mxu0 %v1309
        %v1311 = vand.u32 %v445, 4294901760
        %1312 = vmatpush.msra.mxu0 %v1311
        %v1313 = vand.u32 %v444, 4294901760
        %1314 = vmatpush.msra.mxu0 %v1313
        %v1315 = vand.u32 %v443, 4294901760
        %1316 = vmatpush.msra.mxu0 %v1315
        %v1317 = vand.u32 %v442, 4294901760
        %1318 = vmatpush.msra.mxu0 %v1317
        %v1319 = vand.u32 %v441, 4294901760
        %1320 = vmatpush.msra.mxu0 %v1319
        %v1321 = vand.u32 %v440, 4294901760
        %1322 = vmatpush.msra.mxu0 %v1321
        %v1323 = vand.u32 %v439, 4294901760
        %1324 = vmatpush.msra.mxu0 %v1323
        %v1325 = vand.u32 %v360, 4294901760
        %v1326 = vsub.f32 %v360, %v1325
        %v1327 = vand.u32 %v1326, 4294901760
        %v1328 = vsub.f32 %v1326, %v1327
        %v1329 = vand.u32 %v1328, 4294901760
        %1330 = vmatmul.f32.gmra.mxu0 %v1329
        %v1331 = vpop.f32.mrf.mxu0
        %v1332 = vadd.f32 %v1231, %v1331
        %v1333 = vand.u32 %v364, 4294901760
        %v1334 = vsub.f32 %v364, %v1333
        %v1335 = vand.u32 %v1334, 4294901760
        %v1336 = vsub.f32 %v1334, %v1335
        %v1337 = vand.u32 %v1336, 4294901760
        %1338 = vmatmul.f32.gmra.mxu0 %v1337
        %v1339 = vpop.f32.mrf.mxu0
        %v1340 = vadd.f32 %v1235, %v1339
        %v1341 = vand.u32 %v368, 4294901760
        %v1342 = vsub.f32 %v368, %v1341
        %v1343 = vand.u32 %v1342, 4294901760
        %v1344 = vsub.f32 %v1342, %v1343
        %v1345 = vand.u32 %v1344, 4294901760
        %1346 = vmatmul.f32.gmra.mxu0 %v1345
        %v1347 = vpop.f32.mrf.mxu0
        %v1348 = vadd.f32 %v1239, %v1347
        %v1349 = vand.u32 %v372, 4294901760
        %v1350 = vsub.f32 %v372, %v1349
        %v1351 = vand.u32 %v1350, 4294901760
        %v1352 = vsub.f32 %v1350, %v1351
        %v1353 = vand.u32 %v1352, 4294901760
        %1354 = vmatmul.f32.gmra.mxu0 %v1353
        %v1355 = vpop.f32.mrf.mxu0
        %v1356 = vadd.f32 %v1243, %v1355
        %v1357 = vand.u32 %v376, 4294901760
        %v1358 = vsub.f32 %v376, %v1357
        %v1359 = vand.u32 %v1358, 4294901760
        %v1360 = vsub.f32 %v1358, %v1359
        %v1361 = vand.u32 %v1360, 4294901760
        %1362 = vmatmul.f32.gmra.mxu0 %v1361
        %v1363 = vpop.f32.mrf.mxu0
        %v1364 = vadd.f32 %v1247, %v1363
        %v1365 = vand.u32 %v380, 4294901760
        %v1366 = vsub.f32 %v380, %v1365
        %v1367 = vand.u32 %v1366, 4294901760
        %v1368 = vsub.f32 %v1366, %v1367
        %v1369 = vand.u32 %v1368, 4294901760
        %1370 = vmatmul.f32.gmra.mxu0 %v1369
        %v1371 = vpop.f32.mrf.mxu0
        %v1372 = vadd.f32 %v1251, %v1371
        %v1373 = vand.u32 %v384, 4294901760
        %v1374 = vsub.f32 %v384, %v1373
        %v1375 = vand.u32 %v1374, 4294901760
        %v1376 = vsub.f32 %v1374, %v1375
        %v1377 = vand.u32 %v1376, 4294901760
        %1378 = vmatmul.f32.gmra.mxu0 %v1377
        %v1379 = vpop.f32.mrf.mxu0
        %v1380 = vadd.f32 %v1255, %v1379
        %v1381 = vand.u32 %v388, 4294901760
        %v1382 = vsub.f32 %v388, %v1381
        %v1383 = vand.u32 %v1382, 4294901760
        %v1384 = vsub.f32 %v1382, %v1383
        %v1385 = vand.u32 %v1384, 4294901760
        %1386 = vmatmul.f32.gmra.mxu0 %v1385
        %v1387 = vpop.f32.mrf.mxu0
        %v1388 = vadd.f32 %v1259, %v1387
        %v1389 = vand.u32 %v392, 4294901760
        %v1390 = vsub.f32 %v392, %v1389
        %v1391 = vand.u32 %v1390, 4294901760
        %v1392 = vsub.f32 %v1390, %v1391
        %v1393 = vand.u32 %v1392, 4294901760
        %1394 = vmatmul.f32.gmra.mxu0 %v1393
        %v1395 = vpop.f32.mrf.mxu0
        %v1396 = vadd.f32 %v1263, %v1395
        %v1397 = vand.u32 %v396, 4294901760
        %v1398 = vsub.f32 %v396, %v1397
        %v1399 = vand.u32 %v1398, 4294901760
        %v1400 = vsub.f32 %v1398, %v1399
        %v1401 = vand.u32 %v1400, 4294901760
        %1402 = vmatmul.f32.gmra.mxu0 %v1401
        %v1403 = vpop.f32.mrf.mxu0
        %v1404 = vadd.f32 %v1267, %v1403
        %v1405 = vand.u32 %v400, 4294901760
        %v1406 = vsub.f32 %v400, %v1405
        %v1407 = vand.u32 %v1406, 4294901760
        %v1408 = vsub.f32 %v1406, %v1407
        %v1409 = vand.u32 %v1408, 4294901760
        %1410 = vmatmul.f32.gmra.mxu0 %v1409
        %v1411 = vpop.f32.mrf.mxu0
        %v1412 = vadd.f32 %v1271, %v1411
        %v1413 = vand.u32 %v404, 4294901760
        %v1414 = vsub.f32 %v404, %v1413
        %v1415 = vand.u32 %v1414, 4294901760
        %v1416 = vsub.f32 %v1414, %v1415
        %v1417 = vand.u32 %v1416, 4294901760
        %1418 = vmatmul.f32.gmra.mxu0 %v1417
        %v1419 = vpop.f32.mrf.mxu0
        %v1420 = vadd.f32 %v1275, %v1419
        %v1421 = vand.u32 %v408, 4294901760
        %v1422 = vsub.f32 %v408, %v1421
        %v1423 = vand.u32 %v1422, 4294901760
        %v1424 = vsub.f32 %v1422, %v1423
        %v1425 = vand.u32 %v1424, 4294901760
        %1426 = vmatmul.f32.gmra.mxu0 %v1425
        %v1427 = vpop.f32.mrf.mxu0
        %v1428 = vadd.f32 %v1279, %v1427
        %v1429 = vand.u32 %v412, 4294901760
        %v1430 = vsub.f32 %v412, %v1429
        %v1431 = vand.u32 %v1430, 4294901760
        %v1432 = vsub.f32 %v1430, %v1431
        %v1433 = vand.u32 %v1432, 4294901760
        %1434 = vmatmul.f32.gmra.mxu0 %v1433
        %v1435 = vpop.f32.mrf.mxu0
        %v1436 = vadd.f32 %v1283, %v1435
        %v1437 = vand.u32 %v416, 4294901760
        %v1438 = vsub.f32 %v416, %v1437
        %v1439 = vand.u32 %v1438, 4294901760
        %v1440 = vsub.f32 %v1438, %v1439
        %v1441 = vand.u32 %v1440, 4294901760
        %1442 = vmatmul.f32.gmra.mxu0 %v1441
        %v1443 = vpop.f32.mrf.mxu0
        %v1444 = vadd.f32 %v1287, %v1443
        %v1445 = vand.u32 %v420, 4294901760
        %v1446 = vsub.f32 %v420, %v1445
        %v1447 = vand.u32 %v1446, 4294901760
        %v1448 = vsub.f32 %v1446, %v1447
        %v1449 = vand.u32 %v1448, 4294901760
        %1450 = vmatmul.f32.gmra.mxu0 %v1449
        %v1451 = vpop.f32.mrf.mxu0
        %v1452 = vadd.f32 %v1291, %v1451
        %1453 = vdwg.mxu0
        %v1454 = vand.u32 %v454, 4294901760
        %v1455 = vsub.f32 %v454, %v1454
        %v1456 = vand.u32 %v1455, 4294901760
        %v1457 = vsub.f32 %v1455, %v1456
        %v1458 = vand.u32 %v1457, 4294901760
        %1459 = vmatpush.msra.mxu0 %v1458
        %v1460 = vand.u32 %v453, 4294901760
        %v1461 = vsub.f32 %v453, %v1460
        %v1462 = vand.u32 %v1461, 4294901760
        %v1463 = vsub.f32 %v1461, %v1462
        %v1464 = vand.u32 %v1463, 4294901760
        %1465 = vmatpush.msra.mxu0 %v1464
        %v1466 = vand.u32 %v452, 4294901760
        %v1467 = vsub.f32 %v452, %v1466
        %v1468 = vand.u32 %v1467, 4294901760
        %v1469 = vsub.f32 %v1467, %v1468
        %v1470 = vand.u32 %v1469, 4294901760
        %1471 = vmatpush.msra.mxu0 %v1470
        %v1472 = vand.u32 %v451, 4294901760
        %v1473 = vsub.f32 %v451, %v1472
        %v1474 = vand.u32 %v1473, 4294901760
        %v1475 = vsub.f32 %v1473, %v1474
        %v1476 = vand.u32 %v1475, 4294901760
        %1477 = vmatpush.msra.mxu0 %v1476
        %v1478 = vand.u32 %v450, 4294901760
        %v1479 = vsub.f32 %v450, %v1478
        %v1480 = vand.u32 %v1479, 4294901760
        %v1481 = vsub.f32 %v1479, %v1480
        %v1482 = vand.u32 %v1481, 4294901760
        %1483 = vmatpush.msra.mxu0 %v1482
        %v1484 = vand.u32 %v449, 4294901760
        %v1485 = vsub.f32 %v449, %v1484
        %v1486 = vand.u32 %v1485, 4294901760
        %v1487 = vsub.f32 %v1485, %v1486
        %v1488 = vand.u32 %v1487, 4294901760
        %1489 = vmatpush.msra.mxu0 %v1488
        %v1490 = vand.u32 %v448, 4294901760
        %v1491 = vsub.f32 %v448, %v1490
        %v1492 = vand.u32 %v1491, 4294901760
        %v1493 = vsub.f32 %v1491, %v1492
        %v1494 = vand.u32 %v1493, 4294901760
        %1495 = vmatpush.msra.mxu0 %v1494
        %v1496 = vand.u32 %v447, 4294901760
        %v1497 = vsub.f32 %v447, %v1496
        %v1498 = vand.u32 %v1497, 4294901760
        %v1499 = vsub.f32 %v1497, %v1498
        %v1500 = vand.u32 %v1499, 4294901760
        %1501 = vmatpush.msra.mxu0 %v1500
        %v1502 = vand.u32 %v446, 4294901760
        %v1503 = vsub.f32 %v446, %v1502
        %v1504 = vand.u32 %v1503, 4294901760
        %v1505 = vsub.f32 %v1503, %v1504
        %v1506 = vand.u32 %v1505, 4294901760
        %1507 = vmatpush.msra.mxu0 %v1506
        %v1508 = vand.u32 %v445, 4294901760
        %v1509 = vsub.f32 %v445, %v1508
        %v1510 = vand.u32 %v1509, 4294901760
        %v1511 = vsub.f32 %v1509, %v1510
        %v1512 = vand.u32 %v1511, 4294901760
        %1513 = vmatpush.msra.mxu0 %v1512
        %v1514 = vand.u32 %v444, 4294901760
        %v1515 = vsub.f32 %v444, %v1514
        %v1516 = vand.u32 %v1515, 4294901760
        %v1517 = vsub.f32 %v1515, %v1516
        %v1518 = vand.u32 %v1517, 4294901760
        %1519 = vmatpush.msra.mxu0 %v1518
        %v1520 = vand.u32 %v443, 4294901760
        %v1521 = vsub.f32 %v443, %v1520
        %v1522 = vand.u32 %v1521, 4294901760
        %v1523 = vsub.f32 %v1521, %v1522
        %v1524 = vand.u32 %v1523, 4294901760
        %1525 = vmatpush.msra.mxu0 %v1524
        %v1526 = vand.u32 %v442, 4294901760
        %v1527 = vsub.f32 %v442, %v1526
        %v1528 = vand.u32 %v1527, 4294901760
        %v1529 = vsub.f32 %v1527, %v1528
        %v1530 = vand.u32 %v1529, 4294901760
        %1531 = vmatpush.msra.mxu0 %v1530
        %v1532 = vand.u32 %v441, 4294901760
        %v1533 = vsub.f32 %v441, %v1532
        %v1534 = vand.u32 %v1533, 4294901760
        %v1535 = vsub.f32 %v1533, %v1534
        %v1536 = vand.u32 %v1535, 4294901760
        %1537 = vmatpush.msra.mxu0 %v1536
        %v1538 = vand.u32 %v440, 4294901760
        %v1539 = vsub.f32 %v440, %v1538
        %v1540 = vand.u32 %v1539, 4294901760
        %v1541 = vsub.f32 %v1539, %v1540
        %v1542 = vand.u32 %v1541, 4294901760
        %1543 = vmatpush.msra.mxu0 %v1542
        %v1544 = vand.u32 %v439, 4294901760
        %v1545 = vsub.f32 %v439, %v1544
        %v1546 = vand.u32 %v1545, 4294901760
        %v1547 = vsub.f32 %v1545, %v1546
        %v1548 = vand.u32 %v1547, 4294901760
        %1549 = vmatpush.msra.mxu0 %v1548
        %v1550 = vand.u32 %v360, 4294901760
        %1551 = vmatmul.f32.gmra.mxu0 %v1550
        %v1552 = vpop.f32.mrf.mxu0
        %v1553 = vadd.f32 %v1332, %v1552
        %v1554 = vand.u32 %v364, 4294901760
        %1555 = vmatmul.f32.gmra.mxu0 %v1554
        %v1556 = vpop.f32.mrf.mxu0
        %v1557 = vadd.f32 %v1340, %v1556
        %v1558 = vand.u32 %v368, 4294901760
        %1559 = vmatmul.f32.gmra.mxu0 %v1558
        %v1560 = vpop.f32.mrf.mxu0
        %v1561 = vadd.f32 %v1348, %v1560
        %v1562 = vand.u32 %v372, 4294901760
        %1563 = vmatmul.f32.gmra.mxu0 %v1562
        %v1564 = vpop.f32.mrf.mxu0
        %v1565 = vadd.f32 %v1356, %v1564
        %v1566 = vand.u32 %v376, 4294901760
        %1567 = vmatmul.f32.gmra.mxu0 %v1566
        %v1568 = vpop.f32.mrf.mxu0
        %v1569 = vadd.f32 %v1364, %v1568
        %v1570 = vand.u32 %v380, 4294901760
        %1571 = vmatmul.f32.gmra.mxu0 %v1570
        %v1572 = vpop.f32.mrf.mxu0
        %v1573 = vadd.f32 %v1372, %v1572
        %v1574 = vand.u32 %v384, 4294901760
        %1575 = vmatmul.f32.gmra.mxu0 %v1574
        %v1576 = vpop.f32.mrf.mxu0
        %v1577 = vadd.f32 %v1380, %v1576
        %v1578 = vand.u32 %v388, 4294901760
        %1579 = vmatmul.f32.gmra.mxu0 %v1578
        %v1580 = vpop.f32.mrf.mxu0
        %v1581 = vadd.f32 %v1388, %v1580
        %v1582 = vand.u32 %v392, 4294901760
        %1583 = vmatmul.f32.gmra.mxu0 %v1582
        %v1584 = vpop.f32.mrf.mxu0
        %v1585 = vadd.f32 %v1396, %v1584
        %v1586 = vand.u32 %v396, 4294901760
        %1587 = vmatmul.f32.gmra.mxu0 %v1586
        %v1588 = vpop.f32.mrf.mxu0
        %v1589 = vadd.f32 %v1404, %v1588
        %v1590 = vand.u32 %v400, 4294901760
        %1591 = vmatmul.f32.gmra.mxu0 %v1590
        %v1592 = vpop.f32.mrf.mxu0
        %v1593 = vadd.f32 %v1412, %v1592
        %v1594 = vand.u32 %v404, 4294901760
        %1595 = vmatmul.f32.gmra.mxu0 %v1594
        %v1596 = vpop.f32.mrf.mxu0
        %v1597 = vadd.f32 %v1420, %v1596
        %v1598 = vand.u32 %v408, 4294901760
        %1599 = vmatmul.f32.gmra.mxu0 %v1598
        %v1600 = vpop.f32.mrf.mxu0
        %v1601 = vadd.f32 %v1428, %v1600
        %v1602 = vand.u32 %v412, 4294901760
        %1603 = vmatmul.f32.gmra.mxu0 %v1602
        %v1604 = vpop.f32.mrf.mxu0
        %v1605 = vadd.f32 %v1436, %v1604
        %v1606 = vand.u32 %v416, 4294901760
        %1607 = vmatmul.f32.gmra.mxu0 %v1606
        %v1608 = vpop.f32.mrf.mxu0
        %v1609 = vadd.f32 %v1444, %v1608
        %v1610 = vand.u32 %v420, 4294901760
        %1611 = vmatmul.f32.gmra.mxu0 %v1610
        %v1612 = vpop.f32.mrf.mxu0
        %v1613 = vadd.f32 %v1452, %v1612
        %1614 = vdwg.mxu0
        %v1615 = vand.u32 %v454, 4294901760
        %v1616 = vsub.f32 %v454, %v1615
        %1617 = vmatpush.msra.mxu0 %v1616
        %v1618 = vand.u32 %v453, 4294901760
        %v1619 = vsub.f32 %v453, %v1618
        %1620 = vmatpush.msra.mxu0 %v1619
        %v1621 = vand.u32 %v452, 4294901760
        %v1622 = vsub.f32 %v452, %v1621
        %1623 = vmatpush.msra.mxu0 %v1622
        %v1624 = vand.u32 %v451, 4294901760
        %v1625 = vsub.f32 %v451, %v1624
        %1626 = vmatpush.msra.mxu0 %v1625
        %v1627 = vand.u32 %v450, 4294901760
        %v1628 = vsub.f32 %v450, %v1627
        %1629 = vmatpush.msra.mxu0 %v1628
        %v1630 = vand.u32 %v449, 4294901760
        %v1631 = vsub.f32 %v449, %v1630
        %1632 = vmatpush.msra.mxu0 %v1631
        %v1633 = vand.u32 %v448, 4294901760
        %v1634 = vsub.f32 %v448, %v1633
        %1635 = vmatpush.msra.mxu0 %v1634
        %v1636 = vand.u32 %v447, 4294901760
        %v1637 = vsub.f32 %v447, %v1636
        %1638 = vmatpush.msra.mxu0 %v1637
        %v1639 = vand.u32 %v446, 4294901760
        %v1640 = vsub.f32 %v446, %v1639
        %1641 = vmatpush.msra.mxu0 %v1640
        %v1642 = vand.u32 %v445, 4294901760
        %v1643 = vsub.f32 %v445, %v1642
        %1644 = vmatpush.msra.mxu0 %v1643
        %v1645 = vand.u32 %v444, 4294901760
        %v1646 = vsub.f32 %v444, %v1645
        %1647 = vmatpush.msra.mxu0 %v1646
        %v1648 = vand.u32 %v443, 4294901760
        %v1649 = vsub.f32 %v443, %v1648
        %1650 = vmatpush.msra.mxu0 %v1649
        %v1651 = vand.u32 %v442, 4294901760
        %v1652 = vsub.f32 %v442, %v1651
        %1653 = vmatpush.msra.mxu0 %v1652
        %v1654 = vand.u32 %v441, 4294901760
        %v1655 = vsub.f32 %v441, %v1654
        %1656 = vmatpush.msra.mxu0 %v1655
        %v1657 = vand.u32 %v440, 4294901760
        %v1658 = vsub.f32 %v440, %v1657
        %1659 = vmatpush.msra.mxu0 %v1658
        %v1660 = vand.u32 %v439, 4294901760
        %v1661 = vsub.f32 %v439, %v1660
        %1662 = vmatpush.msra.mxu0 %v1661
        %v1663 = vand.u32 %v360, 4294901760
        %v1664 = vsub.f32 %v360, %v1663
        %1665 = vmatmul.f32.gmra.mxu0 %v1664
        %v1666 = vpop.f32.mrf.mxu0
        %v1667 = vadd.f32 %v1553, %v1666
        %v1668 = vand.u32 %v364, 4294901760
        %v1669 = vsub.f32 %v364, %v1668
        %1670 = vmatmul.f32.gmra.mxu0 %v1669
        %v1671 = vpop.f32.mrf.mxu0
        %v1672 = vadd.f32 %v1557, %v1671
        %v1673 = vand.u32 %v368, 4294901760
        %v1674 = vsub.f32 %v368, %v1673
        %1675 = vmatmul.f32.gmra.mxu0 %v1674
        %v1676 = vpop.f32.mrf.mxu0
        %v1677 = vadd.f32 %v1561, %v1676
        %v1678 = vand.u32 %v372, 4294901760
        %v1679 = vsub.f32 %v372, %v1678
        %1680 = vmatmul.f32.gmra.mxu0 %v1679
        %v1681 = vpop.f32.mrf.mxu0
        %v1682 = vadd.f32 %v1565, %v1681
        %v1683 = vand.u32 %v376, 4294901760
        %v1684 = vsub.f32 %v376, %v1683
        %1685 = vmatmul.f32.gmra.mxu0 %v1684
        %v1686 = vpop.f32.mrf.mxu0
        %v1687 = vadd.f32 %v1569, %v1686
        %v1688 = vand.u32 %v380, 4294901760
        %v1689 = vsub.f32 %v380, %v1688
        %1690 = vmatmul.f32.gmra.mxu0 %v1689
        %v1691 = vpop.f32.mrf.mxu0
        %v1692 = vadd.f32 %v1573, %v1691
        %v1693 = vand.u32 %v384, 4294901760
        %v1694 = vsub.f32 %v384, %v1693
        %1695 = vmatmul.f32.gmra.mxu0 %v1694
        %v1696 = vpop.f32.mrf.mxu0
        %v1697 = vadd.f32 %v1577, %v1696
        %v1698 = vand.u32 %v388, 4294901760
        %v1699 = vsub.f32 %v388, %v1698
        %1700 = vmatmul.f32.gmra.mxu0 %v1699
        %v1701 = vpop.f32.mrf.mxu0
        %v1702 = vadd.f32 %v1581, %v1701
        %v1703 = vand.u32 %v392, 4294901760
        %v1704 = vsub.f32 %v392, %v1703
        %1705 = vmatmul.f32.gmra.mxu0 %v1704
        %v1706 = vpop.f32.mrf.mxu0
        %v1707 = vadd.f32 %v1585, %v1706
        %v1708 = vand.u32 %v396, 4294901760
        %v1709 = vsub.f32 %v396, %v1708
        %1710 = vmatmul.f32.gmra.mxu0 %v1709
        %v1711 = vpop.f32.mrf.mxu0
        %v1712 = vadd.f32 %v1589, %v1711
        %v1713 = vand.u32 %v400, 4294901760
        %v1714 = vsub.f32 %v400, %v1713
        %1715 = vmatmul.f32.gmra.mxu0 %v1714
        %v1716 = vpop.f32.mrf.mxu0
        %v1717 = vadd.f32 %v1593, %v1716
        %v1718 = vand.u32 %v404, 4294901760
        %v1719 = vsub.f32 %v404, %v1718
        %1720 = vmatmul.f32.gmra.mxu0 %v1719
        %v1721 = vpop.f32.mrf.mxu0
        %v1722 = vadd.f32 %v1597, %v1721
        %v1723 = vand.u32 %v408, 4294901760
        %v1724 = vsub.f32 %v408, %v1723
        %1725 = vmatmul.f32.gmra.mxu0 %v1724
        %v1726 = vpop.f32.mrf.mxu0
        %v1727 = vadd.f32 %v1601, %v1726
        %v1728 = vand.u32 %v412, 4294901760
        %v1729 = vsub.f32 %v412, %v1728
        %1730 = vmatmul.f32.gmra.mxu0 %v1729
        %v1731 = vpop.f32.mrf.mxu0
        %v1732 = vadd.f32 %v1605, %v1731
        %v1733 = vand.u32 %v416, 4294901760
        %v1734 = vsub.f32 %v416, %v1733
        %1735 = vmatmul.f32.gmra.mxu0 %v1734
        %v1736 = vpop.f32.mrf.mxu0
        %v1737 = vadd.f32 %v1609, %v1736
        %v1738 = vand.u32 %v420, 4294901760
        %v1739 = vsub.f32 %v420, %v1738
        %1740 = vmatmul.f32.gmra.mxu0 %v1739
        %v1741 = vpop.f32.mrf.mxu0
        %v1742 = vadd.f32 %v1613, %v1741
        %1743 = vdwg.mxu0
        %v1744 = vand.u32 %v454, 4294901760
        %1745 = vmatpush.msra.mxu0 %v1744
        %v1746 = vand.u32 %v453, 4294901760
        %1747 = vmatpush.msra.mxu0 %v1746
        %v1748 = vand.u32 %v452, 4294901760
        %1749 = vmatpush.msra.mxu0 %v1748
        %v1750 = vand.u32 %v451, 4294901760
        %1751 = vmatpush.msra.mxu0 %v1750
        %v1752 = vand.u32 %v450, 4294901760
        %1753 = vmatpush.msra.mxu0 %v1752
        %v1754 = vand.u32 %v449, 4294901760
        %1755 = vmatpush.msra.mxu0 %v1754
        %v1756 = vand.u32 %v448, 4294901760
        %1757 = vmatpush.msra.mxu0 %v1756
        %v1758 = vand.u32 %v447, 4294901760
        %1759 = vmatpush.msra.mxu0 %v1758
        %v1760 = vand.u32 %v446, 4294901760
        %1761 = vmatpush.msra.mxu0 %v1760
        %v1762 = vand.u32 %v445, 4294901760
        %1763 = vmatpush.msra.mxu0 %v1762
        %v1764 = vand.u32 %v444, 4294901760
        %1765 = vmatpush.msra.mxu0 %v1764
        %v1766 = vand.u32 %v443, 4294901760
        %1767 = vmatpush.msra.mxu0 %v1766
        %v1768 = vand.u32 %v442, 4294901760
        %1769 = vmatpush.msra.mxu0 %v1768
        %v1770 = vand.u32 %v441, 4294901760
        %1771 = vmatpush.msra.mxu0 %v1770
        %v1772 = vand.u32 %v440, 4294901760
        %1773 = vmatpush.msra.mxu0 %v1772
        %v1774 = vand.u32 %v439, 4294901760
        %1775 = vmatpush.msra.mxu0 %v1774
        %v1776 = vand.u32 %v360, 4294901760
        %v1777 = vsub.f32 %v360, %v1776
        %v1778 = vand.u32 %v1777, 4294901760
        %1779 = vmatmul.f32.gmra.mxu0 %v1778
        %v1780 = vpop.f32.mrf.mxu0
        %v1781 = vadd.f32 %v1667, %v1780
        %v1782 = vand.u32 %v364, 4294901760
        %v1783 = vsub.f32 %v364, %v1782
        %v1784 = vand.u32 %v1783, 4294901760
        %1785 = vmatmul.f32.gmra.mxu0 %v1784
        %v1786 = vpop.f32.mrf.mxu0
        %v1787 = vadd.f32 %v1672, %v1786
        %v1788 = vand.u32 %v368, 4294901760
        %v1789 = vsub.f32 %v368, %v1788
        %v1790 = vand.u32 %v1789, 4294901760
        %1791 = vmatmul.f32.gmra.mxu0 %v1790
        %v1792 = vpop.f32.mrf.mxu0
        %v1793 = vadd.f32 %v1677, %v1792
        %v1794 = vand.u32 %v372, 4294901760
        %v1795 = vsub.f32 %v372, %v1794
        %v1796 = vand.u32 %v1795, 4294901760
        %1797 = vmatmul.f32.gmra.mxu0 %v1796
        %v1798 = vpop.f32.mrf.mxu0
        %v1799 = vadd.f32 %v1682, %v1798
        %v1800 = vand.u32 %v376, 4294901760
        %v1801 = vsub.f32 %v376, %v1800
        %v1802 = vand.u32 %v1801, 4294901760
        %1803 = vmatmul.f32.gmra.mxu0 %v1802
        %v1804 = vpop.f32.mrf.mxu0
        %v1805 = vadd.f32 %v1687, %v1804
        %v1806 = vand.u32 %v380, 4294901760
        %v1807 = vsub.f32 %v380, %v1806
        %v1808 = vand.u32 %v1807, 4294901760
        %1809 = vmatmul.f32.gmra.mxu0 %v1808
        %v1810 = vpop.f32.mrf.mxu0
        %v1811 = vadd.f32 %v1692, %v1810
        %v1812 = vand.u32 %v384, 4294901760
        %v1813 = vsub.f32 %v384, %v1812
        %v1814 = vand.u32 %v1813, 4294901760
        %1815 = vmatmul.f32.gmra.mxu0 %v1814
        %v1816 = vpop.f32.mrf.mxu0
        %v1817 = vadd.f32 %v1697, %v1816
        %v1818 = vand.u32 %v388, 4294901760
        %v1819 = vsub.f32 %v388, %v1818
        %v1820 = vand.u32 %v1819, 4294901760
        %1821 = vmatmul.f32.gmra.mxu0 %v1820
        %v1822 = vpop.f32.mrf.mxu0
        %v1823 = vadd.f32 %v1702, %v1822
        %v1824 = vand.u32 %v392, 4294901760
        %v1825 = vsub.f32 %v392, %v1824
        %v1826 = vand.u32 %v1825, 4294901760
        %1827 = vmatmul.f32.gmra.mxu0 %v1826
        %v1828 = vpop.f32.mrf.mxu0
        %v1829 = vadd.f32 %v1707, %v1828
        %v1830 = vand.u32 %v396, 4294901760
        %v1831 = vsub.f32 %v396, %v1830
        %v1832 = vand.u32 %v1831, 4294901760
        %1833 = vmatmul.f32.gmra.mxu0 %v1832
        %v1834 = vpop.f32.mrf.mxu0
        %v1835 = vadd.f32 %v1712, %v1834
        %v1836 = vand.u32 %v400, 4294901760
        %v1837 = vsub.f32 %v400, %v1836
        %v1838 = vand.u32 %v1837, 4294901760
        %1839 = vmatmul.f32.gmra.mxu0 %v1838
        %v1840 = vpop.f32.mrf.mxu0
        %v1841 = vadd.f32 %v1717, %v1840
        %v1842 = vand.u32 %v404, 4294901760
        %v1843 = vsub.f32 %v404, %v1842
        %v1844 = vand.u32 %v1843, 4294901760
        %1845 = vmatmul.f32.gmra.mxu0 %v1844
        %v1846 = vpop.f32.mrf.mxu0
        %v1847 = vadd.f32 %v1722, %v1846
        %v1848 = vand.u32 %v408, 4294901760
        %v1849 = vsub.f32 %v408, %v1848
        %v1850 = vand.u32 %v1849, 4294901760
        %1851 = vmatmul.f32.gmra.mxu0 %v1850
        %v1852 = vpop.f32.mrf.mxu0
        %v1853 = vadd.f32 %v1727, %v1852
        %v1854 = vand.u32 %v412, 4294901760
        %v1855 = vsub.f32 %v412, %v1854
        %v1856 = vand.u32 %v1855, 4294901760
        %1857 = vmatmul.f32.gmra.mxu0 %v1856
        %v1858 = vpop.f32.mrf.mxu0
        %v1859 = vadd.f32 %v1732, %v1858
        %v1860 = vand.u32 %v416, 4294901760
        %v1861 = vsub.f32 %v416, %v1860
        %v1862 = vand.u32 %v1861, 4294901760
        %1863 = vmatmul.f32.gmra.mxu0 %v1862
        %v1864 = vpop.f32.mrf.mxu0
        %v1865 = vadd.f32 %v1737, %v1864
        %v1866 = vand.u32 %v420, 4294901760
        %v1867 = vsub.f32 %v420, %v1866
        %v1868 = vand.u32 %v1867, 4294901760
        %1869 = vmatmul.f32.gmra.mxu0 %v1868
        %v1870 = vpop.f32.mrf.mxu0
        %v1871 = vadd.f32 %v1742, %v1870
        %1872 = vdwg.mxu0
        %v1873 = vand.u32 %v454, 4294901760
        %v1874 = vsub.f32 %v454, %v1873
        %v1875 = vand.u32 %v1874, 4294901760
        %1876 = vmatpush.msra.mxu0 %v1875
        %v1877 = vand.u32 %v453, 4294901760
        %v1878 = vsub.f32 %v453, %v1877
        %v1879 = vand.u32 %v1878, 4294901760
        %1880 = vmatpush.msra.mxu0 %v1879
        %v1881 = vand.u32 %v452, 4294901760
        %v1882 = vsub.f32 %v452, %v1881
        %v1883 = vand.u32 %v1882, 4294901760
        %1884 = vmatpush.msra.mxu0 %v1883
        %v1885 = vand.u32 %v451, 4294901760
        %v1886 = vsub.f32 %v451, %v1885
        %v1887 = vand.u32 %v1886, 4294901760
        %1888 = vmatpush.msra.mxu0 %v1887
        %v1889 = vand.u32 %v450, 4294901760
        %v1890 = vsub.f32 %v450, %v1889
        %v1891 = vand.u32 %v1890, 4294901760
        %1892 = vmatpush.msra.mxu0 %v1891
        %v1893 = vand.u32 %v449, 4294901760
        %v1894 = vsub.f32 %v449, %v1893
        %v1895 = vand.u32 %v1894, 4294901760
        %1896 = vmatpush.msra.mxu0 %v1895
        %v1897 = vand.u32 %v448, 4294901760
        %v1898 = vsub.f32 %v448, %v1897
        %v1899 = vand.u32 %v1898, 4294901760
        %1900 = vmatpush.msra.mxu0 %v1899
        %v1901 = vand.u32 %v447, 4294901760
        %v1902 = vsub.f32 %v447, %v1901
        %v1903 = vand.u32 %v1902, 4294901760
        %1904 = vmatpush.msra.mxu0 %v1903
        %v1905 = vand.u32 %v446, 4294901760
        %v1906 = vsub.f32 %v446, %v1905
        %v1907 = vand.u32 %v1906, 4294901760
        %1908 = vmatpush.msra.mxu0 %v1907
        %v1909 = vand.u32 %v445, 4294901760
        %v1910 = vsub.f32 %v445, %v1909
        %v1911 = vand.u32 %v1910, 4294901760
        %1912 = vmatpush.msra.mxu0 %v1911
        %v1913 = vand.u32 %v444, 4294901760
        %v1914 = vsub.f32 %v444, %v1913
        %v1915 = vand.u32 %v1914, 4294901760
        %1916 = vmatpush.msra.mxu0 %v1915
        %v1917 = vand.u32 %v443, 4294901760
        %v1918 = vsub.f32 %v443, %v1917
        %v1919 = vand.u32 %v1918, 4294901760
        %1920 = vmatpush.msra.mxu0 %v1919
        %v1921 = vand.u32 %v442, 4294901760
        %v1922 = vsub.f32 %v442, %v1921
        %v1923 = vand.u32 %v1922, 4294901760
        %1924 = vmatpush.msra.mxu0 %v1923
        %v1925 = vand.u32 %v441, 4294901760
        %v1926 = vsub.f32 %v441, %v1925
        %v1927 = vand.u32 %v1926, 4294901760
        %1928 = vmatpush.msra.mxu0 %v1927
        %v1929 = vand.u32 %v440, 4294901760
        %v1930 = vsub.f32 %v440, %v1929
        %v1931 = vand.u32 %v1930, 4294901760
        %1932 = vmatpush.msra.mxu0 %v1931
        %v1933 = vand.u32 %v439, 4294901760
        %v1934 = vsub.f32 %v439, %v1933
        %v1935 = vand.u32 %v1934, 4294901760
        %1936 = vmatpush.msra.mxu0 %v1935
        %v1937 = vand.u32 %v360, 4294901760
        %1938 = vmatmul.f32.gmra.mxu0 %v1937
        %v1939 = vpop.f32.mrf.mxu0
        %v1940 = vadd.f32 %v1781, %v1939
        %v1941 = vand.u32 %v364, 4294901760
        %1942 = vmatmul.f32.gmra.mxu0 %v1941
        %v1943 = vpop.f32.mrf.mxu0
        %v1944 = vadd.f32 %v1787, %v1943
        %v1945 = vand.u32 %v368, 4294901760
        %1946 = vmatmul.f32.gmra.mxu0 %v1945
        %v1947 = vpop.f32.mrf.mxu0
        %v1948 = vadd.f32 %v1793, %v1947
        %v1949 = vand.u32 %v372, 4294901760
        %1950 = vmatmul.f32.gmra.mxu0 %v1949
        %v1951 = vpop.f32.mrf.mxu0
        %v1952 = vadd.f32 %v1799, %v1951
        %v1953 = vand.u32 %v376, 4294901760
        %1954 = vmatmul.f32.gmra.mxu0 %v1953
        %v1955 = vpop.f32.mrf.mxu0
        %v1956 = vadd.f32 %v1805, %v1955
        %v1957 = vand.u32 %v380, 4294901760
        %1958 = vmatmul.f32.gmra.mxu0 %v1957
        %v1959 = vpop.f32.mrf.mxu0
        %v1960 = vadd.f32 %v1811, %v1959
        %v1961 = vand.u32 %v384, 4294901760
        %1962 = vmatmul.f32.gmra.mxu0 %v1961
        %v1963 = vpop.f32.mrf.mxu0
        %v1964 = vadd.f32 %v1817, %v1963
        %v1965 = vand.u32 %v388, 4294901760
        %1966 = vmatmul.f32.gmra.mxu0 %v1965
        %v1967 = vpop.f32.mrf.mxu0
        %v1968 = vadd.f32 %v1823, %v1967
        %v1969 = vand.u32 %v392, 4294901760
        %1970 = vmatmul.f32.gmra.mxu0 %v1969
        %v1971 = vpop.f32.mrf.mxu0
        %v1972 = vadd.f32 %v1829, %v1971
        %v1973 = vand.u32 %v396, 4294901760
        %1974 = vmatmul.f32.gmra.mxu0 %v1973
        %v1975 = vpop.f32.mrf.mxu0
        %v1976 = vadd.f32 %v1835, %v1975
        %v1977 = vand.u32 %v400, 4294901760
        %1978 = vmatmul.f32.gmra.mxu0 %v1977
        %v1979 = vpop.f32.mrf.mxu0
        %v1980 = vadd.f32 %v1841, %v1979
        %v1981 = vand.u32 %v404, 4294901760
        %1982 = vmatmul.f32.gmra.mxu0 %v1981
        %v1983 = vpop.f32.mrf.mxu0
        %v1984 = vadd.f32 %v1847, %v1983
        %v1985 = vand.u32 %v408, 4294901760
        %1986 = vmatmul.f32.gmra.mxu0 %v1985
        %v1987 = vpop.f32.mrf.mxu0
        %v1988 = vadd.f32 %v1853, %v1987
        %v1989 = vand.u32 %v412, 4294901760
        %1990 = vmatmul.f32.gmra.mxu0 %v1989
        %v1991 = vpop.f32.mrf.mxu0
        %v1992 = vadd.f32 %v1859, %v1991
        %v1993 = vand.u32 %v416, 4294901760
        %1994 = vmatmul.f32.gmra.mxu0 %v1993
        %v1995 = vpop.f32.mrf.mxu0
        %v1996 = vadd.f32 %v1865, %v1995
        %v1997 = vand.u32 %v420, 4294901760
        %1998 = vmatmul.f32.gmra.mxu0 %v1997
        %v1999 = vpop.f32.mrf.mxu0
        %v2000 = vadd.f32 %v1871, %v1999
        %2001 = vdwg.mxu0
        %v2002 = vand.u32 %v454, 4294901760
        %2003 = vmatpush.msra.mxu0 %v2002
        %v2004 = vand.u32 %v453, 4294901760
        %2005 = vmatpush.msra.mxu0 %v2004
        %v2006 = vand.u32 %v452, 4294901760
        %2007 = vmatpush.msra.mxu0 %v2006
        %v2008 = vand.u32 %v451, 4294901760
        %2009 = vmatpush.msra.mxu0 %v2008
        %v2010 = vand.u32 %v450, 4294901760
        %2011 = vmatpush.msra.mxu0 %v2010
        %v2012 = vand.u32 %v449, 4294901760
        %2013 = vmatpush.msra.mxu0 %v2012
        %v2014 = vand.u32 %v448, 4294901760
        %2015 = vmatpush.msra.mxu0 %v2014
        %v2016 = vand.u32 %v447, 4294901760
        %2017 = vmatpush.msra.mxu0 %v2016
        %v2018 = vand.u32 %v446, 4294901760
        %2019 = vmatpush.msra.mxu0 %v2018
        %v2020 = vand.u32 %v445, 4294901760
        %2021 = vmatpush.msra.mxu0 %v2020
        %v2022 = vand.u32 %v444, 4294901760
        %2023 = vmatpush.msra.mxu0 %v2022
        %v2024 = vand.u32 %v443, 4294901760
        %2025 = vmatpush.msra.mxu0 %v2024
        %v2026 = vand.u32 %v442, 4294901760
        %2027 = vmatpush.msra.mxu0 %v2026
        %v2028 = vand.u32 %v441, 4294901760
        %2029 = vmatpush.msra.mxu0 %v2028
        %v2030 = vand.u32 %v440, 4294901760
        %2031 = vmatpush.msra.mxu0 %v2030
        %v2032 = vand.u32 %v439, 4294901760
        %2033 = vmatpush.msra.mxu0 %v2032
        %v2034 = vand.u32 %v360, 4294901760
        %2035 = vmatmul.f32.gmra.mxu0 %v2034
        %v2036 = vpop.f32.mrf.mxu0
        %v2037 = vadd.f32 %v1940, %v2036
        %v2038 = vand.u32 %v364, 4294901760
        %2039 = vmatmul.f32.gmra.mxu0 %v2038
        %v2040 = vpop.f32.mrf.mxu0
        %v2041 = vadd.f32 %v1944, %v2040
        %v2042 = vand.u32 %v368, 4294901760
        %2043 = vmatmul.f32.gmra.mxu0 %v2042
        %v2044 = vpop.f32.mrf.mxu0
        %v2045 = vadd.f32 %v1948, %v2044
        %v2046 = vand.u32 %v372, 4294901760
        %2047 = vmatmul.f32.gmra.mxu0 %v2046
        %v2048 = vpop.f32.mrf.mxu0
        %v2049 = vadd.f32 %v1952, %v2048
        %v2050 = vand.u32 %v376, 4294901760
        %2051 = vmatmul.f32.gmra.mxu0 %v2050
        %v2052 = vpop.f32.mrf.mxu0
        %v2053 = vadd.f32 %v1956, %v2052
        %v2054 = vand.u32 %v380, 4294901760
        %2055 = vmatmul.f32.gmra.mxu0 %v2054
        %v2056 = vpop.f32.mrf.mxu0
        %v2057 = vadd.f32 %v1960, %v2056
        %v2058 = vand.u32 %v384, 4294901760
        %2059 = vmatmul.f32.gmra.mxu0 %v2058
        %v2060 = vpop.f32.mrf.mxu0
        %v2061 = vadd.f32 %v1964, %v2060
        %v2062 = vand.u32 %v388, 4294901760
        %2063 = vmatmul.f32.gmra.mxu0 %v2062
        %v2064 = vpop.f32.mrf.mxu0
        %v2065 = vadd.f32 %v1968, %v2064
        %v2066 = vand.u32 %v392, 4294901760
        %2067 = vmatmul.f32.gmra.mxu0 %v2066
        %v2068 = vpop.f32.mrf.mxu0
        %v2069 = vadd.f32 %v1972, %v2068
        %v2070 = vand.u32 %v396, 4294901760
        %2071 = vmatmul.f32.gmra.mxu0 %v2070
        %v2072 = vpop.f32.mrf.mxu0
        %v2073 = vadd.f32 %v1976, %v2072
        %v2074 = vand.u32 %v400, 4294901760
        %2075 = vmatmul.f32.gmra.mxu0 %v2074
        %v2076 = vpop.f32.mrf.mxu0
        %v2077 = vadd.f32 %v1980, %v2076
        %v2078 = vand.u32 %v404, 4294901760
        %2079 = vmatmul.f32.gmra.mxu0 %v2078
        %v2080 = vpop.f32.mrf.mxu0
        %v2081 = vadd.f32 %v1984, %v2080
        %v2082 = vand.u32 %v408, 4294901760
        %2083 = vmatmul.f32.gmra.mxu0 %v2082
        %v2084 = vpop.f32.mrf.mxu0
        %v2085 = vadd.f32 %v1988, %v2084
        %v2086 = vand.u32 %v412, 4294901760
        %2087 = vmatmul.f32.gmra.mxu0 %v2086
        %v2088 = vpop.f32.mrf.mxu0
        %v2089 = vadd.f32 %v1992, %v2088
        %v2090 = vand.u32 %v416, 4294901760
        %2091 = vmatmul.f32.gmra.mxu0 %v2090
        %v2092 = vpop.f32.mrf.mxu0
        %v2093 = vadd.f32 %v1996, %v2092
        %v2094 = vand.u32 %v420, 4294901760
        %2095 = vmatmul.f32.gmra.mxu0 %v2094
        %v2096 = vpop.f32.mrf.mxu0
        %v2097 = vadd.f32 %v2000, %v2096
        %2098 = vdwg.mxu0
        %v2099 = vand.u32 %v470, 4294901760
        %2100 = vmatpush.msra.mxu0 %v2099
        %v2101 = vand.u32 %v469, 4294901760
        %2102 = vmatpush.msra.mxu0 %v2101
        %v2103 = vand.u32 %v468, 4294901760
        %2104 = vmatpush.msra.mxu0 %v2103
        %v2105 = vand.u32 %v467, 4294901760
        %2106 = vmatpush.msra.mxu0 %v2105
        %v2107 = vand.u32 %v466, 4294901760
        %2108 = vmatpush.msra.mxu0 %v2107
        %v2109 = vand.u32 %v465, 4294901760
        %2110 = vmatpush.msra.mxu0 %v2109
        %v2111 = vand.u32 %v464, 4294901760
        %2112 = vmatpush.msra.mxu0 %v2111
        %v2113 = vand.u32 %v463, 4294901760
        %2114 = vmatpush.msra.mxu0 %v2113
        %v2115 = vand.u32 %v462, 4294901760
        %2116 = vmatpush.msra.mxu0 %v2115
        %v2117 = vand.u32 %v461, 4294901760
        %2118 = vmatpush.msra.mxu0 %v2117
        %v2119 = vand.u32 %v460, 4294901760
        %2120 = vmatpush.msra.mxu0 %v2119
        %v2121 = vand.u32 %v459, 4294901760
        %2122 = vmatpush.msra.mxu0 %v2121
        %v2123 = vand.u32 %v458, 4294901760
        %2124 = vmatpush.msra.mxu0 %v2123
        %v2125 = vand.u32 %v457, 4294901760
        %2126 = vmatpush.msra.mxu0 %v2125
        %v2127 = vand.u32 %v456, 4294901760
        %2128 = vmatpush.msra.mxu0 %v2127
        %v2129 = vand.u32 %v455, 4294901760
        %2130 = vmatpush.msra.mxu0 %v2129
        %v2131 = vand.u32 %v361, 4294901760
        %v2132 = vsub.f32 %v361, %v2131
        %v2133 = vand.u32 %v2132, 4294901760
        %v2134 = vsub.f32 %v2132, %v2133
        %v2135 = vand.u32 %v2134, 4294901760
        %2136 = vmatmul.f32.gmra.mxu0 %v2135
        %v2137 = vpop.f32.mrf.mxu0
        %v2138 = vadd.f32 %v2037, %v2137
        %v2139 = vand.u32 %v365, 4294901760
        %v2140 = vsub.f32 %v365, %v2139
        %v2141 = vand.u32 %v2140, 4294901760
        %v2142 = vsub.f32 %v2140, %v2141
        %v2143 = vand.u32 %v2142, 4294901760
        %2144 = vmatmul.f32.gmra.mxu0 %v2143
        %v2145 = vpop.f32.mrf.mxu0
        %v2146 = vadd.f32 %v2041, %v2145
        %v2147 = vand.u32 %v369, 4294901760
        %v2148 = vsub.f32 %v369, %v2147
        %v2149 = vand.u32 %v2148, 4294901760
        %v2150 = vsub.f32 %v2148, %v2149
        %v2151 = vand.u32 %v2150, 4294901760
        %2152 = vmatmul.f32.gmra.mxu0 %v2151
        %v2153 = vpop.f32.mrf.mxu0
        %v2154 = vadd.f32 %v2045, %v2153
        %v2155 = vand.u32 %v373, 4294901760
        %v2156 = vsub.f32 %v373, %v2155
        %v2157 = vand.u32 %v2156, 4294901760
        %v2158 = vsub.f32 %v2156, %v2157
        %v2159 = vand.u32 %v2158, 4294901760
        %2160 = vmatmul.f32.gmra.mxu0 %v2159
        %v2161 = vpop.f32.mrf.mxu0
        %v2162 = vadd.f32 %v2049, %v2161
        %v2163 = vand.u32 %v377, 4294901760
        %v2164 = vsub.f32 %v377, %v2163
        %v2165 = vand.u32 %v2164, 4294901760
        %v2166 = vsub.f32 %v2164, %v2165
        %v2167 = vand.u32 %v2166, 4294901760
        %2168 = vmatmul.f32.gmra.mxu0 %v2167
        %v2169 = vpop.f32.mrf.mxu0
        %v2170 = vadd.f32 %v2053, %v2169
        %v2171 = vand.u32 %v381, 4294901760
        %v2172 = vsub.f32 %v381, %v2171
        %v2173 = vand.u32 %v2172, 4294901760
        %v2174 = vsub.f32 %v2172, %v2173
        %v2175 = vand.u32 %v2174, 4294901760
        %2176 = vmatmul.f32.gmra.mxu0 %v2175
        %v2177 = vpop.f32.mrf.mxu0
        %v2178 = vadd.f32 %v2057, %v2177
        %v2179 = vand.u32 %v385, 4294901760
        %v2180 = vsub.f32 %v385, %v2179
        %v2181 = vand.u32 %v2180, 4294901760
        %v2182 = vsub.f32 %v2180, %v2181
        %v2183 = vand.u32 %v2182, 4294901760
        %2184 = vmatmul.f32.gmra.mxu0 %v2183
        %v2185 = vpop.f32.mrf.mxu0
        %v2186 = vadd.f32 %v2061, %v2185
        %v2187 = vand.u32 %v389, 4294901760
        %v2188 = vsub.f32 %v389, %v2187
        %v2189 = vand.u32 %v2188, 4294901760
        %v2190 = vsub.f32 %v2188, %v2189
        %v2191 = vand.u32 %v2190, 4294901760
        %2192 = vmatmul.f32.gmra.mxu0 %v2191
        %v2193 = vpop.f32.mrf.mxu0
        %v2194 = vadd.f32 %v2065, %v2193
        %v2195 = vand.u32 %v393, 4294901760
        %v2196 = vsub.f32 %v393, %v2195
        %v2197 = vand.u32 %v2196, 4294901760
        %v2198 = vsub.f32 %v2196, %v2197
        %v2199 = vand.u32 %v2198, 4294901760
        %2200 = vmatmul.f32.gmra.mxu0 %v2199
        %v2201 = vpop.f32.mrf.mxu0
        %v2202 = vadd.f32 %v2069, %v2201
        %v2203 = vand.u32 %v397, 4294901760
        %v2204 = vsub.f32 %v397, %v2203
        %v2205 = vand.u32 %v2204, 4294901760
        %v2206 = vsub.f32 %v2204, %v2205
        %v2207 = vand.u32 %v2206, 4294901760
        %2208 = vmatmul.f32.gmra.mxu0 %v2207
        %v2209 = vpop.f32.mrf.mxu0
        %v2210 = vadd.f32 %v2073, %v2209
        %v2211 = vand.u32 %v401, 4294901760
        %v2212 = vsub.f32 %v401, %v2211
        %v2213 = vand.u32 %v2212, 4294901760
        %v2214 = vsub.f32 %v2212, %v2213
        %v2215 = vand.u32 %v2214, 4294901760
        %2216 = vmatmul.f32.gmra.mxu0 %v2215
        %v2217 = vpop.f32.mrf.mxu0
        %v2218 = vadd.f32 %v2077, %v2217
        %v2219 = vand.u32 %v405, 4294901760
        %v2220 = vsub.f32 %v405, %v2219
        %v2221 = vand.u32 %v2220, 4294901760
        %v2222 = vsub.f32 %v2220, %v2221
        %v2223 = vand.u32 %v2222, 4294901760
        %2224 = vmatmul.f32.gmra.mxu0 %v2223
        %v2225 = vpop.f32.mrf.mxu0
        %v2226 = vadd.f32 %v2081, %v2225
        %v2227 = vand.u32 %v409, 4294901760
        %v2228 = vsub.f32 %v409, %v2227
        %v2229 = vand.u32 %v2228, 4294901760
        %v2230 = vsub.f32 %v2228, %v2229
        %v2231 = vand.u32 %v2230, 4294901760
        %2232 = vmatmul.f32.gmra.mxu0 %v2231
        %v2233 = vpop.f32.mrf.mxu0
        %v2234 = vadd.f32 %v2085, %v2233
        %v2235 = vand.u32 %v413, 4294901760
        %v2236 = vsub.f32 %v413, %v2235
        %v2237 = vand.u32 %v2236, 4294901760
        %v2238 = vsub.f32 %v2236, %v2237
        %v2239 = vand.u32 %v2238, 4294901760
        %2240 = vmatmul.f32.gmra.mxu0 %v2239
        %v2241 = vpop.f32.mrf.mxu0
        %v2242 = vadd.f32 %v2089, %v2241
        %v2243 = vand.u32 %v417, 4294901760
        %v2244 = vsub.f32 %v417, %v2243
        %v2245 = vand.u32 %v2244, 4294901760
        %v2246 = vsub.f32 %v2244, %v2245
        %v2247 = vand.u32 %v2246, 4294901760
        %2248 = vmatmul.f32.gmra.mxu0 %v2247
        %v2249 = vpop.f32.mrf.mxu0
        %v2250 = vadd.f32 %v2093, %v2249
        %v2251 = vand.u32 %v421, 4294901760
        %v2252 = vsub.f32 %v421, %v2251
        %v2253 = vand.u32 %v2252, 4294901760
        %v2254 = vsub.f32 %v2252, %v2253
        %v2255 = vand.u32 %v2254, 4294901760
        %2256 = vmatmul.f32.gmra.mxu0 %v2255
        %v2257 = vpop.f32.mrf.mxu0
        %v2258 = vadd.f32 %v2097, %v2257
        %2259 = vdwg.mxu0
        %v2260 = vand.u32 %v470, 4294901760
        %v2261 = vsub.f32 %v470, %v2260
        %v2262 = vand.u32 %v2261, 4294901760
        %v2263 = vsub.f32 %v2261, %v2262
        %v2264 = vand.u32 %v2263, 4294901760
        %2265 = vmatpush.msra.mxu0 %v2264
        %v2266 = vand.u32 %v469, 4294901760
        %v2267 = vsub.f32 %v469, %v2266
        %v2268 = vand.u32 %v2267, 4294901760
        %v2269 = vsub.f32 %v2267, %v2268
        %v2270 = vand.u32 %v2269, 4294901760
        %2271 = vmatpush.msra.mxu0 %v2270
        %v2272 = vand.u32 %v468, 4294901760
        %v2273 = vsub.f32 %v468, %v2272
        %v2274 = vand.u32 %v2273, 4294901760
        %v2275 = vsub.f32 %v2273, %v2274
        %v2276 = vand.u32 %v2275, 4294901760
        %2277 = vmatpush.msra.mxu0 %v2276
        %v2278 = vand.u32 %v467, 4294901760
        %v2279 = vsub.f32 %v467, %v2278
        %v2280 = vand.u32 %v2279, 4294901760
        %v2281 = vsub.f32 %v2279, %v2280
        %v2282 = vand.u32 %v2281, 4294901760
        %2283 = vmatpush.msra.mxu0 %v2282
        %v2284 = vand.u32 %v466, 4294901760
        %v2285 = vsub.f32 %v466, %v2284
        %v2286 = vand.u32 %v2285, 4294901760
        %v2287 = vsub.f32 %v2285, %v2286
        %v2288 = vand.u32 %v2287, 4294901760
        %2289 = vmatpush.msra.mxu0 %v2288
        %v2290 = vand.u32 %v465, 4294901760
        %v2291 = vsub.f32 %v465, %v2290
        %v2292 = vand.u32 %v2291, 4294901760
        %v2293 = vsub.f32 %v2291, %v2292
        %v2294 = vand.u32 %v2293, 4294901760
        %2295 = vmatpush.msra.mxu0 %v2294
        %v2296 = vand.u32 %v464, 4294901760
        %v2297 = vsub.f32 %v464, %v2296
        %v2298 = vand.u32 %v2297, 4294901760
        %v2299 = vsub.f32 %v2297, %v2298
        %v2300 = vand.u32 %v2299, 4294901760
        %2301 = vmatpush.msra.mxu0 %v2300
        %v2302 = vand.u32 %v463, 4294901760
        %v2303 = vsub.f32 %v463, %v2302
        %v2304 = vand.u32 %v2303, 4294901760
        %v2305 = vsub.f32 %v2303, %v2304
        %v2306 = vand.u32 %v2305, 4294901760
        %2307 = vmatpush.msra.mxu0 %v2306
        %v2308 = vand.u32 %v462, 4294901760
        %v2309 = vsub.f32 %v462, %v2308
        %v2310 = vand.u32 %v2309, 4294901760
        %v2311 = vsub.f32 %v2309, %v2310
        %v2312 = vand.u32 %v2311, 4294901760
        %2313 = vmatpush.msra.mxu0 %v2312
        %v2314 = vand.u32 %v461, 4294901760
        %v2315 = vsub.f32 %v461, %v2314
        %v2316 = vand.u32 %v2315, 4294901760
        %v2317 = vsub.f32 %v2315, %v2316
        %v2318 = vand.u32 %v2317, 4294901760
        %2319 = vmatpush.msra.mxu0 %v2318
        %v2320 = vand.u32 %v460, 4294901760
        %v2321 = vsub.f32 %v460, %v2320
        %v2322 = vand.u32 %v2321, 4294901760
        %v2323 = vsub.f32 %v2321, %v2322
        %v2324 = vand.u32 %v2323, 4294901760
        %2325 = vmatpush.msra.mxu0 %v2324
        %v2326 = vand.u32 %v459, 4294901760
        %v2327 = vsub.f32 %v459, %v2326
        %v2328 = vand.u32 %v2327, 4294901760
        %v2329 = vsub.f32 %v2327, %v2328
        %v2330 = vand.u32 %v2329, 4294901760
        %2331 = vmatpush.msra.mxu0 %v2330
        %v2332 = vand.u32 %v458, 4294901760
        %v2333 = vsub.f32 %v458, %v2332
        %v2334 = vand.u32 %v2333, 4294901760
        %v2335 = vsub.f32 %v2333, %v2334
        %v2336 = vand.u32 %v2335, 4294901760
        %2337 = vmatpush.msra.mxu0 %v2336
        %v2338 = vand.u32 %v457, 4294901760
        %v2339 = vsub.f32 %v457, %v2338
        %v2340 = vand.u32 %v2339, 4294901760
        %v2341 = vsub.f32 %v2339, %v2340
        %v2342 = vand.u32 %v2341, 4294901760
        %2343 = vmatpush.msra.mxu0 %v2342
        %v2344 = vand.u32 %v456, 4294901760
        %v2345 = vsub.f32 %v456, %v2344
        %v2346 = vand.u32 %v2345, 4294901760
        %v2347 = vsub.f32 %v2345, %v2346
        %v2348 = vand.u32 %v2347, 4294901760
        %2349 = vmatpush.msra.mxu0 %v2348
        %v2350 = vand.u32 %v455, 4294901760
        %v2351 = vsub.f32 %v455, %v2350
        %v2352 = vand.u32 %v2351, 4294901760
        %v2353 = vsub.f32 %v2351, %v2352
        %v2354 = vand.u32 %v2353, 4294901760
        %2355 = vmatpush.msra.mxu0 %v2354
        %v2356 = vand.u32 %v361, 4294901760
        %2357 = vmatmul.f32.gmra.mxu0 %v2356
        %v2358 = vpop.f32.mrf.mxu0
        %v2359 = vadd.f32 %v2138, %v2358
        %v2360 = vand.u32 %v365, 4294901760
        %2361 = vmatmul.f32.gmra.mxu0 %v2360
        %v2362 = vpop.f32.mrf.mxu0
        %v2363 = vadd.f32 %v2146, %v2362
        %v2364 = vand.u32 %v369, 4294901760
        %2365 = vmatmul.f32.gmra.mxu0 %v2364
        %v2366 = vpop.f32.mrf.mxu0
        %v2367 = vadd.f32 %v2154, %v2366
        %v2368 = vand.u32 %v373, 4294901760
        %2369 = vmatmul.f32.gmra.mxu0 %v2368
        %v2370 = vpop.f32.mrf.mxu0
        %v2371 = vadd.f32 %v2162, %v2370
        %v2372 = vand.u32 %v377, 4294901760
        %2373 = vmatmul.f32.gmra.mxu0 %v2372
        %v2374 = vpop.f32.mrf.mxu0
        %v2375 = vadd.f32 %v2170, %v2374
        %v2376 = vand.u32 %v381, 4294901760
        %2377 = vmatmul.f32.gmra.mxu0 %v2376
        %v2378 = vpop.f32.mrf.mxu0
        %v2379 = vadd.f32 %v2178, %v2378
        %v2380 = vand.u32 %v385, 4294901760
        %2381 = vmatmul.f32.gmra.mxu0 %v2380
        %v2382 = vpop.f32.mrf.mxu0
        %v2383 = vadd.f32 %v2186, %v2382
        %v2384 = vand.u32 %v389, 4294901760
        %2385 = vmatmul.f32.gmra.mxu0 %v2384
        %v2386 = vpop.f32.mrf.mxu0
        %v2387 = vadd.f32 %v2194, %v2386
        %v2388 = vand.u32 %v393, 4294901760
        %2389 = vmatmul.f32.gmra.mxu0 %v2388
        %v2390 = vpop.f32.mrf.mxu0
        %v2391 = vadd.f32 %v2202, %v2390
        %v2392 = vand.u32 %v397, 4294901760
        %2393 = vmatmul.f32.gmra.mxu0 %v2392
        %v2394 = vpop.f32.mrf.mxu0
        %v2395 = vadd.f32 %v2210, %v2394
        %v2396 = vand.u32 %v401, 4294901760
        %2397 = vmatmul.f32.gmra.mxu0 %v2396
        %v2398 = vpop.f32.mrf.mxu0
        %v2399 = vadd.f32 %v2218, %v2398
        %v2400 = vand.u32 %v405, 4294901760
        %2401 = vmatmul.f32.gmra.mxu0 %v2400
        %v2402 = vpop.f32.mrf.mxu0
        %v2403 = vadd.f32 %v2226, %v2402
        %v2404 = vand.u32 %v409, 4294901760
        %2405 = vmatmul.f32.gmra.mxu0 %v2404
        %v2406 = vpop.f32.mrf.mxu0
        %v2407 = vadd.f32 %v2234, %v2406
        %v2408 = vand.u32 %v413, 4294901760
        %2409 = vmatmul.f32.gmra.mxu0 %v2408
        %v2410 = vpop.f32.mrf.mxu0
        %v2411 = vadd.f32 %v2242, %v2410
        %v2412 = vand.u32 %v417, 4294901760
        %2413 = vmatmul.f32.gmra.mxu0 %v2412
        %v2414 = vpop.f32.mrf.mxu0
        %v2415 = vadd.f32 %v2250, %v2414
        %v2416 = vand.u32 %v421, 4294901760
        %2417 = vmatmul.f32.gmra.mxu0 %v2416
        %v2418 = vpop.f32.mrf.mxu0
        %v2419 = vadd.f32 %v2258, %v2418
        %2420 = vdwg.mxu0
        %v2421 = vand.u32 %v470, 4294901760
        %v2422 = vsub.f32 %v470, %v2421
        %2423 = vmatpush.msra.mxu0 %v2422
        %v2424 = vand.u32 %v469, 4294901760
        %v2425 = vsub.f32 %v469, %v2424
        %2426 = vmatpush.msra.mxu0 %v2425
        %v2427 = vand.u32 %v468, 4294901760
        %v2428 = vsub.f32 %v468, %v2427
        %2429 = vmatpush.msra.mxu0 %v2428
        %v2430 = vand.u32 %v467, 4294901760
        %v2431 = vsub.f32 %v467, %v2430
        %2432 = vmatpush.msra.mxu0 %v2431
        %v2433 = vand.u32 %v466, 4294901760
        %v2434 = vsub.f32 %v466, %v2433
        %2435 = vmatpush.msra.mxu0 %v2434
        %v2436 = vand.u32 %v465, 4294901760
        %v2437 = vsub.f32 %v465, %v2436
        %2438 = vmatpush.msra.mxu0 %v2437
        %v2439 = vand.u32 %v464, 4294901760
        %v2440 = vsub.f32 %v464, %v2439
        %2441 = vmatpush.msra.mxu0 %v2440
        %v2442 = vand.u32 %v463, 4294901760
        %v2443 = vsub.f32 %v463, %v2442
        %2444 = vmatpush.msra.mxu0 %v2443
        %v2445 = vand.u32 %v462, 4294901760
        %v2446 = vsub.f32 %v462, %v2445
        %2447 = vmatpush.msra.mxu0 %v2446
        %v2448 = vand.u32 %v461, 4294901760
        %v2449 = vsub.f32 %v461, %v2448
        %2450 = vmatpush.msra.mxu0 %v2449
        %v2451 = vand.u32 %v460, 4294901760
        %v2452 = vsub.f32 %v460, %v2451
        %2453 = vmatpush.msra.mxu0 %v2452
        %v2454 = vand.u32 %v459, 4294901760
        %v2455 = vsub.f32 %v459, %v2454
        %2456 = vmatpush.msra.mxu0 %v2455
        %v2457 = vand.u32 %v458, 4294901760
        %v2458 = vsub.f32 %v458, %v2457
        %2459 = vmatpush.msra.mxu0 %v2458
        %v2460 = vand.u32 %v457, 4294901760
        %v2461 = vsub.f32 %v457, %v2460
        %2462 = vmatpush.msra.mxu0 %v2461
        %v2463 = vand.u32 %v456, 4294901760
        %v2464 = vsub.f32 %v456, %v2463
        %2465 = vmatpush.msra.mxu0 %v2464
        %v2466 = vand.u32 %v455, 4294901760
        %v2467 = vsub.f32 %v455, %v2466
        %2468 = vmatpush.msra.mxu0 %v2467
        %v2469 = vand.u32 %v361, 4294901760
        %v2470 = vsub.f32 %v361, %v2469
        %2471 = vmatmul.f32.gmra.mxu0 %v2470
        %v2472 = vpop.f32.mrf.mxu0
        %v2473 = vadd.f32 %v2359, %v2472
        %v2474 = vand.u32 %v365, 4294901760
        %v2475 = vsub.f32 %v365, %v2474
        %2476 = vmatmul.f32.gmra.mxu0 %v2475
        %v2477 = vpop.f32.mrf.mxu0
        %v2478 = vadd.f32 %v2363, %v2477
        %v2479 = vand.u32 %v369, 4294901760
        %v2480 = vsub.f32 %v369, %v2479
        %2481 = vmatmul.f32.gmra.mxu0 %v2480
        %v2482 = vpop.f32.mrf.mxu0
        %v2483 = vadd.f32 %v2367, %v2482
        %v2484 = vand.u32 %v373, 4294901760
        %v2485 = vsub.f32 %v373, %v2484
        %2486 = vmatmul.f32.gmra.mxu0 %v2485
        %v2487 = vpop.f32.mrf.mxu0
        %v2488 = vadd.f32 %v2371, %v2487
        %v2489 = vand.u32 %v377, 4294901760
        %v2490 = vsub.f32 %v377, %v2489
        %2491 = vmatmul.f32.gmra.mxu0 %v2490
        %v2492 = vpop.f32.mrf.mxu0
        %v2493 = vadd.f32 %v2375, %v2492
        %v2494 = vand.u32 %v381, 4294901760
        %v2495 = vsub.f32 %v381, %v2494
        %2496 = vmatmul.f32.gmra.mxu0 %v2495
        %v2497 = vpop.f32.mrf.mxu0
        %v2498 = vadd.f32 %v2379, %v2497
        %v2499 = vand.u32 %v385, 4294901760
        %v2500 = vsub.f32 %v385, %v2499
        %2501 = vmatmul.f32.gmra.mxu0 %v2500
        %v2502 = vpop.f32.mrf.mxu0
        %v2503 = vadd.f32 %v2383, %v2502
        %v2504 = vand.u32 %v389, 4294901760
        %v2505 = vsub.f32 %v389, %v2504
        %2506 = vmatmul.f32.gmra.mxu0 %v2505
        %v2507 = vpop.f32.mrf.mxu0
        %v2508 = vadd.f32 %v2387, %v2507
        %v2509 = vand.u32 %v393, 4294901760
        %v2510 = vsub.f32 %v393, %v2509
        %2511 = vmatmul.f32.gmra.mxu0 %v2510
        %v2512 = vpop.f32.mrf.mxu0
        %v2513 = vadd.f32 %v2391, %v2512
        %v2514 = vand.u32 %v397, 4294901760
        %v2515 = vsub.f32 %v397, %v2514
        %2516 = vmatmul.f32.gmra.mxu0 %v2515
        %v2517 = vpop.f32.mrf.mxu0
        %v2518 = vadd.f32 %v2395, %v2517
        %v2519 = vand.u32 %v401, 4294901760
        %v2520 = vsub.f32 %v401, %v2519
        %2521 = vmatmul.f32.gmra.mxu0 %v2520
        %v2522 = vpop.f32.mrf.mxu0
        %v2523 = vadd.f32 %v2399, %v2522
        %v2524 = vand.u32 %v405, 4294901760
        %v2525 = vsub.f32 %v405, %v2524
        %2526 = vmatmul.f32.gmra.mxu0 %v2525
        %v2527 = vpop.f32.mrf.mxu0
        %v2528 = vadd.f32 %v2403, %v2527
        %v2529 = vand.u32 %v409, 4294901760
        %v2530 = vsub.f32 %v409, %v2529
        %2531 = vmatmul.f32.gmra.mxu0 %v2530
        %v2532 = vpop.f32.mrf.mxu0
        %v2533 = vadd.f32 %v2407, %v2532
        %v2534 = vand.u32 %v413, 4294901760
        %v2535 = vsub.f32 %v413, %v2534
        %2536 = vmatmul.f32.gmra.mxu0 %v2535
        %v2537 = vpop.f32.mrf.mxu0
        %v2538 = vadd.f32 %v2411, %v2537
        %v2539 = vand.u32 %v417, 4294901760
        %v2540 = vsub.f32 %v417, %v2539
        %2541 = vmatmul.f32.gmra.mxu0 %v2540
        %v2542 = vpop.f32.mrf.mxu0
        %v2543 = vadd.f32 %v2415, %v2542
        %v2544 = vand.u32 %v421, 4294901760
        %v2545 = vsub.f32 %v421, %v2544
        %2546 = vmatmul.f32.gmra.mxu0 %v2545
        %v2547 = vpop.f32.mrf.mxu0
        %v2548 = vadd.f32 %v2419, %v2547
        %2549 = vdwg.mxu0
        %v2550 = vand.u32 %v470, 4294901760
        %2551 = vmatpush.msra.mxu0 %v2550
        %v2552 = vand.u32 %v469, 4294901760
        %2553 = vmatpush.msra.mxu0 %v2552
        %v2554 = vand.u32 %v468, 4294901760
        %2555 = vmatpush.msra.mxu0 %v2554
        %v2556 = vand.u32 %v467, 4294901760
        %2557 = vmatpush.msra.mxu0 %v2556
        %v2558 = vand.u32 %v466, 4294901760
        %2559 = vmatpush.msra.mxu0 %v2558
        %v2560 = vand.u32 %v465, 4294901760
        %2561 = vmatpush.msra.mxu0 %v2560
        %v2562 = vand.u32 %v464, 4294901760
        %2563 = vmatpush.msra.mxu0 %v2562
        %v2564 = vand.u32 %v463, 4294901760
        %2565 = vmatpush.msra.mxu0 %v2564
        %v2566 = vand.u32 %v462, 4294901760
        %2567 = vmatpush.msra.mxu0 %v2566
        %v2568 = vand.u32 %v461, 4294901760
        %2569 = vmatpush.msra.mxu0 %v2568
        %v2570 = vand.u32 %v460, 4294901760
        %2571 = vmatpush.msra.mxu0 %v2570
        %v2572 = vand.u32 %v459, 4294901760
        %2573 = vmatpush.msra.mxu0 %v2572
        %v2574 = vand.u32 %v458, 4294901760
        %2575 = vmatpush.msra.mxu0 %v2574
        %v2576 = vand.u32 %v457, 4294901760
        %2577 = vmatpush.msra.mxu0 %v2576
        %v2578 = vand.u32 %v456, 4294901760
        %2579 = vmatpush.msra.mxu0 %v2578
        %v2580 = vand.u32 %v455, 4294901760
        %2581 = vmatpush.msra.mxu0 %v2580
        %v2582 = vand.u32 %v361, 4294901760
        %v2583 = vsub.f32 %v361, %v2582
        %v2584 = vand.u32 %v2583, 4294901760
        %2585 = vmatmul.f32.gmra.mxu0 %v2584
        %v2586 = vpop.f32.mrf.mxu0
        %v2587 = vadd.f32 %v2473, %v2586
        %v2588 = vand.u32 %v365, 4294901760
        %v2589 = vsub.f32 %v365, %v2588
        %v2590 = vand.u32 %v2589, 4294901760
        %2591 = vmatmul.f32.gmra.mxu0 %v2590
        %v2592 = vpop.f32.mrf.mxu0
        %v2593 = vadd.f32 %v2478, %v2592
        %v2594 = vand.u32 %v369, 4294901760
        %v2595 = vsub.f32 %v369, %v2594
        %v2596 = vand.u32 %v2595, 4294901760
        %2597 = vmatmul.f32.gmra.mxu0 %v2596
        %v2598 = vpop.f32.mrf.mxu0
        %v2599 = vadd.f32 %v2483, %v2598
        %v2600 = vand.u32 %v373, 4294901760
        %v2601 = vsub.f32 %v373, %v2600
        %v2602 = vand.u32 %v2601, 4294901760
        %2603 = vmatmul.f32.gmra.mxu0 %v2602
        %v2604 = vpop.f32.mrf.mxu0
        %v2605 = vadd.f32 %v2488, %v2604
        %v2606 = vand.u32 %v377, 4294901760
        %v2607 = vsub.f32 %v377, %v2606
        %v2608 = vand.u32 %v2607, 4294901760
        %2609 = vmatmul.f32.gmra.mxu0 %v2608
        %v2610 = vpop.f32.mrf.mxu0
        %v2611 = vadd.f32 %v2493, %v2610
        %v2612 = vand.u32 %v381, 4294901760
        %v2613 = vsub.f32 %v381, %v2612
        %v2614 = vand.u32 %v2613, 4294901760
        %2615 = vmatmul.f32.gmra.mxu0 %v2614
        %v2616 = vpop.f32.mrf.mxu0
        %v2617 = vadd.f32 %v2498, %v2616
        %v2618 = vand.u32 %v385, 4294901760
        %v2619 = vsub.f32 %v385, %v2618
        %v2620 = vand.u32 %v2619, 4294901760
        %2621 = vmatmul.f32.gmra.mxu0 %v2620
        %v2622 = vpop.f32.mrf.mxu0
        %v2623 = vadd.f32 %v2503, %v2622
        %v2624 = vand.u32 %v389, 4294901760
        %v2625 = vsub.f32 %v389, %v2624
        %v2626 = vand.u32 %v2625, 4294901760
        %2627 = vmatmul.f32.gmra.mxu0 %v2626
        %v2628 = vpop.f32.mrf.mxu0
        %v2629 = vadd.f32 %v2508, %v2628
        %v2630 = vand.u32 %v393, 4294901760
        %v2631 = vsub.f32 %v393, %v2630
        %v2632 = vand.u32 %v2631, 4294901760
        %2633 = vmatmul.f32.gmra.mxu0 %v2632
        %v2634 = vpop.f32.mrf.mxu0
        %v2635 = vadd.f32 %v2513, %v2634
        %v2636 = vand.u32 %v397, 4294901760
        %v2637 = vsub.f32 %v397, %v2636
        %v2638 = vand.u32 %v2637, 4294901760
        %2639 = vmatmul.f32.gmra.mxu0 %v2638
        %v2640 = vpop.f32.mrf.mxu0
        %v2641 = vadd.f32 %v2518, %v2640
        %v2642 = vand.u32 %v401, 4294901760
        %v2643 = vsub.f32 %v401, %v2642
        %v2644 = vand.u32 %v2643, 4294901760
        %2645 = vmatmul.f32.gmra.mxu0 %v2644
        %v2646 = vpop.f32.mrf.mxu0
        %v2647 = vadd.f32 %v2523, %v2646
        %v2648 = vand.u32 %v405, 4294901760
        %v2649 = vsub.f32 %v405, %v2648
        %v2650 = vand.u32 %v2649, 4294901760
        %2651 = vmatmul.f32.gmra.mxu0 %v2650
        %v2652 = vpop.f32.mrf.mxu0
        %v2653 = vadd.f32 %v2528, %v2652
        %v2654 = vand.u32 %v409, 4294901760
        %v2655 = vsub.f32 %v409, %v2654
        %v2656 = vand.u32 %v2655, 4294901760
        %2657 = vmatmul.f32.gmra.mxu0 %v2656
        %v2658 = vpop.f32.mrf.mxu0
        %v2659 = vadd.f32 %v2533, %v2658
        %v2660 = vand.u32 %v413, 4294901760
        %v2661 = vsub.f32 %v413, %v2660
        %v2662 = vand.u32 %v2661, 4294901760
        %2663 = vmatmul.f32.gmra.mxu0 %v2662
        %v2664 = vpop.f32.mrf.mxu0
        %v2665 = vadd.f32 %v2538, %v2664
        %v2666 = vand.u32 %v417, 4294901760
        %v2667 = vsub.f32 %v417, %v2666
        %v2668 = vand.u32 %v2667, 4294901760
        %2669 = vmatmul.f32.gmra.mxu0 %v2668
        %v2670 = vpop.f32.mrf.mxu0
        %v2671 = vadd.f32 %v2543, %v2670
        %v2672 = vand.u32 %v421, 4294901760
        %v2673 = vsub.f32 %v421, %v2672
        %v2674 = vand.u32 %v2673, 4294901760
        %2675 = vmatmul.f32.gmra.mxu0 %v2674
        %v2676 = vpop.f32.mrf.mxu0
        %v2677 = vadd.f32 %v2548, %v2676
        %2678 = vdwg.mxu0
        %v2679 = vand.u32 %v470, 4294901760
        %v2680 = vsub.f32 %v470, %v2679
        %v2681 = vand.u32 %v2680, 4294901760
        %2682 = vmatpush.msra.mxu0 %v2681
        %v2683 = vand.u32 %v469, 4294901760
        %v2684 = vsub.f32 %v469, %v2683
        %v2685 = vand.u32 %v2684, 4294901760
        %2686 = vmatpush.msra.mxu0 %v2685
        %v2687 = vand.u32 %v468, 4294901760
        %v2688 = vsub.f32 %v468, %v2687
        %v2689 = vand.u32 %v2688, 4294901760
        %2690 = vmatpush.msra.mxu0 %v2689
        %v2691 = vand.u32 %v467, 4294901760
        %v2692 = vsub.f32 %v467, %v2691
        %v2693 = vand.u32 %v2692, 4294901760
        %2694 = vmatpush.msra.mxu0 %v2693
        %v2695 = vand.u32 %v466, 4294901760
        %v2696 = vsub.f32 %v466, %v2695
        %v2697 = vand.u32 %v2696, 4294901760
        %2698 = vmatpush.msra.mxu0 %v2697
        %v2699 = vand.u32 %v465, 4294901760
        %v2700 = vsub.f32 %v465, %v2699
        %v2701 = vand.u32 %v2700, 4294901760
        %2702 = vmatpush.msra.mxu0 %v2701
        %v2703 = vand.u32 %v464, 4294901760
        %v2704 = vsub.f32 %v464, %v2703
        %v2705 = vand.u32 %v2704, 4294901760
        %2706 = vmatpush.msra.mxu0 %v2705
        %v2707 = vand.u32 %v463, 4294901760
        %v2708 = vsub.f32 %v463, %v2707
        %v2709 = vand.u32 %v2708, 4294901760
        %2710 = vmatpush.msra.mxu0 %v2709
        %v2711 = vand.u32 %v462, 4294901760
        %v2712 = vsub.f32 %v462, %v2711
        %v2713 = vand.u32 %v2712, 4294901760
        %2714 = vmatpush.msra.mxu0 %v2713
        %v2715 = vand.u32 %v461, 4294901760
        %v2716 = vsub.f32 %v461, %v2715
        %v2717 = vand.u32 %v2716, 4294901760
        %2718 = vmatpush.msra.mxu0 %v2717
        %v2719 = vand.u32 %v460, 4294901760
        %v2720 = vsub.f32 %v460, %v2719
        %v2721 = vand.u32 %v2720, 4294901760
        %2722 = vmatpush.msra.mxu0 %v2721
        %v2723 = vand.u32 %v459, 4294901760
        %v2724 = vsub.f32 %v459, %v2723
        %v2725 = vand.u32 %v2724, 4294901760
        %2726 = vmatpush.msra.mxu0 %v2725
        %v2727 = vand.u32 %v458, 4294901760
        %v2728 = vsub.f32 %v458, %v2727
        %v2729 = vand.u32 %v2728, 4294901760
        %2730 = vmatpush.msra.mxu0 %v2729
        %v2731 = vand.u32 %v457, 4294901760
        %v2732 = vsub.f32 %v457, %v2731
        %v2733 = vand.u32 %v2732, 4294901760
        %2734 = vmatpush.msra.mxu0 %v2733
        %v2735 = vand.u32 %v456, 4294901760
        %v2736 = vsub.f32 %v456, %v2735
        %v2737 = vand.u32 %v2736, 4294901760
        %2738 = vmatpush.msra.mxu0 %v2737
        %v2739 = vand.u32 %v455, 4294901760
        %v2740 = vsub.f32 %v455, %v2739
        %v2741 = vand.u32 %v2740, 4294901760
        %2742 = vmatpush.msra.mxu0 %v2741
        %v2743 = vand.u32 %v361, 4294901760
        %2744 = vmatmul.f32.gmra.mxu0 %v2743
        %v2745 = vpop.f32.mrf.mxu0
        %v2746 = vadd.f32 %v2587, %v2745
        %v2747 = vand.u32 %v365, 4294901760
        %2748 = vmatmul.f32.gmra.mxu0 %v2747
        %v2749 = vpop.f32.mrf.mxu0
        %v2750 = vadd.f32 %v2593, %v2749
        %v2751 = vand.u32 %v369, 4294901760
        %2752 = vmatmul.f32.gmra.mxu0 %v2751
        %v2753 = vpop.f32.mrf.mxu0
        %v2754 = vadd.f32 %v2599, %v2753
        %v2755 = vand.u32 %v373, 4294901760
        %2756 = vmatmul.f32.gmra.mxu0 %v2755
        %v2757 = vpop.f32.mrf.mxu0
        %v2758 = vadd.f32 %v2605, %v2757
        %v2759 = vand.u32 %v377, 4294901760
        %2760 = vmatmul.f32.gmra.mxu0 %v2759
        %v2761 = vpop.f32.mrf.mxu0
        %v2762 = vadd.f32 %v2611, %v2761
        %v2763 = vand.u32 %v381, 4294901760
        %2764 = vmatmul.f32.gmra.mxu0 %v2763
        %v2765 = vpop.f32.mrf.mxu0
        %v2766 = vadd.f32 %v2617, %v2765
        %v2767 = vand.u32 %v385, 4294901760
        %2768 = vmatmul.f32.gmra.mxu0 %v2767
        %v2769 = vpop.f32.mrf.mxu0
        %v2770 = vadd.f32 %v2623, %v2769
        %v2771 = vand.u32 %v389, 4294901760
        %2772 = vmatmul.f32.gmra.mxu0 %v2771
        %v2773 = vpop.f32.mrf.mxu0
        %v2774 = vadd.f32 %v2629, %v2773
        %v2775 = vand.u32 %v393, 4294901760
        %2776 = vmatmul.f32.gmra.mxu0 %v2775
        %v2777 = vpop.f32.mrf.mxu0
        %v2778 = vadd.f32 %v2635, %v2777
        %v2779 = vand.u32 %v397, 4294901760
        %2780 = vmatmul.f32.gmra.mxu0 %v2779
        %v2781 = vpop.f32.mrf.mxu0
        %v2782 = vadd.f32 %v2641, %v2781
        %v2783 = vand.u32 %v401, 4294901760
        %2784 = vmatmul.f32.gmra.mxu0 %v2783
        %v2785 = vpop.f32.mrf.mxu0
        %v2786 = vadd.f32 %v2647, %v2785
        %v2787 = vand.u32 %v405, 4294901760
        %2788 = vmatmul.f32.gmra.mxu0 %v2787
        %v2789 = vpop.f32.mrf.mxu0
        %v2790 = vadd.f32 %v2653, %v2789
        %v2791 = vand.u32 %v409, 4294901760
        %2792 = vmatmul.f32.gmra.mxu0 %v2791
        %v2793 = vpop.f32.mrf.mxu0
        %v2794 = vadd.f32 %v2659, %v2793
        %v2795 = vand.u32 %v413, 4294901760
        %2796 = vmatmul.f32.gmra.mxu0 %v2795
        %v2797 = vpop.f32.mrf.mxu0
        %v2798 = vadd.f32 %v2665, %v2797
        %v2799 = vand.u32 %v417, 4294901760
        %2800 = vmatmul.f32.gmra.mxu0 %v2799
        %v2801 = vpop.f32.mrf.mxu0
        %v2802 = vadd.f32 %v2671, %v2801
        %v2803 = vand.u32 %v421, 4294901760
        %2804 = vmatmul.f32.gmra.mxu0 %v2803
        %v2805 = vpop.f32.mrf.mxu0
        %v2806 = vadd.f32 %v2677, %v2805
        %2807 = vdwg.mxu0
        %v2808 = vand.u32 %v470, 4294901760
        %2809 = vmatpush.msra.mxu0 %v2808
        %v2810 = vand.u32 %v469, 4294901760
        %2811 = vmatpush.msra.mxu0 %v2810
        %v2812 = vand.u32 %v468, 4294901760
        %2813 = vmatpush.msra.mxu0 %v2812
        %v2814 = vand.u32 %v467, 4294901760
        %2815 = vmatpush.msra.mxu0 %v2814
        %v2816 = vand.u32 %v466, 4294901760
        %2817 = vmatpush.msra.mxu0 %v2816
        %v2818 = vand.u32 %v465, 4294901760
        %2819 = vmatpush.msra.mxu0 %v2818
        %v2820 = vand.u32 %v464, 4294901760
        %2821 = vmatpush.msra.mxu0 %v2820
        %v2822 = vand.u32 %v463, 4294901760
        %2823 = vmatpush.msra.mxu0 %v2822
        %v2824 = vand.u32 %v462, 4294901760
        %2825 = vmatpush.msra.mxu0 %v2824
        %v2826 = vand.u32 %v461, 4294901760
        %2827 = vmatpush.msra.mxu0 %v2826
        %v2828 = vand.u32 %v460, 4294901760
        %2829 = vmatpush.msra.mxu0 %v2828
        %v2830 = vand.u32 %v459, 4294901760
        %2831 = vmatpush.msra.mxu0 %v2830
        %v2832 = vand.u32 %v458, 4294901760
        %2833 = vmatpush.msra.mxu0 %v2832
        %v2834 = vand.u32 %v457, 4294901760
        %2835 = vmatpush.msra.mxu0 %v2834
        %v2836 = vand.u32 %v456, 4294901760
        %2837 = vmatpush.msra.mxu0 %v2836
        %v2838 = vand.u32 %v455, 4294901760
        %2839 = vmatpush.msra.mxu0 %v2838
        %v2840 = vand.u32 %v361, 4294901760
        %2841 = vmatmul.f32.gmra.mxu0 %v2840
        %v2842 = vpop.f32.mrf.mxu0
        %v2843 = vadd.f32 %v2746, %v2842
        %v2844 = vand.u32 %v365, 4294901760
        %2845 = vmatmul.f32.gmra.mxu0 %v2844
        %v2846 = vpop.f32.mrf.mxu0
        %v2847 = vadd.f32 %v2750, %v2846
        %v2848 = vand.u32 %v369, 4294901760
        %2849 = vmatmul.f32.gmra.mxu0 %v2848
        %v2850 = vpop.f32.mrf.mxu0
        %v2851 = vadd.f32 %v2754, %v2850
        %v2852 = vand.u32 %v373, 4294901760
        %2853 = vmatmul.f32.gmra.mxu0 %v2852
        %v2854 = vpop.f32.mrf.mxu0
        %v2855 = vadd.f32 %v2758, %v2854
        %v2856 = vand.u32 %v377, 4294901760
        %2857 = vmatmul.f32.gmra.mxu0 %v2856
        %v2858 = vpop.f32.mrf.mxu0
        %v2859 = vadd.f32 %v2762, %v2858
        %v2860 = vand.u32 %v381, 4294901760
        %2861 = vmatmul.f32.gmra.mxu0 %v2860
        %v2862 = vpop.f32.mrf.mxu0
        %v2863 = vadd.f32 %v2766, %v2862
        %v2864 = vand.u32 %v385, 4294901760
        %2865 = vmatmul.f32.gmra.mxu0 %v2864
        %v2866 = vpop.f32.mrf.mxu0
        %v2867 = vadd.f32 %v2770, %v2866
        %v2868 = vand.u32 %v389, 4294901760
        %2869 = vmatmul.f32.gmra.mxu0 %v2868
        %v2870 = vpop.f32.mrf.mxu0
        %v2871 = vadd.f32 %v2774, %v2870
        %v2872 = vand.u32 %v393, 4294901760
        %2873 = vmatmul.f32.gmra.mxu0 %v2872
        %v2874 = vpop.f32.mrf.mxu0
        %v2875 = vadd.f32 %v2778, %v2874
        %v2876 = vand.u32 %v397, 4294901760
        %2877 = vmatmul.f32.gmra.mxu0 %v2876
        %v2878 = vpop.f32.mrf.mxu0
        %v2879 = vadd.f32 %v2782, %v2878
        %v2880 = vand.u32 %v401, 4294901760
        %2881 = vmatmul.f32.gmra.mxu0 %v2880
        %v2882 = vpop.f32.mrf.mxu0
        %v2883 = vadd.f32 %v2786, %v2882
        %v2884 = vand.u32 %v405, 4294901760
        %2885 = vmatmul.f32.gmra.mxu0 %v2884
        %v2886 = vpop.f32.mrf.mxu0
        %v2887 = vadd.f32 %v2790, %v2886
        %v2888 = vand.u32 %v409, 4294901760
        %2889 = vmatmul.f32.gmra.mxu0 %v2888
        %v2890 = vpop.f32.mrf.mxu0
        %v2891 = vadd.f32 %v2794, %v2890
        %v2892 = vand.u32 %v413, 4294901760
        %2893 = vmatmul.f32.gmra.mxu0 %v2892
        %v2894 = vpop.f32.mrf.mxu0
        %v2895 = vadd.f32 %v2798, %v2894
        %v2896 = vand.u32 %v417, 4294901760
        %2897 = vmatmul.f32.gmra.mxu0 %v2896
        %v2898 = vpop.f32.mrf.mxu0
        %v2899 = vadd.f32 %v2802, %v2898
        %v2900 = vand.u32 %v421, 4294901760
        %2901 = vmatmul.f32.gmra.mxu0 %v2900
        %v2902 = vpop.f32.mrf.mxu0
        %v2903 = vadd.f32 %v2806, %v2902
        %2904 = vdwg.mxu0
        %v2905 = vand.u32 %v486, 4294901760
        %2906 = vmatpush.msra.mxu0 %v2905
        %v2907 = vand.u32 %v485, 4294901760
        %2908 = vmatpush.msra.mxu0 %v2907
        %v2909 = vand.u32 %v484, 4294901760
        %2910 = vmatpush.msra.mxu0 %v2909
        %v2911 = vand.u32 %v483, 4294901760
        %2912 = vmatpush.msra.mxu0 %v2911
        %v2913 = vand.u32 %v482, 4294901760
        %2914 = vmatpush.msra.mxu0 %v2913
        %v2915 = vand.u32 %v481, 4294901760
        %2916 = vmatpush.msra.mxu0 %v2915
        %v2917 = vand.u32 %v480, 4294901760
        %2918 = vmatpush.msra.mxu0 %v2917
        %v2919 = vand.u32 %v479, 4294901760
        %2920 = vmatpush.msra.mxu0 %v2919
        %v2921 = vand.u32 %v478, 4294901760
        %2922 = vmatpush.msra.mxu0 %v2921
        %v2923 = vand.u32 %v477, 4294901760
        %2924 = vmatpush.msra.mxu0 %v2923
        %v2925 = vand.u32 %v476, 4294901760
        %2926 = vmatpush.msra.mxu0 %v2925
        %v2927 = vand.u32 %v475, 4294901760
        %2928 = vmatpush.msra.mxu0 %v2927
        %v2929 = vand.u32 %v474, 4294901760
        %2930 = vmatpush.msra.mxu0 %v2929
        %v2931 = vand.u32 %v473, 4294901760
        %2932 = vmatpush.msra.mxu0 %v2931
        %v2933 = vand.u32 %v472, 4294901760
        %2934 = vmatpush.msra.mxu0 %v2933
        %v2935 = vand.u32 %v471, 4294901760
        %2936 = vmatpush.msra.mxu0 %v2935
        %v2937 = vand.u32 %v362, 4294901760
        %v2938 = vsub.f32 %v362, %v2937
        %v2939 = vand.u32 %v2938, 4294901760
        %v2940 = vsub.f32 %v2938, %v2939
        %v2941 = vand.u32 %v2940, 4294901760
        %2942 = vmatmul.f32.gmra.mxu0 %v2941
        %v2943 = vpop.f32.mrf.mxu0
        %v2944 = vadd.f32 %v2843, %v2943
        %v2945 = vand.u32 %v366, 4294901760
        %v2946 = vsub.f32 %v366, %v2945
        %v2947 = vand.u32 %v2946, 4294901760
        %v2948 = vsub.f32 %v2946, %v2947
        %v2949 = vand.u32 %v2948, 4294901760
        %2950 = vmatmul.f32.gmra.mxu0 %v2949
        %v2951 = vpop.f32.mrf.mxu0
        %v2952 = vadd.f32 %v2847, %v2951
        %v2953 = vand.u32 %v370, 4294901760
        %v2954 = vsub.f32 %v370, %v2953
        %v2955 = vand.u32 %v2954, 4294901760
        %v2956 = vsub.f32 %v2954, %v2955
        %v2957 = vand.u32 %v2956, 4294901760
        %2958 = vmatmul.f32.gmra.mxu0 %v2957
        %v2959 = vpop.f32.mrf.mxu0
        %v2960 = vadd.f32 %v2851, %v2959
        %v2961 = vand.u32 %v374, 4294901760
        %v2962 = vsub.f32 %v374, %v2961
        %v2963 = vand.u32 %v2962, 4294901760
        %v2964 = vsub.f32 %v2962, %v2963
        %v2965 = vand.u32 %v2964, 4294901760
        %2966 = vmatmul.f32.gmra.mxu0 %v2965
        %v2967 = vpop.f32.mrf.mxu0
        %v2968 = vadd.f32 %v2855, %v2967
        %v2969 = vand.u32 %v378, 4294901760
        %v2970 = vsub.f32 %v378, %v2969
        %v2971 = vand.u32 %v2970, 4294901760
        %v2972 = vsub.f32 %v2970, %v2971
        %v2973 = vand.u32 %v2972, 4294901760
        %2974 = vmatmul.f32.gmra.mxu0 %v2973
        %v2975 = vpop.f32.mrf.mxu0
        %v2976 = vadd.f32 %v2859, %v2975
        %v2977 = vand.u32 %v382, 4294901760
        %v2978 = vsub.f32 %v382, %v2977
        %v2979 = vand.u32 %v2978, 4294901760
        %v2980 = vsub.f32 %v2978, %v2979
        %v2981 = vand.u32 %v2980, 4294901760
        %2982 = vmatmul.f32.gmra.mxu0 %v2981
        %v2983 = vpop.f32.mrf.mxu0
        %v2984 = vadd.f32 %v2863, %v2983
        %v2985 = vand.u32 %v386, 4294901760
        %v2986 = vsub.f32 %v386, %v2985
        %v2987 = vand.u32 %v2986, 4294901760
        %v2988 = vsub.f32 %v2986, %v2987
        %v2989 = vand.u32 %v2988, 4294901760
        %2990 = vmatmul.f32.gmra.mxu0 %v2989
        %v2991 = vpop.f32.mrf.mxu0
        %v2992 = vadd.f32 %v2867, %v2991
        %v2993 = vand.u32 %v390, 4294901760
        %v2994 = vsub.f32 %v390, %v2993
        %v2995 = vand.u32 %v2994, 4294901760
        %v2996 = vsub.f32 %v2994, %v2995
        %v2997 = vand.u32 %v2996, 4294901760
        %2998 = vmatmul.f32.gmra.mxu0 %v2997
        %v2999 = vpop.f32.mrf.mxu0
        %v3000 = vadd.f32 %v2871, %v2999
        %v3001 = vand.u32 %v394, 4294901760
        %v3002 = vsub.f32 %v394, %v3001
        %v3003 = vand.u32 %v3002, 4294901760
        %v3004 = vsub.f32 %v3002, %v3003
        %v3005 = vand.u32 %v3004, 4294901760
        %3006 = vmatmul.f32.gmra.mxu0 %v3005
        %v3007 = vpop.f32.mrf.mxu0
        %v3008 = vadd.f32 %v2875, %v3007
        %v3009 = vand.u32 %v398, 4294901760
        %v3010 = vsub.f32 %v398, %v3009
        %v3011 = vand.u32 %v3010, 4294901760
        %v3012 = vsub.f32 %v3010, %v3011
        %v3013 = vand.u32 %v3012, 4294901760
        %3014 = vmatmul.f32.gmra.mxu0 %v3013
        %v3015 = vpop.f32.mrf.mxu0
        %v3016 = vadd.f32 %v2879, %v3015
        %v3017 = vand.u32 %v402, 4294901760
        %v3018 = vsub.f32 %v402, %v3017
        %v3019 = vand.u32 %v3018, 4294901760
        %v3020 = vsub.f32 %v3018, %v3019
        %v3021 = vand.u32 %v3020, 4294901760
        %3022 = vmatmul.f32.gmra.mxu0 %v3021
        %v3023 = vpop.f32.mrf.mxu0
        %v3024 = vadd.f32 %v2883, %v3023
        %v3025 = vand.u32 %v406, 4294901760
        %v3026 = vsub.f32 %v406, %v3025
        %v3027 = vand.u32 %v3026, 4294901760
        %v3028 = vsub.f32 %v3026, %v3027
        %v3029 = vand.u32 %v3028, 4294901760
        %3030 = vmatmul.f32.gmra.mxu0 %v3029
        %v3031 = vpop.f32.mrf.mxu0
        %v3032 = vadd.f32 %v2887, %v3031
        %v3033 = vand.u32 %v410, 4294901760
        %v3034 = vsub.f32 %v410, %v3033
        %v3035 = vand.u32 %v3034, 4294901760
        %v3036 = vsub.f32 %v3034, %v3035
        %v3037 = vand.u32 %v3036, 4294901760
        %3038 = vmatmul.f32.gmra.mxu0 %v3037
        %v3039 = vpop.f32.mrf.mxu0
        %v3040 = vadd.f32 %v2891, %v3039
        %v3041 = vand.u32 %v414, 4294901760
        %v3042 = vsub.f32 %v414, %v3041
        %v3043 = vand.u32 %v3042, 4294901760
        %v3044 = vsub.f32 %v3042, %v3043
        %v3045 = vand.u32 %v3044, 4294901760
        %3046 = vmatmul.f32.gmra.mxu0 %v3045
        %v3047 = vpop.f32.mrf.mxu0
        %v3048 = vadd.f32 %v2895, %v3047
        %v3049 = vand.u32 %v418, 4294901760
        %v3050 = vsub.f32 %v418, %v3049
        %v3051 = vand.u32 %v3050, 4294901760
        %v3052 = vsub.f32 %v3050, %v3051
        %v3053 = vand.u32 %v3052, 4294901760
        %3054 = vmatmul.f32.gmra.mxu0 %v3053
        %v3055 = vpop.f32.mrf.mxu0
        %v3056 = vadd.f32 %v2899, %v3055
        %v3057 = vand.u32 %v422, 4294901760
        %v3058 = vsub.f32 %v422, %v3057
        %v3059 = vand.u32 %v3058, 4294901760
        %v3060 = vsub.f32 %v3058, %v3059
        %v3061 = vand.u32 %v3060, 4294901760
        %3062 = vmatmul.f32.gmra.mxu0 %v3061
        %v3063 = vpop.f32.mrf.mxu0
        %v3064 = vadd.f32 %v2903, %v3063
        %3065 = vdwg.mxu0
        %v3066 = vand.u32 %v486, 4294901760
        %v3067 = vsub.f32 %v486, %v3066
        %v3068 = vand.u32 %v3067, 4294901760
        %v3069 = vsub.f32 %v3067, %v3068
        %v3070 = vand.u32 %v3069, 4294901760
        %3071 = vmatpush.msra.mxu0 %v3070
        %v3072 = vand.u32 %v485, 4294901760
        %v3073 = vsub.f32 %v485, %v3072
        %v3074 = vand.u32 %v3073, 4294901760
        %v3075 = vsub.f32 %v3073, %v3074
        %v3076 = vand.u32 %v3075, 4294901760
        %3077 = vmatpush.msra.mxu0 %v3076
        %v3078 = vand.u32 %v484, 4294901760
        %v3079 = vsub.f32 %v484, %v3078
        %v3080 = vand.u32 %v3079, 4294901760
        %v3081 = vsub.f32 %v3079, %v3080
        %v3082 = vand.u32 %v3081, 4294901760
        %3083 = vmatpush.msra.mxu0 %v3082
        %v3084 = vand.u32 %v483, 4294901760
        %v3085 = vsub.f32 %v483, %v3084
        %v3086 = vand.u32 %v3085, 4294901760
        %v3087 = vsub.f32 %v3085, %v3086
        %v3088 = vand.u32 %v3087, 4294901760
        %3089 = vmatpush.msra.mxu0 %v3088
        %v3090 = vand.u32 %v482, 4294901760
        %v3091 = vsub.f32 %v482, %v3090
        %v3092 = vand.u32 %v3091, 4294901760
        %v3093 = vsub.f32 %v3091, %v3092
        %v3094 = vand.u32 %v3093, 4294901760
        %3095 = vmatpush.msra.mxu0 %v3094
        %v3096 = vand.u32 %v481, 4294901760
        %v3097 = vsub.f32 %v481, %v3096
        %v3098 = vand.u32 %v3097, 4294901760
        %v3099 = vsub.f32 %v3097, %v3098
        %v3100 = vand.u32 %v3099, 4294901760
        %3101 = vmatpush.msra.mxu0 %v3100
        %v3102 = vand.u32 %v480, 4294901760
        %v3103 = vsub.f32 %v480, %v3102
        %v3104 = vand.u32 %v3103, 4294901760
        %v3105 = vsub.f32 %v3103, %v3104
        %v3106 = vand.u32 %v3105, 4294901760
        %3107 = vmatpush.msra.mxu0 %v3106
        %v3108 = vand.u32 %v479, 4294901760
        %v3109 = vsub.f32 %v479, %v3108
        %v3110 = vand.u32 %v3109, 4294901760
        %v3111 = vsub.f32 %v3109, %v3110
        %v3112 = vand.u32 %v3111, 4294901760
        %3113 = vmatpush.msra.mxu0 %v3112
        %v3114 = vand.u32 %v478, 4294901760
        %v3115 = vsub.f32 %v478, %v3114
        %v3116 = vand.u32 %v3115, 4294901760
        %v3117 = vsub.f32 %v3115, %v3116
        %v3118 = vand.u32 %v3117, 4294901760
        %3119 = vmatpush.msra.mxu0 %v3118
        %v3120 = vand.u32 %v477, 4294901760
        %v3121 = vsub.f32 %v477, %v3120
        %v3122 = vand.u32 %v3121, 4294901760
        %v3123 = vsub.f32 %v3121, %v3122
        %v3124 = vand.u32 %v3123, 4294901760
        %3125 = vmatpush.msra.mxu0 %v3124
        %v3126 = vand.u32 %v476, 4294901760
        %v3127 = vsub.f32 %v476, %v3126
        %v3128 = vand.u32 %v3127, 4294901760
        %v3129 = vsub.f32 %v3127, %v3128
        %v3130 = vand.u32 %v3129, 4294901760
        %3131 = vmatpush.msra.mxu0 %v3130
        %v3132 = vand.u32 %v475, 4294901760
        %v3133 = vsub.f32 %v475, %v3132
        %v3134 = vand.u32 %v3133, 4294901760
        %v3135 = vsub.f32 %v3133, %v3134
        %v3136 = vand.u32 %v3135, 4294901760
        %3137 = vmatpush.msra.mxu0 %v3136
        %v3138 = vand.u32 %v474, 4294901760
        %v3139 = vsub.f32 %v474, %v3138
        %v3140 = vand.u32 %v3139, 4294901760
        %v3141 = vsub.f32 %v3139, %v3140
        %v3142 = vand.u32 %v3141, 4294901760
        %3143 = vmatpush.msra.mxu0 %v3142
        %v3144 = vand.u32 %v473, 4294901760
        %v3145 = vsub.f32 %v473, %v3144
        %v3146 = vand.u32 %v3145, 4294901760
        %v3147 = vsub.f32 %v3145, %v3146
        %v3148 = vand.u32 %v3147, 4294901760
        %3149 = vmatpush.msra.mxu0 %v3148
        %v3150 = vand.u32 %v472, 4294901760
        %v3151 = vsub.f32 %v472, %v3150
        %v3152 = vand.u32 %v3151, 4294901760
        %v3153 = vsub.f32 %v3151, %v3152
        %v3154 = vand.u32 %v3153, 4294901760
        %3155 = vmatpush.msra.mxu0 %v3154
        %v3156 = vand.u32 %v471, 4294901760
        %v3157 = vsub.f32 %v471, %v3156
        %v3158 = vand.u32 %v3157, 4294901760
        %v3159 = vsub.f32 %v3157, %v3158
        %v3160 = vand.u32 %v3159, 4294901760
        %3161 = vmatpush.msra.mxu0 %v3160
        %v3162 = vand.u32 %v362, 4294901760
        %3163 = vmatmul.f32.gmra.mxu0 %v3162
        %v3164 = vpop.f32.mrf.mxu0
        %v3165 = vadd.f32 %v2944, %v3164
        %v3166 = vand.u32 %v366, 4294901760
        %3167 = vmatmul.f32.gmra.mxu0 %v3166
        %v3168 = vpop.f32.mrf.mxu0
        %v3169 = vadd.f32 %v2952, %v3168
        %v3170 = vand.u32 %v370, 4294901760
        %3171 = vmatmul.f32.gmra.mxu0 %v3170
        %v3172 = vpop.f32.mrf.mxu0
        %v3173 = vadd.f32 %v2960, %v3172
        %v3174 = vand.u32 %v374, 4294901760
        %3175 = vmatmul.f32.gmra.mxu0 %v3174
        %v3176 = vpop.f32.mrf.mxu0
        %v3177 = vadd.f32 %v2968, %v3176
        %v3178 = vand.u32 %v378, 4294901760
        %3179 = vmatmul.f32.gmra.mxu0 %v3178
        %v3180 = vpop.f32.mrf.mxu0
        %v3181 = vadd.f32 %v2976, %v3180
        %v3182 = vand.u32 %v382, 4294901760
        %3183 = vmatmul.f32.gmra.mxu0 %v3182
        %v3184 = vpop.f32.mrf.mxu0
        %v3185 = vadd.f32 %v2984, %v3184
        %v3186 = vand.u32 %v386, 4294901760
        %3187 = vmatmul.f32.gmra.mxu0 %v3186
        %v3188 = vpop.f32.mrf.mxu0
        %v3189 = vadd.f32 %v2992, %v3188
        %v3190 = vand.u32 %v390, 4294901760
        %3191 = vmatmul.f32.gmra.mxu0 %v3190
        %v3192 = vpop.f32.mrf.mxu0
        %v3193 = vadd.f32 %v3000, %v3192
        %v3194 = vand.u32 %v394, 4294901760
        %3195 = vmatmul.f32.gmra.mxu0 %v3194
        %v3196 = vpop.f32.mrf.mxu0
        %v3197 = vadd.f32 %v3008, %v3196
        %v3198 = vand.u32 %v398, 4294901760
        %3199 = vmatmul.f32.gmra.mxu0 %v3198
        %v3200 = vpop.f32.mrf.mxu0
        %v3201 = vadd.f32 %v3016, %v3200
        %v3202 = vand.u32 %v402, 4294901760
        %3203 = vmatmul.f32.gmra.mxu0 %v3202
        %v3204 = vpop.f32.mrf.mxu0
        %v3205 = vadd.f32 %v3024, %v3204
        %v3206 = vand.u32 %v406, 4294901760
        %3207 = vmatmul.f32.gmra.mxu0 %v3206
        %v3208 = vpop.f32.mrf.mxu0
        %v3209 = vadd.f32 %v3032, %v3208
        %v3210 = vand.u32 %v410, 4294901760
        %3211 = vmatmul.f32.gmra.mxu0 %v3210
        %v3212 = vpop.f32.mrf.mxu0
        %v3213 = vadd.f32 %v3040, %v3212
        %v3214 = vand.u32 %v414, 4294901760
        %3215 = vmatmul.f32.gmra.mxu0 %v3214
        %v3216 = vpop.f32.mrf.mxu0
        %v3217 = vadd.f32 %v3048, %v3216
        %v3218 = vand.u32 %v418, 4294901760
        %3219 = vmatmul.f32.gmra.mxu0 %v3218
        %v3220 = vpop.f32.mrf.mxu0
        %v3221 = vadd.f32 %v3056, %v3220
        %v3222 = vand.u32 %v422, 4294901760
        %3223 = vmatmul.f32.gmra.mxu0 %v3222
        %v3224 = vpop.f32.mrf.mxu0
        %v3225 = vadd.f32 %v3064, %v3224
        %3226 = vdwg.mxu0
        %v3227 = vand.u32 %v486, 4294901760
        %v3228 = vsub.f32 %v486, %v3227
        %3229 = vmatpush.msra.mxu0 %v3228
        %v3230 = vand.u32 %v485, 4294901760
        %v3231 = vsub.f32 %v485, %v3230
        %3232 = vmatpush.msra.mxu0 %v3231
        %v3233 = vand.u32 %v484, 4294901760
        %v3234 = vsub.f32 %v484, %v3233
        %3235 = vmatpush.msra.mxu0 %v3234
        %v3236 = vand.u32 %v483, 4294901760
        %v3237 = vsub.f32 %v483, %v3236
        %3238 = vmatpush.msra.mxu0 %v3237
        %v3239 = vand.u32 %v482, 4294901760
        %v3240 = vsub.f32 %v482, %v3239
        %3241 = vmatpush.msra.mxu0 %v3240
        %v3242 = vand.u32 %v481, 4294901760
        %v3243 = vsub.f32 %v481, %v3242
        %3244 = vmatpush.msra.mxu0 %v3243
        %v3245 = vand.u32 %v480, 4294901760
        %v3246 = vsub.f32 %v480, %v3245
        %3247 = vmatpush.msra.mxu0 %v3246
        %v3248 = vand.u32 %v479, 4294901760
        %v3249 = vsub.f32 %v479, %v3248
        %3250 = vmatpush.msra.mxu0 %v3249
        %v3251 = vand.u32 %v478, 4294901760
        %v3252 = vsub.f32 %v478, %v3251
        %3253 = vmatpush.msra.mxu0 %v3252
        %v3254 = vand.u32 %v477, 4294901760
        %v3255 = vsub.f32 %v477, %v3254
        %3256 = vmatpush.msra.mxu0 %v3255
        %v3257 = vand.u32 %v476, 4294901760
        %v3258 = vsub.f32 %v476, %v3257
        %3259 = vmatpush.msra.mxu0 %v3258
        %v3260 = vand.u32 %v475, 4294901760
        %v3261 = vsub.f32 %v475, %v3260
        %3262 = vmatpush.msra.mxu0 %v3261
        %v3263 = vand.u32 %v474, 4294901760
        %v3264 = vsub.f32 %v474, %v3263
        %3265 = vmatpush.msra.mxu0 %v3264
        %v3266 = vand.u32 %v473, 4294901760
        %v3267 = vsub.f32 %v473, %v3266
        %3268 = vmatpush.msra.mxu0 %v3267
        %v3269 = vand.u32 %v472, 4294901760
        %v3270 = vsub.f32 %v472, %v3269
        %3271 = vmatpush.msra.mxu0 %v3270
        %v3272 = vand.u32 %v471, 4294901760
        %v3273 = vsub.f32 %v471, %v3272
        %3274 = vmatpush.msra.mxu0 %v3273
        %v3275 = vand.u32 %v362, 4294901760
        %v3276 = vsub.f32 %v362, %v3275
        %3277 = vmatmul.f32.gmra.mxu0 %v3276
        %v3278 = vpop.f32.mrf.mxu0
        %v3279 = vadd.f32 %v3165, %v3278
        %v3280 = vand.u32 %v366, 4294901760
        %v3281 = vsub.f32 %v366, %v3280
        %3282 = vmatmul.f32.gmra.mxu0 %v3281
        %v3283 = vpop.f32.mrf.mxu0
        %v3284 = vadd.f32 %v3169, %v3283
        %v3285 = vand.u32 %v370, 4294901760
        %v3286 = vsub.f32 %v370, %v3285
        %3287 = vmatmul.f32.gmra.mxu0 %v3286
        %v3288 = vpop.f32.mrf.mxu0
        %v3289 = vadd.f32 %v3173, %v3288
        %v3290 = vand.u32 %v374, 4294901760
        %v3291 = vsub.f32 %v374, %v3290
        %3292 = vmatmul.f32.gmra.mxu0 %v3291
        %v3293 = vpop.f32.mrf.mxu0
        %v3294 = vadd.f32 %v3177, %v3293
        %v3295 = vand.u32 %v378, 4294901760
        %v3296 = vsub.f32 %v378, %v3295
        %3297 = vmatmul.f32.gmra.mxu0 %v3296
        %v3298 = vpop.f32.mrf.mxu0
        %v3299 = vadd.f32 %v3181, %v3298
        %v3300 = vand.u32 %v382, 4294901760
        %v3301 = vsub.f32 %v382, %v3300
        %3302 = vmatmul.f32.gmra.mxu0 %v3301
        %v3303 = vpop.f32.mrf.mxu0
        %v3304 = vadd.f32 %v3185, %v3303
        %v3305 = vand.u32 %v386, 4294901760
        %v3306 = vsub.f32 %v386, %v3305
        %3307 = vmatmul.f32.gmra.mxu0 %v3306
        %v3308 = vpop.f32.mrf.mxu0
        %v3309 = vadd.f32 %v3189, %v3308
        %v3310 = vand.u32 %v390, 4294901760
        %v3311 = vsub.f32 %v390, %v3310
        %3312 = vmatmul.f32.gmra.mxu0 %v3311
        %v3313 = vpop.f32.mrf.mxu0
        %v3314 = vadd.f32 %v3193, %v3313
        %v3315 = vand.u32 %v394, 4294901760
        %v3316 = vsub.f32 %v394, %v3315
        %3317 = vmatmul.f32.gmra.mxu0 %v3316
        %v3318 = vpop.f32.mrf.mxu0
        %v3319 = vadd.f32 %v3197, %v3318
        %v3320 = vand.u32 %v398, 4294901760
        %v3321 = vsub.f32 %v398, %v3320
        %3322 = vmatmul.f32.gmra.mxu0 %v3321
        %v3323 = vpop.f32.mrf.mxu0
        %v3324 = vadd.f32 %v3201, %v3323
        %v3325 = vand.u32 %v402, 4294901760
        %v3326 = vsub.f32 %v402, %v3325
        %3327 = vmatmul.f32.gmra.mxu0 %v3326
        %v3328 = vpop.f32.mrf.mxu0
        %v3329 = vadd.f32 %v3205, %v3328
        %v3330 = vand.u32 %v406, 4294901760
        %v3331 = vsub.f32 %v406, %v3330
        %3332 = vmatmul.f32.gmra.mxu0 %v3331
        %v3333 = vpop.f32.mrf.mxu0
        %v3334 = vadd.f32 %v3209, %v3333
        %v3335 = vand.u32 %v410, 4294901760
        %v3336 = vsub.f32 %v410, %v3335
        %3337 = vmatmul.f32.gmra.mxu0 %v3336
        %v3338 = vpop.f32.mrf.mxu0
        %v3339 = vadd.f32 %v3213, %v3338
        %v3340 = vand.u32 %v414, 4294901760
        %v3341 = vsub.f32 %v414, %v3340
        %3342 = vmatmul.f32.gmra.mxu0 %v3341
        %v3343 = vpop.f32.mrf.mxu0
        %v3344 = vadd.f32 %v3217, %v3343
        %v3345 = vand.u32 %v418, 4294901760
        %v3346 = vsub.f32 %v418, %v3345
        %3347 = vmatmul.f32.gmra.mxu0 %v3346
        %v3348 = vpop.f32.mrf.mxu0
        %v3349 = vadd.f32 %v3221, %v3348
        %v3350 = vand.u32 %v422, 4294901760
        %v3351 = vsub.f32 %v422, %v3350
        %3352 = vmatmul.f32.gmra.mxu0 %v3351
        %v3353 = vpop.f32.mrf.mxu0
        %v3354 = vadd.f32 %v3225, %v3353
        %3355 = vdwg.mxu0
        %v3356 = vand.u32 %v486, 4294901760
        %3357 = vmatpush.msra.mxu0 %v3356
        %v3358 = vand.u32 %v485, 4294901760
        %3359 = vmatpush.msra.mxu0 %v3358
        %v3360 = vand.u32 %v484, 4294901760
        %3361 = vmatpush.msra.mxu0 %v3360
        %v3362 = vand.u32 %v483, 4294901760
        %3363 = vmatpush.msra.mxu0 %v3362
        %v3364 = vand.u32 %v482, 4294901760
        %3365 = vmatpush.msra.mxu0 %v3364
        %v3366 = vand.u32 %v481, 4294901760
        %3367 = vmatpush.msra.mxu0 %v3366
        %v3368 = vand.u32 %v480, 4294901760
        %3369 = vmatpush.msra.mxu0 %v3368
        %v3370 = vand.u32 %v479, 4294901760
        %3371 = vmatpush.msra.mxu0 %v3370
        %v3372 = vand.u32 %v478, 4294901760
        %3373 = vmatpush.msra.mxu0 %v3372
        %v3374 = vand.u32 %v477, 4294901760
        %3375 = vmatpush.msra.mxu0 %v3374
        %v3376 = vand.u32 %v476, 4294901760
        %3377 = vmatpush.msra.mxu0 %v3376
        %v3378 = vand.u32 %v475, 4294901760
        %3379 = vmatpush.msra.mxu0 %v3378
        %v3380 = vand.u32 %v474, 4294901760
        %3381 = vmatpush.msra.mxu0 %v3380
        %v3382 = vand.u32 %v473, 4294901760
        %3383 = vmatpush.msra.mxu0 %v3382
        %v3384 = vand.u32 %v472, 4294901760
        %3385 = vmatpush.msra.mxu0 %v3384
        %v3386 = vand.u32 %v471, 4294901760
        %3387 = vmatpush.msra.mxu0 %v3386
        %v3388 = vand.u32 %v362, 4294901760
        %v3389 = vsub.f32 %v362, %v3388
        %v3390 = vand.u32 %v3389, 4294901760
        %3391 = vmatmul.f32.gmra.mxu0 %v3390
        %v3392 = vpop.f32.mrf.mxu0
        %v3393 = vadd.f32 %v3279, %v3392
        %v3394 = vand.u32 %v366, 4294901760
        %v3395 = vsub.f32 %v366, %v3394
        %v3396 = vand.u32 %v3395, 4294901760
        %3397 = vmatmul.f32.gmra.mxu0 %v3396
        %v3398 = vpop.f32.mrf.mxu0
        %v3399 = vadd.f32 %v3284, %v3398
        %v3400 = vand.u32 %v370, 4294901760
        %v3401 = vsub.f32 %v370, %v3400
        %v3402 = vand.u32 %v3401, 4294901760
        %3403 = vmatmul.f32.gmra.mxu0 %v3402
        %v3404 = vpop.f32.mrf.mxu0
        %v3405 = vadd.f32 %v3289, %v3404
        %v3406 = vand.u32 %v374, 4294901760
        %v3407 = vsub.f32 %v374, %v3406
        %v3408 = vand.u32 %v3407, 4294901760
        %3409 = vmatmul.f32.gmra.mxu0 %v3408
        %v3410 = vpop.f32.mrf.mxu0
        %v3411 = vadd.f32 %v3294, %v3410
        %v3412 = vand.u32 %v378, 4294901760
        %v3413 = vsub.f32 %v378, %v3412
        %v3414 = vand.u32 %v3413, 4294901760
        %3415 = vmatmul.f32.gmra.mxu0 %v3414
        %v3416 = vpop.f32.mrf.mxu0
        %v3417 = vadd.f32 %v3299, %v3416
        %v3418 = vand.u32 %v382, 4294901760
        %v3419 = vsub.f32 %v382, %v3418
        %v3420 = vand.u32 %v3419, 4294901760
        %3421 = vmatmul.f32.gmra.mxu0 %v3420
        %v3422 = vpop.f32.mrf.mxu0
        %v3423 = vadd.f32 %v3304, %v3422
        %v3424 = vand.u32 %v386, 4294901760
        %v3425 = vsub.f32 %v386, %v3424
        %v3426 = vand.u32 %v3425, 4294901760
        %3427 = vmatmul.f32.gmra.mxu0 %v3426
        %v3428 = vpop.f32.mrf.mxu0
        %v3429 = vadd.f32 %v3309, %v3428
        %v3430 = vand.u32 %v390, 4294901760
        %v3431 = vsub.f32 %v390, %v3430
        %v3432 = vand.u32 %v3431, 4294901760
        %3433 = vmatmul.f32.gmra.mxu0 %v3432
        %v3434 = vpop.f32.mrf.mxu0
        %v3435 = vadd.f32 %v3314, %v3434
        %v3436 = vand.u32 %v394, 4294901760
        %v3437 = vsub.f32 %v394, %v3436
        %v3438 = vand.u32 %v3437, 4294901760
        %3439 = vmatmul.f32.gmra.mxu0 %v3438
        %v3440 = vpop.f32.mrf.mxu0
        %v3441 = vadd.f32 %v3319, %v3440
        %v3442 = vand.u32 %v398, 4294901760
        %v3443 = vsub.f32 %v398, %v3442
        %v3444 = vand.u32 %v3443, 4294901760
        %3445 = vmatmul.f32.gmra.mxu0 %v3444
        %v3446 = vpop.f32.mrf.mxu0
        %v3447 = vadd.f32 %v3324, %v3446
        %v3448 = vand.u32 %v402, 4294901760
        %v3449 = vsub.f32 %v402, %v3448
        %v3450 = vand.u32 %v3449, 4294901760
        %3451 = vmatmul.f32.gmra.mxu0 %v3450
        %v3452 = vpop.f32.mrf.mxu0
        %v3453 = vadd.f32 %v3329, %v3452
        %v3454 = vand.u32 %v406, 4294901760
        %v3455 = vsub.f32 %v406, %v3454
        %v3456 = vand.u32 %v3455, 4294901760
        %3457 = vmatmul.f32.gmra.mxu0 %v3456
        %v3458 = vpop.f32.mrf.mxu0
        %v3459 = vadd.f32 %v3334, %v3458
        %v3460 = vand.u32 %v410, 4294901760
        %v3461 = vsub.f32 %v410, %v3460
        %v3462 = vand.u32 %v3461, 4294901760
        %3463 = vmatmul.f32.gmra.mxu0 %v3462
        %v3464 = vpop.f32.mrf.mxu0
        %v3465 = vadd.f32 %v3339, %v3464
        %v3466 = vand.u32 %v414, 4294901760
        %v3467 = vsub.f32 %v414, %v3466
        %v3468 = vand.u32 %v3467, 4294901760
        %3469 = vmatmul.f32.gmra.mxu0 %v3468
        %v3470 = vpop.f32.mrf.mxu0
        %v3471 = vadd.f32 %v3344, %v3470
        %v3472 = vand.u32 %v418, 4294901760
        %v3473 = vsub.f32 %v418, %v3472
        %v3474 = vand.u32 %v3473, 4294901760
        %3475 = vmatmul.f32.gmra.mxu0 %v3474
        %v3476 = vpop.f32.mrf.mxu0
        %v3477 = vadd.f32 %v3349, %v3476
        %v3478 = vand.u32 %v422, 4294901760
        %v3479 = vsub.f32 %v422, %v3478
        %v3480 = vand.u32 %v3479, 4294901760
        %3481 = vmatmul.f32.gmra.mxu0 %v3480
        %v3482 = vpop.f32.mrf.mxu0
        %v3483 = vadd.f32 %v3354, %v3482
        %3484 = vdwg.mxu0
        %v3485 = vand.u32 %v486, 4294901760
        %v3486 = vsub.f32 %v486, %v3485
        %v3487 = vand.u32 %v3486, 4294901760
        %3488 = vmatpush.msra.mxu0 %v3487
        %v3489 = vand.u32 %v485, 4294901760
        %v3490 = vsub.f32 %v485, %v3489
        %v3491 = vand.u32 %v3490, 4294901760
        %3492 = vmatpush.msra.mxu0 %v3491
        %v3493 = vand.u32 %v484, 4294901760
        %v3494 = vsub.f32 %v484, %v3493
        %v3495 = vand.u32 %v3494, 4294901760
        %3496 = vmatpush.msra.mxu0 %v3495
        %v3497 = vand.u32 %v483, 4294901760
        %v3498 = vsub.f32 %v483, %v3497
        %v3499 = vand.u32 %v3498, 4294901760
        %3500 = vmatpush.msra.mxu0 %v3499
        %v3501 = vand.u32 %v482, 4294901760
        %v3502 = vsub.f32 %v482, %v3501
        %v3503 = vand.u32 %v3502, 4294901760
        %3504 = vmatpush.msra.mxu0 %v3503
        %v3505 = vand.u32 %v481, 4294901760
        %v3506 = vsub.f32 %v481, %v3505
        %v3507 = vand.u32 %v3506, 4294901760
        %3508 = vmatpush.msra.mxu0 %v3507
        %v3509 = vand.u32 %v480, 4294901760
        %v3510 = vsub.f32 %v480, %v3509
        %v3511 = vand.u32 %v3510, 4294901760
        %3512 = vmatpush.msra.mxu0 %v3511
        %v3513 = vand.u32 %v479, 4294901760
        %v3514 = vsub.f32 %v479, %v3513
        %v3515 = vand.u32 %v3514, 4294901760
        %3516 = vmatpush.msra.mxu0 %v3515
        %v3517 = vand.u32 %v478, 4294901760
        %v3518 = vsub.f32 %v478, %v3517
        %v3519 = vand.u32 %v3518, 4294901760
        %3520 = vmatpush.msra.mxu0 %v3519
        %v3521 = vand.u32 %v477, 4294901760
        %v3522 = vsub.f32 %v477, %v3521
        %v3523 = vand.u32 %v3522, 4294901760
        %3524 = vmatpush.msra.mxu0 %v3523
        %v3525 = vand.u32 %v476, 4294901760
        %v3526 = vsub.f32 %v476, %v3525
        %v3527 = vand.u32 %v3526, 4294901760
        %3528 = vmatpush.msra.mxu0 %v3527
        %v3529 = vand.u32 %v475, 4294901760
        %v3530 = vsub.f32 %v475, %v3529
        %v3531 = vand.u32 %v3530, 4294901760
        %3532 = vmatpush.msra.mxu0 %v3531
        %v3533 = vand.u32 %v474, 4294901760
        %v3534 = vsub.f32 %v474, %v3533
        %v3535 = vand.u32 %v3534, 4294901760
        %3536 = vmatpush.msra.mxu0 %v3535
        %v3537 = vand.u32 %v473, 4294901760
        %v3538 = vsub.f32 %v473, %v3537
        %v3539 = vand.u32 %v3538, 4294901760
        %3540 = vmatpush.msra.mxu0 %v3539
        %v3541 = vand.u32 %v472, 4294901760
        %v3542 = vsub.f32 %v472, %v3541
        %v3543 = vand.u32 %v3542, 4294901760
        %3544 = vmatpush.msra.mxu0 %v3543
        %v3545 = vand.u32 %v471, 4294901760
        %v3546 = vsub.f32 %v471, %v3545
        %v3547 = vand.u32 %v3546, 4294901760
        %3548 = vmatpush.msra.mxu0 %v3547
        %v3549 = vand.u32 %v362, 4294901760
        %3550 = vmatmul.f32.gmra.mxu0 %v3549
        %v3551 = vpop.f32.mrf.mxu0
        %v3552 = vadd.f32 %v3393, %v3551
        %v3553 = vand.u32 %v366, 4294901760
        %3554 = vmatmul.f32.gmra.mxu0 %v3553
        %v3555 = vpop.f32.mrf.mxu0
        %v3556 = vadd.f32 %v3399, %v3555
        %v3557 = vand.u32 %v370, 4294901760
        %3558 = vmatmul.f32.gmra.mxu0 %v3557
        %v3559 = vpop.f32.mrf.mxu0
        %v3560 = vadd.f32 %v3405, %v3559
        %v3561 = vand.u32 %v374, 4294901760
        %3562 = vmatmul.f32.gmra.mxu0 %v3561
        %v3563 = vpop.f32.mrf.mxu0
        %v3564 = vadd.f32 %v3411, %v3563
        %v3565 = vand.u32 %v378, 4294901760
        %3566 = vmatmul.f32.gmra.mxu0 %v3565
        %v3567 = vpop.f32.mrf.mxu0
        %v3568 = vadd.f32 %v3417, %v3567
        %v3569 = vand.u32 %v382, 4294901760
        %3570 = vmatmul.f32.gmra.mxu0 %v3569
        %v3571 = vpop.f32.mrf.mxu0
        %v3572 = vadd.f32 %v3423, %v3571
        %v3573 = vand.u32 %v386, 4294901760
        %3574 = vmatmul.f32.gmra.mxu0 %v3573
        %v3575 = vpop.f32.mrf.mxu0
        %v3576 = vadd.f32 %v3429, %v3575
        %v3577 = vand.u32 %v390, 4294901760
        %3578 = vmatmul.f32.gmra.mxu0 %v3577
        %v3579 = vpop.f32.mrf.mxu0
        %v3580 = vadd.f32 %v3435, %v3579
        %v3581 = vand.u32 %v394, 4294901760
        %3582 = vmatmul.f32.gmra.mxu0 %v3581
        %v3583 = vpop.f32.mrf.mxu0
        %v3584 = vadd.f32 %v3441, %v3583
        %v3585 = vand.u32 %v398, 4294901760
        %3586 = vmatmul.f32.gmra.mxu0 %v3585
        %v3587 = vpop.f32.mrf.mxu0
        %v3588 = vadd.f32 %v3447, %v3587
        %v3589 = vand.u32 %v402, 4294901760
        %3590 = vmatmul.f32.gmra.mxu0 %v3589
        %v3591 = vpop.f32.mrf.mxu0
        %v3592 = vadd.f32 %v3453, %v3591
        %v3593 = vand.u32 %v406, 4294901760
        %3594 = vmatmul.f32.gmra.mxu0 %v3593
        %v3595 = vpop.f32.mrf.mxu0
        %v3596 = vadd.f32 %v3459, %v3595
        %v3597 = vand.u32 %v410, 4294901760
        %3598 = vmatmul.f32.gmra.mxu0 %v3597
        %v3599 = vpop.f32.mrf.mxu0
        %v3600 = vadd.f32 %v3465, %v3599
        %v3601 = vand.u32 %v414, 4294901760
        %3602 = vmatmul.f32.gmra.mxu0 %v3601
        %v3603 = vpop.f32.mrf.mxu0
        %v3604 = vadd.f32 %v3471, %v3603
        %v3605 = vand.u32 %v418, 4294901760
        %3606 = vmatmul.f32.gmra.mxu0 %v3605
        %v3607 = vpop.f32.mrf.mxu0
        %v3608 = vadd.f32 %v3477, %v3607
        %v3609 = vand.u32 %v422, 4294901760
        %3610 = vmatmul.f32.gmra.mxu0 %v3609
        %v3611 = vpop.f32.mrf.mxu0
        %v3612 = vadd.f32 %v3483, %v3611
        %3613 = vdwg.mxu0
        %v3614 = vand.u32 %v486, 4294901760
        %3615 = vmatpush.msra.mxu0 %v3614
        %v3616 = vand.u32 %v485, 4294901760
        %3617 = vmatpush.msra.mxu0 %v3616
        %v3618 = vand.u32 %v484, 4294901760
        %3619 = vmatpush.msra.mxu0 %v3618
        %v3620 = vand.u32 %v483, 4294901760
        %3621 = vmatpush.msra.mxu0 %v3620
        %v3622 = vand.u32 %v482, 4294901760
        %3623 = vmatpush.msra.mxu0 %v3622
        %v3624 = vand.u32 %v481, 4294901760
        %3625 = vmatpush.msra.mxu0 %v3624
        %v3626 = vand.u32 %v480, 4294901760
        %3627 = vmatpush.msra.mxu0 %v3626
        %v3628 = vand.u32 %v479, 4294901760
        %3629 = vmatpush.msra.mxu0 %v3628
        %v3630 = vand.u32 %v478, 4294901760
        %3631 = vmatpush.msra.mxu0 %v3630
        %v3632 = vand.u32 %v477, 4294901760
        %3633 = vmatpush.msra.mxu0 %v3632
        %v3634 = vand.u32 %v476, 4294901760
        %3635 = vmatpush.msra.mxu0 %v3634
        %v3636 = vand.u32 %v475, 4294901760
        %3637 = vmatpush.msra.mxu0 %v3636
        %v3638 = vand.u32 %v474, 4294901760
        %3639 = vmatpush.msra.mxu0 %v3638
        %v3640 = vand.u32 %v473, 4294901760
        %3641 = vmatpush.msra.mxu0 %v3640
        %v3642 = vand.u32 %v472, 4294901760
        %3643 = vmatpush.msra.mxu0 %v3642
        %v3644 = vand.u32 %v471, 4294901760
        %3645 = vmatpush.msra.mxu0 %v3644
        %v3646 = vand.u32 %v362, 4294901760
        %3647 = vmatmul.f32.gmra.mxu0 %v3646
        %v3648 = vpop.f32.mrf.mxu0
        %v3649 = vadd.f32 %v3552, %v3648
        %v3650 = vand.u32 %v366, 4294901760
        %3651 = vmatmul.f32.gmra.mxu0 %v3650
        %v3652 = vpop.f32.mrf.mxu0
        %v3653 = vadd.f32 %v3556, %v3652
        %v3654 = vand.u32 %v370, 4294901760
        %3655 = vmatmul.f32.gmra.mxu0 %v3654
        %v3656 = vpop.f32.mrf.mxu0
        %v3657 = vadd.f32 %v3560, %v3656
        %v3658 = vand.u32 %v374, 4294901760
        %3659 = vmatmul.f32.gmra.mxu0 %v3658
        %v3660 = vpop.f32.mrf.mxu0
        %v3661 = vadd.f32 %v3564, %v3660
        %v3662 = vand.u32 %v378, 4294901760
        %3663 = vmatmul.f32.gmra.mxu0 %v3662
        %v3664 = vpop.f32.mrf.mxu0
        %v3665 = vadd.f32 %v3568, %v3664
        %v3666 = vand.u32 %v382, 4294901760
        %3667 = vmatmul.f32.gmra.mxu0 %v3666
        %v3668 = vpop.f32.mrf.mxu0
        %v3669 = vadd.f32 %v3572, %v3668
        %v3670 = vand.u32 %v386, 4294901760
        %3671 = vmatmul.f32.gmra.mxu0 %v3670
        %v3672 = vpop.f32.mrf.mxu0
        %v3673 = vadd.f32 %v3576, %v3672
        %v3674 = vand.u32 %v390, 4294901760
        %3675 = vmatmul.f32.gmra.mxu0 %v3674
        %v3676 = vpop.f32.mrf.mxu0
        %v3677 = vadd.f32 %v3580, %v3676
        %v3678 = vand.u32 %v394, 4294901760
        %3679 = vmatmul.f32.gmra.mxu0 %v3678
        %v3680 = vpop.f32.mrf.mxu0
        %v3681 = vadd.f32 %v3584, %v3680
        %v3682 = vand.u32 %v398, 4294901760
        %3683 = vmatmul.f32.gmra.mxu0 %v3682
        %v3684 = vpop.f32.mrf.mxu0
        %v3685 = vadd.f32 %v3588, %v3684
        %v3686 = vand.u32 %v402, 4294901760
        %3687 = vmatmul.f32.gmra.mxu0 %v3686
        %v3688 = vpop.f32.mrf.mxu0
        %v3689 = vadd.f32 %v3592, %v3688
        %v3690 = vand.u32 %v406, 4294901760
        %3691 = vmatmul.f32.gmra.mxu0 %v3690
        %v3692 = vpop.f32.mrf.mxu0
        %v3693 = vadd.f32 %v3596, %v3692
        %v3694 = vand.u32 %v410, 4294901760
        %3695 = vmatmul.f32.gmra.mxu0 %v3694
        %v3696 = vpop.f32.mrf.mxu0
        %v3697 = vadd.f32 %v3600, %v3696
        %v3698 = vand.u32 %v414, 4294901760
        %3699 = vmatmul.f32.gmra.mxu0 %v3698
        %v3700 = vpop.f32.mrf.mxu0
        %v3701 = vadd.f32 %v3604, %v3700
        %v3702 = vand.u32 %v418, 4294901760
        %3703 = vmatmul.f32.gmra.mxu0 %v3702
        %v3704 = vpop.f32.mrf.mxu0
        %v3705 = vadd.f32 %v3608, %v3704
        %v3706 = vand.u32 %v422, 4294901760
        %3707 = vmatmul.f32.gmra.mxu0 %v3706
        %v3708 = vpop.f32.mrf.mxu0
        %v3709 = vadd.f32 %v3612, %v3708
        %3710 = vdwg.mxu0
        %3711 = vst [vmem:[%s154] sm:$0xff] %v3649
        %3712 = vst [vmem:[%s154 + $0x8] sm:$0xff] %v3653
        %3713 = vst [vmem:[%s154 + $0x10] sm:$0xff] %v3657
        %3714 = vst [vmem:[%s154 + $0x18] sm:$0xff] %v3661
        %3715 = vst [vmem:[%s154 + $0x20] sm:$0xff] %v3665
        %3716 = vst [vmem:[%s154 + $0x28] sm:$0xff] %v3669
        %3717 = vst [vmem:[%s154 + $0x30] sm:$0xff] %v3673
        %3718 = vst [vmem:[%s154 + $0x38] sm:$0xff] %v3677
        %3719 = vst [vmem:[%s154 + $0x40] sm:$0xff] %v3681
        %3720 = vst [vmem:[%s154 + $0x48] sm:$0xff] %v3685
        %3721 = vst [vmem:[%s154 + $0x50] sm:$0xff] %v3689
        %3722 = vst [vmem:[%s154 + $0x58] sm:$0xff] %v3693
        %3723 = vst [vmem:[%s154 + $0x60] sm:$0xff] %v3697
        %3724 = vst [vmem:[%s154 + $0x68] sm:$0xff] %v3701
        %3725 = vst [vmem:[%s154 + $0x70] sm:$0xff] %v3705
        %3726 = vst [vmem:[%s154 + $0x78] sm:$0xff] %v3709
        %s3727 = sand.u32 %s72, 1
        %s3728 = scalar_lea.sflag [#allocation4], %s3727
        %s3729 = sand.u32 %s72, 1
        %s3730 = smul.addr %s3729, 128
        %s3731 = scalar_lea.vmem [#allocation5], %s3730
        // Predicated region
        $region33: #{tpu_custom_call.1} parent=27 // pred_check
          %p3732 = pneg %p82
        $region34: #{tpu_custom_call.1} parent=27 // pred_check_branch
          %3734 = sbr.rel (%p3732) target = $region36
        $region35: #{tpu_custom_call.1} parent=27 // pred_region
          %s3735 = smul.u32 16, %s17
          %3737 = vsyncadd %s3728, 0
          %s3738 = smul.addr %s3735, 8
          %s3739 = scalar_lea.hbm %s2, %s3738
          %s3740 = sshll.u32 %s3731, 4
          %s3741 = int_to_ptr.vmem [resolvable:$true] %s3740
          %s3742 = sshll.u32 %s3739, 4
          %s3743 = int_to_ptr.hbm [resolvable:$true] %s3742
          %3748 = dma.vmem_to_hbm [thread:$0]  %s3741, 2048, %s3743, %s3728, 128, 128, 8
        $region36: #{tpu_custom_call.1} parent=27 // pred_fallthru
          _
      $region28: #{tpu_custom_call.1} parent=5 // pred_fallthru
        _
      %p3749 = scmp.le.s32.totalorder 2, %s12
      // Predicated region
      $region37: #{tpu_custom_call.1} parent=5 // pred_check
        %p3750 = pneg %p3749
      $region38: #{tpu_custom_call.1} parent=5 // pred_check_branch
        %3752 = sbr.rel (%p3750) target = $region40
      $region39: #{tpu_custom_call.1} parent=5 // pred_region
        %s3753 = ssub.s32 %s12, 2
        // Predicated region
        $region41: #{tpu_custom_call.1} parent=39 // pred_check
          %p3754 = pneg %p88
        $region42: #{tpu_custom_call.1} parent=39 // pred_check_branch
          %3756 = sbr.rel (%p3754) target = $region44
        $region43: #{tpu_custom_call.1} parent=39 // pred_region
          %s3757 = sand.u32 %s73, 1
          %s3758 = scalar_lea.sflag [#allocation4], %s3757
          %s3759 = sand.u32 %s73, 1
          %s3760 = smul.addr %s3759, 128
          %s3761 = scalar_lea.vmem [#allocation5], %s3760
          %3763 = dma.done %s3758, 2048
        $region44: #{tpu_custom_call.1} parent=39 // pred_fallthru
          _
      $region40: #{tpu_custom_call.1} parent=5 // pred_fallthru
        _
    $region6: #{tpu_custom_call.1} parent=1 // loop_footer
      %s16 = sadd.s32 1, %s12
    $region7: #{tpu_custom_call.1} parent=1 // loop_footer_branch
      %11 = sbr.rel target = $region3
    $region8: #{tpu_custom_call.1} parent=1 // loop_exit
      _
    %3764 = vsyncpa [#allocation3], 1
    %s3765 = scalar_lea.sflag [#allocation3], 1
    %3766 = vsyncpa %s3765, 1
    %3767 = vsyncpa [#allocation4], 1
    %s3768 = scalar_lea.sflag [#allocation4], 1
    %3769 = vsyncpa %s3768, 1

</llo_original>
